<compile_context>
chip_gen: v7x
topology: tpu7x:2x2x1
jax: 0.10.0
libtpu: 0.0.40
codegen_flags: <defaults>
</compile_context>

<pallas_src>
import functools

import jax
import jax.numpy as jnp
from jax.experimental import pallas as pl
from jax.experimental.pallas import tpu as pltpu


LPAD = 8  # left halo offset (multiple of 8 -> interior scratch store is sublane-aligned)


# ----------------------------------------------------------------------------
# Fused residual-block kernel (one batch image per grid step)
# ----------------------------------------------------------------------------
def residual_block_kernel(x_ref, w1_ref, b1_ref, w2_ref, b2_ref,
                          fw1_ref, fb1_ref, fw2_ref, fb2_ref,
                          o_ref, xp_ref, *, H, W, C):
    # x_ref : (1, H, W, C)   NHWC image tile (C on the 128-lane axis)
    # w*_ref: (9*C, C)       im2col conv weights, BN scale pre-folded into columns
    # b*_ref: (1, C)         folded conv-bias + BN bias
    # fw1   : (C, C//r), fb1: (1, C//r), fw2: (C//r, C), fb2: (1, C)   SE FC params
    # o_ref : (1, H, W, C)
    # xp_ref: (H+2, LPAD+W+1, C) VMEM scratch: zero halo + interior at [1:H+1, LPAD:LPAD+W]
    f32 = jnp.float32

    # Zero the padded scratch every step: keeps the halo at zero and leaves no
    # cross-iteration state, so the batch axis is safe to run "parallel" (megacore).
    xp_ref[...] = jnp.zeros_like(xp_ref)

    x = x_ref[0].astype(f32)                                 # (H, W, C)
    xp_ref[1:H + 1, LPAD:LPAD + W, :] = x                    # aligned interior store

    def conv3x3_bias(w_ref, b_ref):
        # im2col: concat the 9 shifted windows along lanes -> one K=9C matmul.
        patches = jnp.concatenate(
            [xp_ref[kh:kh + H, LPAD - 1 + kw:LPAD - 1 + kw + W, :].reshape(H * W, C)
             for kh in range(3) for kw in range(3)],
            axis=-1)                                         # (H*W, 9*C)
        return jnp.dot(patches, w_ref[...],
                       preferred_element_type=f32) + b_ref[...]

    # conv1 -> folded BN1 -> ReLU
    h1 = jnp.maximum(conv3x3_bias(w1_ref, b1_ref), 0.0)      # (H*W, C)
    # re-use the zero-halo scratch for conv2's SAME padding
    xp_ref[1:H + 1, LPAD:LPAD + W, :] = h1.reshape(H, W, C)
    # conv2 -> folded BN2
    h2 = conv3x3_bias(w2_ref, b2_ref)                        # (H*W, C)

    # Squeeze-Excite: global average pool -> FC -> ReLU -> FC -> sigmoid
    pooled = jnp.mean(h2, axis=0, keepdims=True)             # (1, C)
    g = jnp.dot(pooled, fw1_ref[...], preferred_element_type=f32) + fb1_ref[...]
    g = jnp.maximum(g, 0.0)                                  # (1, C//r)
    s = jax.nn.sigmoid(
        jnp.dot(g, fw2_ref[...], preferred_element_type=f32) + fb2_ref[...])  # (1, C)

    # channel gating + residual add + final ReLU
    out = jnp.maximum(h2 * s + x.reshape(H * W, C), 0.0)
    o_ref[0] = out.reshape(H, W, C).astype(o_ref.dtype)


def fused_residual_block_nhwc(x_nhwc, kp):
    N, H, W, C = x_nhwc.shape
    Cr = kp["fc1_w"].shape[1]
    kernel = functools.partial(residual_block_kernel, H=H, W=W, C=C)
    return pl.pallas_call(
        kernel,
        out_shape=jax.ShapeDtypeStruct((N, H, W, C), x_nhwc.dtype),
        grid_spec=pltpu.PrefetchScalarGridSpec(
            num_scalar_prefetch=0,
            grid=(N,),
            in_specs=[
                pl.BlockSpec((1, H, W, C), lambda n: (n, 0, 0, 0)),   # x
                pl.BlockSpec((9 * C, C), lambda n: (0, 0)),           # conv1 (BN folded)
                pl.BlockSpec((1, C), lambda n: (0, 0)),               # bias1
                pl.BlockSpec((9 * C, C), lambda n: (0, 0)),           # conv2 (BN folded)
                pl.BlockSpec((1, C), lambda n: (0, 0)),               # bias2
                pl.BlockSpec((C, Cr), lambda n: (0, 0)),              # SE fc1 W
                pl.BlockSpec((1, Cr), lambda n: (0, 0)),              # SE fc1 b
                pl.BlockSpec((Cr, C), lambda n: (0, 0)),              # SE fc2 W
                pl.BlockSpec((1, C), lambda n: (0, 0)),               # SE fc2 b
            ],
            out_specs=pl.BlockSpec((1, H, W, C), lambda n: (n, 0, 0, 0)),
            scratch_shapes=[pltpu.VMEM((H + 2, LPAD + W + 1, C), jnp.float32)],
        ),
        compiler_params=pltpu.CompilerParams(
            dimension_semantics=("parallel",),      # batch images are independent
            vmem_limit_bytes=32 * 1024 * 1024,      # safe on v5e/v6e/v7x; usage ~5 MiB
        ),
    )(x_nhwc, kp["w1"], kp["b1"], kp["w2"], kp["b2"],
      kp["fc1_w"], kp["fc1_b"], kp["fc2_w"], kp["fc2_b"])


def residual_block_forward(x_nchw, kp):
    # NCHW adapter to match the PyTorch module interface; an NHWC caller can call
    # fused_residual_block_nhwc directly and skip both transposes.
    x = jnp.transpose(x_nchw, (0, 2, 3, 1))
    y = fused_residual_block_nhwc(x, kp)
    return jnp.transpose(y, (0, 3, 1, 2))


# ----------------------------------------------------------------------------
# Parameter setup (PyTorch layouts) + one-time kernel-side preparation
# ----------------------------------------------------------------------------
def init_torch_like_params(key, C, reduction=8):
    Cr = C // reduction
    ks = jax.random.split(key, 16)
    conv_std = 1.0 / (3.0 * float(C) ** 0.5)
    p = {
        "conv1_w": jax.random.normal(ks[0], (C, C, 3, 3), jnp.float32) * conv_std,  # OIHW
        "conv1_b": jax.random.normal(ks[1], (C,), jnp.float32) * 0.1,
        "conv2_w": jax.random.normal(ks[2], (C, C, 3, 3), jnp.float32) * conv_std,
        "conv2_b": jax.random.normal(ks[3], (C,), jnp.float32) * 0.1,
        "bn1_gamma": 1.0 + 0.1 * jax.random.normal(ks[4], (C,), jnp.float32),
        "bn1_beta": 0.1 * jax.random.normal(ks[5], (C,), jnp.float32),
        "bn1_mean": 0.1 * jax.random.normal(ks[6], (C,), jnp.float32),
        "bn1_var": 1.0 + 0.2 * jax.random.uniform(ks[7], (C,), jnp.float32),
        "bn2_gamma": 1.0 + 0.1 * jax.random.normal(ks[8], (C,), jnp.float32),
        "bn2_beta": 0.1 * jax.random.normal(ks[9], (C,), jnp.float32),
        "bn2_mean": 0.1 * jax.random.normal(ks[10], (C,), jnp.float32),
        "bn2_var": 1.0 + 0.2 * jax.random.uniform(ks[11], (C,), jnp.float32),
        # PyTorch Linear weights are (out, in)
        "fc1_w": jax.random.normal(ks[12], (Cr, C), jnp.float32) / float(C) ** 0.5,
        "fc1_b": jax.random.normal(ks[13], (Cr,), jnp.float32) * 0.1,
        "fc2_w": jax.random.normal(ks[14], (C, Cr), jnp.float32) / float(Cr) ** 0.5,
        "fc2_b": jax.random.normal(ks[15], (C,), jnp.float32) * 0.1,
        "eps": 1e-5,
    }
    return p


def prepare_kernel_params(p):
    """One-time prep: fold eval-mode BN into conv weights/bias, build im2col weights."""
    eps = p["eps"]

    def fold(w_oihw, conv_b, gamma, beta, mean, var):
        scale = gamma / jnp.sqrt(var + eps)                              # (C,)
        bias = (conv_b - mean) * scale + beta                            # (C,)
        cin, cout = w_oihw.shape[1], w_oihw.shape[0]
        # OIHW -> (kh, kw, Cin, Cout) -> (9*Cin, Cout); tap order matches the kernel's
        # concat order (kh-major, kw-minor). Fold the BN scale into output columns.
        w_mat = jnp.transpose(w_oihw, (2, 3, 1, 0)).reshape(9 * cin, cout)
        return w_mat * scale[None, :], bias[None, :]

    w1, b1 = fold(p["conv1_w"], p["conv1_b"], p["bn1_gamma"], p["bn1_beta"],
                  p["bn1_mean"], p["bn1_var"])
    w2, b2 = fold(p["conv2_w"], p["conv2_b"], p["bn2_gamma"], p["bn2_beta"],
                  p["bn2_mean"], p["bn2_var"])
    return {
        "w1": w1, "b1": b1, "w2": w2, "b2": b2,
        "fc1_w": p["fc1_w"].T, "fc1_b": p["fc1_b"][None, :],
        "fc2_w": p["fc2_w"].T, "fc2_b": p["fc2_b"][None, :],
    }


# ----------------------------------------------------------------------------
# Pure-JAX reference (mirrors the PyTorch forward, eval-mode BN, dropout=None)
# ----------------------------------------------------------------------------
def reference_forward(x, p):
    hi = jax.lax.Precision.HIGHEST

    def conv(x, w, b):
        y = jax.lax.conv_general_dilated(
            x, w, (1, 1), "SAME",
            dimension_numbers=("NCHW", "OIHW", "NCHW"), precision=hi)
        return y + b[None, :, None, None]

    def bn(x, g, bta, m, v):
        return (x - m[None, :, None, None]) / jnp.sqrt(
            v[None, :, None, None] + p["eps"]) * g[None, :, None, None] \
            + bta[None, :, None, None]

    residual = x
    out = jax.nn.relu(bn(conv(x, p["conv1_w"], p["conv1_b"]),
                         p["bn1_gamma"], p["bn1_beta"], p["bn1_mean"], p["bn1_var"]))
    out = bn(conv(out, p["conv2_w"], p["conv2_b"]),
             p["bn2_gamma"], p["bn2_beta"], p["bn2_mean"], p["bn2_var"])
    pooled = jnp.mean(out, axis=(2, 3))                                   # (N, C)
    h = jax.nn.relu(jnp.dot(pooled, p["fc1_w"].T, precision=hi) + p["fc1_b"])
    s = jax.nn.sigmoid(jnp.dot(h, p["fc2_w"].T, precision=hi) + p["fc2_b"])
    out = out * s[:, :, None, None]
    return jax.nn.relu(out + residual)


if __name__ == "__main__":
    # C = 128 -> channel axis exactly fills the 128-lane vreg (lane-dense I/O).
    N, C, H, W = 2, 128, 16, 16
    key = jax.random.PRNGKey(0)
    kx, kp_key = jax.random.split(key)
    x = jax.random.normal(kx, (N, C, H, W), jnp.float32)      # PyTorch NCHW input

    params = init_torch_like_params(kp_key, C, reduction=8)
    kparams = prepare_kernel_params(params)                   # done once, off hot path

    out = jax.jit(residual_block_forward)(x, kparams)
    out = jax.block_until_ready(out)

    ref = reference_forward(x, params)
    assert out.shape == (N, C, H, W)
    err = jnp.max(jnp.abs(out - ref))
    assert jnp.allclose(out, ref, atol=2e-3, rtol=2e-3), f"max abs err {err}"
    print("KERNEL_OK")
</pallas_src>

<mosaic_0001>
module attributes {stable_mosaic.version = 11 : i64} {
  func.func @residual_block_kernel(%arg0: i32, %arg1: memref<1x16x16x128xf32, #tpu.memory_space<vmem>>, %arg2: memref<1152x128xf32, #tpu.memory_space<vmem>>, %arg3: memref<1x128xf32, #tpu.memory_space<vmem>>, %arg4: memref<1152x128xf32, #tpu.memory_space<vmem>>, %arg5: memref<1x128xf32, #tpu.memory_space<vmem>>, %arg6: memref<128x16xf32, #tpu.memory_space<vmem>>, %arg7: memref<1x16xf32, #tpu.memory_space<vmem>>, %arg8: memref<16x128xf32, #tpu.memory_space<vmem>>, %arg9: memref<1x128xf32, #tpu.memory_space<vmem>>, %arg10: memref<1x16x16x128xf32, #tpu.memory_space<vmem>>, %arg11: memref<18x25x128xf32, #tpu.memory_space<vmem>>) attributes {dimension_semantics = [#tpu.dimension_semantics<parallel>], iteration_bounds = array<i64: 2>, scalar_prefetch = 0 : i64, scratch_operands = 1 : i64, tpu.core_type = #tpu.core_type<tc>, window_params = [{transform_indices = @transform_0, window_bounds = array<i64: 1, 16, 16, 128>}, {pipeline_mode = #tpu.pipeline_mode<synchronous>, transform_indices = @transform_1, window_bounds = array<i64: 1152, 128>}, {pipeline_mode = #tpu.pipeline_mode<synchronous>, transform_indices = @transform_2, window_bounds = array<i64: 1, 128>}, {pipeline_mode = #tpu.pipeline_mode<synchronous>, transform_indices = @transform_3, window_bounds = array<i64: 1152, 128>}, {pipeline_mode = #tpu.pipeline_mode<synchronous>, transform_indices = @transform_4, window_bounds = array<i64: 1, 128>}, {pipeline_mode = #tpu.pipeline_mode<synchronous>, transform_indices = @transform_5, window_bounds = array<i64: 128, 16>}, {pipeline_mode = #tpu.pipeline_mode<synchronous>, transform_indices = @transform_6, window_bounds = array<i64: 1, 16>}, {pipeline_mode = #tpu.pipeline_mode<synchronous>, transform_indices = @transform_7, window_bounds = array<i64: 16, 128>}, {pipeline_mode = #tpu.pipeline_mode<synchronous>, transform_indices = @transform_8, window_bounds = array<i64: 1, 128>}, {transform_indices = @transform_9, window_bounds = array<i64: 1, 16, 16, 128>}]} {
    %cst = arith.constant 0.000000e+00 : f32
    %0 = vector.broadcast %cst : f32 to vector<18x25x128xf32>
    %c0 = arith.constant 0 : index
    %c0_0 = arith.constant 0 : index
    %c0_1 = arith.constant 0 : index
    %1 = vector.load %arg11[%c0, %c0_0, %c0_1] : memref<18x25x128xf32, #tpu.memory_space<vmem>>, vector<18x25x128xf32>
    tpu.vector_store %arg11[%c0, %c0_0, %c0_1], %0 {strides = array<i32>} : memref<18x25x128xf32, #tpu.memory_space<vmem>>, vector<18x25x128xf32>,
    %c0_2 = arith.constant 0 : index
    %c0_3 = arith.constant 0 : index
    %c0_4 = arith.constant 0 : index
    %c0_5 = arith.constant 0 : index
    %2 = vector.load %arg1[%c0_2, %c0_3, %c0_4, %c0_5] : memref<1x16x16x128xf32, #tpu.memory_space<vmem>>, vector<1x16x16x128xf32>
    %3 = vector.shape_cast %2 : vector<1x16x16x128xf32> to vector<16x16x128xf32>
    %c1 = arith.constant 1 : index
    %c8 = arith.constant 8 : index
    %c0_6 = arith.constant 0 : index
    %4 = vector.load %arg11[%c1, %c8, %c0_6] : memref<18x25x128xf32, #tpu.memory_space<vmem>>, vector<16x16x128xf32>
    tpu.vector_store %arg11[%c1, %c8, %c0_6], %3 {strides = array<i32>} : memref<18x25x128xf32, #tpu.memory_space<vmem>>, vector<16x16x128xf32>,
    %c0_7 = arith.constant 0 : index
    %c7 = arith.constant 7 : index
    %c0_8 = arith.constant 0 : index
    %5 = vector.load %arg11[%c0_7, %c7, %c0_8] : memref<18x25x128xf32, #tpu.memory_space<vmem>>, vector<16x16x128xf32>
    %6 = vector.shape_cast %5 : vector<16x16x128xf32> to vector<256x128xf32>
    %c0_9 = arith.constant 0 : index
    %c8_10 = arith.constant 8 : index
    %c0_11 = arith.constant 0 : index
    %7 = vector.load %arg11[%c0_9, %c8_10, %c0_11] : memref<18x25x128xf32, #tpu.memory_space<vmem>>, vector<16x16x128xf32>
    %8 = vector.shape_cast %7 : vector<16x16x128xf32> to vector<256x128xf32>
    %c0_12 = arith.constant 0 : index
    %c9 = arith.constant 9 : index
    %c0_13 = arith.constant 0 : index
    %9 = vector.load %arg11[%c0_12, %c9, %c0_13] : memref<18x25x128xf32, #tpu.memory_space<vmem>>, vector<16x16x128xf32>
    %10 = vector.shape_cast %9 : vector<16x16x128xf32> to vector<256x128xf32>
    %c1_14 = arith.constant 1 : index
    %c7_15 = arith.constant 7 : index
    %c0_16 = arith.constant 0 : index
    %11 = vector.load %arg11[%c1_14, %c7_15, %c0_16] : memref<18x25x128xf32, #tpu.memory_space<vmem>>, vector<16x16x128xf32>
    %12 = vector.shape_cast %11 : vector<16x16x128xf32> to vector<256x128xf32>
    %c1_17 = arith.constant 1 : index
    %c8_18 = arith.constant 8 : index
    %c0_19 = arith.constant 0 : index
    %13 = vector.load %arg11[%c1_17, %c8_18, %c0_19] : memref<18x25x128xf32, #tpu.memory_space<vmem>>, vector<16x16x128xf32>
    %14 = vector.shape_cast %13 : vector<16x16x128xf32> to vector<256x128xf32>
    %c1_20 = arith.constant 1 : index
    %c9_21 = arith.constant 9 : index
    %c0_22 = arith.constant 0 : index
    %15 = vector.load %arg11[%c1_20, %c9_21, %c0_22] : memref<18x25x128xf32, #tpu.memory_space<vmem>>, vector<16x16x128xf32>
    %16 = vector.shape_cast %15 : vector<16x16x128xf32> to vector<256x128xf32>
    %c2 = arith.constant 2 : index
    %c7_23 = arith.constant 7 : index
    %c0_24 = arith.constant 0 : index
    %17 = vector.load %arg11[%c2, %c7_23, %c0_24] : memref<18x25x128xf32, #tpu.memory_space<vmem>>, vector<16x16x128xf32>
    %18 = vector.shape_cast %17 : vector<16x16x128xf32> to vector<256x128xf32>
    %c2_25 = arith.constant 2 : index
    %c8_26 = arith.constant 8 : index
    %c0_27 = arith.constant 0 : index
    %19 = vector.load %arg11[%c2_25, %c8_26, %c0_27] : memref<18x25x128xf32, #tpu.memory_space<vmem>>, vector<16x16x128xf32>
    %20 = vector.shape_cast %19 : vector<16x16x128xf32> to vector<256x128xf32>
    %c2_28 = arith.constant 2 : index
    %c9_29 = arith.constant 9 : index
    %c0_30 = arith.constant 0 : index
    %21 = vector.load %arg11[%c2_28, %c9_29, %c0_30] : memref<18x25x128xf32, #tpu.memory_space<vmem>>, vector<16x16x128xf32>
    %22 = vector.shape_cast %21 : vector<16x16x128xf32> to vector<256x128xf32>
    %23 = tpu.concatenate %6, %8, %10, %12, %14, %16, %18, %20, %22 in 1 : vector<256x128xf32>, vector<256x128xf32>, vector<256x128xf32>, vector<256x128xf32>, vector<256x128xf32>, vector<256x128xf32>, vector<256x128xf32>, vector<256x128xf32>, vector<256x128xf32> -> vector<256x1152xf32>
    %c0_31 = arith.constant 0 : index
    %c0_32 = arith.constant 0 : index
    %24 = vector.load %arg2[%c0_31, %c0_32] : memref<1152x128xf32, #tpu.memory_space<vmem>>, vector<1152x128xf32>
    %cst_33 = arith.constant dense<0.000000e+00> : vector<256x128xf32>
    %25 = tpu.matmul %23, %24, %cst_33 {dimension_numbers = #tpu.dot_dimension_numbers<[1], [0], [0], [1], [0, 0, 1, 1], [], []>} : vector<256x1152xf32>, vector<1152x128xf32>, vector<256x128xf32> -> vector<256x128xf32>
    %c0_34 = arith.constant 0 : index
    %c0_35 = arith.constant 0 : index
    %26 = vector.load %arg3[%c0_34, %c0_35] : memref<1x128xf32, #tpu.memory_space<vmem>>, vector<1x128xf32>
    %27 = vector.broadcast %26 : vector<1x128xf32> to vector<256x128xf32>
    %28 = arith.addf %25, %27 : vector<256x128xf32>
    %cst_36 = arith.constant 0.000000e+00 : f32
    %29 = vector.broadcast %cst_36 : f32 to vector<256x128xf32>
    %30 = arith.maximumf %28, %29 : vector<256x128xf32>
    %31 = vector.shape_cast %30 : vector<256x128xf32> to vector<16x16x128xf32>
    %c1_37 = arith.constant 1 : index
    %c8_38 = arith.constant 8 : index
    %c0_39 = arith.constant 0 : index
    %32 = vector.load %arg11[%c1_37, %c8_38, %c0_39] : memref<18x25x128xf32, #tpu.memory_space<vmem>>, vector<16x16x128xf32>
    tpu.vector_store %arg11[%c1_37, %c8_38, %c0_39], %31 {strides = array<i32>} : memref<18x25x128xf32, #tpu.memory_space<vmem>>, vector<16x16x128xf32>,
    %c0_40 = arith.constant 0 : index
    %c7_41 = arith.constant 7 : index
    %c0_42 = arith.constant 0 : index
    %33 = vector.load %arg11[%c0_40, %c7_41, %c0_42] : memref<18x25x128xf32, #tpu.memory_space<vmem>>, vector<16x16x128xf32>
    %34 = vector.shape_cast %33 : vector<16x16x128xf32> to vector<256x128xf32>
    %c0_43 = arith.constant 0 : index
    %c8_44 = arith.constant 8 : index
    %c0_45 = arith.constant 0 : index
    %35 = vector.load %arg11[%c0_43, %c8_44, %c0_45] : memref<18x25x128xf32, #tpu.memory_space<vmem>>, vector<16x16x128xf32>
    %36 = vector.shape_cast %35 : vector<16x16x128xf32> to vector<256x128xf32>
    %c0_46 = arith.constant 0 : index
    %c9_47 = arith.constant 9 : index
    %c0_48 = arith.constant 0 : index
    %37 = vector.load %arg11[%c0_46, %c9_47, %c0_48] : memref<18x25x128xf32, #tpu.memory_space<vmem>>, vector<16x16x128xf32>
    %38 = vector.shape_cast %37 : vector<16x16x128xf32> to vector<256x128xf32>
    %c1_49 = arith.constant 1 : index
    %c7_50 = arith.constant 7 : index
    %c0_51 = arith.constant 0 : index
    %39 = vector.load %arg11[%c1_49, %c7_50, %c0_51] : memref<18x25x128xf32, #tpu.memory_space<vmem>>, vector<16x16x128xf32>
    %40 = vector.shape_cast %39 : vector<16x16x128xf32> to vector<256x128xf32>
    %c1_52 = arith.constant 1 : index
    %c8_53 = arith.constant 8 : index
    %c0_54 = arith.constant 0 : index
    %41 = vector.load %arg11[%c1_52, %c8_53, %c0_54] : memref<18x25x128xf32, #tpu.memory_space<vmem>>, vector<16x16x128xf32>
    %42 = vector.shape_cast %41 : vector<16x16x128xf32> to vector<256x128xf32>
    %c1_55 = arith.constant 1 : index
    %c9_56 = arith.constant 9 : index
    %c0_57 = arith.constant 0 : index
    %43 = vector.load %arg11[%c1_55, %c9_56, %c0_57] : memref<18x25x128xf32, #tpu.memory_space<vmem>>, vector<16x16x128xf32>
    %44 = vector.shape_cast %43 : vector<16x16x128xf32> to vector<256x128xf32>
    %c2_58 = arith.constant 2 : index
    %c7_59 = arith.constant 7 : index
    %c0_60 = arith.constant 0 : index
    %45 = vector.load %arg11[%c2_58, %c7_59, %c0_60] : memref<18x25x128xf32, #tpu.memory_space<vmem>>, vector<16x16x128xf32>
    %46 = vector.shape_cast %45 : vector<16x16x128xf32> to vector<256x128xf32>
    %c2_61 = arith.constant 2 : index
    %c8_62 = arith.constant 8 : index
    %c0_63 = arith.constant 0 : index
    %47 = vector.load %arg11[%c2_61, %c8_62, %c0_63] : memref<18x25x128xf32, #tpu.memory_space<vmem>>, vector<16x16x128xf32>
    %48 = vector.shape_cast %47 : vector<16x16x128xf32> to vector<256x128xf32>
    %c2_64 = arith.constant 2 : index
    %c9_65 = arith.constant 9 : index
    %c0_66 = arith.constant 0 : index
    %49 = vector.load %arg11[%c2_64, %c9_65, %c0_66] : memref<18x25x128xf32, #tpu.memory_space<vmem>>, vector<16x16x128xf32>
    %50 = vector.shape_cast %49 : vector<16x16x128xf32> to vector<256x128xf32>
    %51 = tpu.concatenate %34, %36, %38, %40, %42, %44, %46, %48, %50 in 1 : vector<256x128xf32>, vector<256x128xf32>, vector<256x128xf32>, vector<256x128xf32>, vector<256x128xf32>, vector<256x128xf32>, vector<256x128xf32>, vector<256x128xf32>, vector<256x128xf32> -> vector<256x1152xf32>
    %c0_67 = arith.constant 0 : index
    %c0_68 = arith.constant 0 : index
    %52 = vector.load %arg4[%c0_67, %c0_68] : memref<1152x128xf32, #tpu.memory_space<vmem>>, vector<1152x128xf32>
    %cst_69 = arith.constant dense<0.000000e+00> : vector<256x128xf32>
    %53 = tpu.matmul %51, %52, %cst_69 {dimension_numbers = #tpu.dot_dimension_numbers<[1], [0], [0], [1], [0, 0, 1, 1], [], []>} : vector<256x1152xf32>, vector<1152x128xf32>, vector<256x128xf32> -> vector<256x128xf32>
    %c0_70 = arith.constant 0 : index
    %c0_71 = arith.constant 0 : index
    %54 = vector.load %arg5[%c0_70, %c0_71] : memref<1x128xf32, #tpu.memory_space<vmem>>, vector<1x128xf32>
    %55 = vector.broadcast %54 : vector<1x128xf32> to vector<256x128xf32>
    %56 = arith.addf %53, %55 : vector<256x128xf32>
    %cst_72 = arith.constant dense<0.000000e+00> : vector<128xf32>
    %57 = vector.multi_reduction <add>, %56, %cst_72 [0] : vector<256x128xf32> to vector<128xf32>
    %58 = vector.shape_cast %57 : vector<128xf32> to vector<1x128xf32>
    %cst_73 = arith.constant 2.560000e+02 : f32
    %59 = vector.broadcast %cst_73 : f32 to vector<1x128xf32>
    %60 = arith.divf %58, %59 : vector<1x128xf32>
    %c0_74 = arith.constant 0 : index
    %c0_75 = arith.constant 0 : index
    %61 = vector.load %arg6[%c0_74, %c0_75] : memref<128x16xf32, #tpu.memory_space<vmem>>, vector<128x16xf32>
    %cst_76 = arith.constant dense<0.000000e+00> : vector<1x16xf32>
    %62 = tpu.matmul %60, %61, %cst_76 {dimension_numbers = #tpu.dot_dimension_numbers<[1], [0], [0], [1], [0, 0, 1, 1], [], []>} : vector<1x128xf32>, vector<128x16xf32>, vector<1x16xf32> -> vector<1x16xf32>
    %c0_77 = arith.constant 0 : index
    %c0_78 = arith.constant 0 : index
    %63 = vector.load %arg7[%c0_77, %c0_78] : memref<1x16xf32, #tpu.memory_space<vmem>>, vector<1x16xf32>
    %64 = arith.addf %62, %63 : vector<1x16xf32>
    %cst_79 = arith.constant 0.000000e+00 : f32
    %65 = vector.broadcast %cst_79 : f32 to vector<1x16xf32>
    %66 = arith.maximumf %64, %65 : vector<1x16xf32>
    %c0_80 = arith.constant 0 : index
    %c0_81 = arith.constant 0 : index
    %67 = vector.load %arg8[%c0_80, %c0_81] : memref<16x128xf32, #tpu.memory_space<vmem>>, vector<16x128xf32>
    %cst_82 = arith.constant dense<0.000000e+00> : vector<1x128xf32>
    %68 = tpu.matmul %66, %67, %cst_82 {dimension_numbers = #tpu.dot_dimension_numbers<[1], [0], [0], [1], [0, 0, 1, 1], [], []>} : vector<1x16xf32>, vector<16x128xf32>, vector<1x128xf32> -> vector<1x128xf32>
    %c0_83 = arith.constant 0 : index
    %c0_84 = arith.constant 0 : index
    %69 = vector.load %arg9[%c0_83, %c0_84] : memref<1x128xf32, #tpu.memory_space<vmem>>, vector<1x128xf32>
    %70 = arith.addf %68, %69 : vector<1x128xf32>
    %71 = arith.negf %70 : vector<1x128xf32>
    %72 = math.exp %71 : vector<1x128xf32>
    %cst_85 = arith.constant 1.000000e+00 : f32
    %73 = vector.broadcast %cst_85 : f32 to vector<1x128xf32>
    %74 = arith.addf %73, %72 : vector<1x128xf32>
    %75 = arith.divf %73, %74 : vector<1x128xf32>
    %76 = vector.broadcast %75 : vector<1x128xf32> to vector<256x128xf32>
    %77 = arith.mulf %56, %76 : vector<256x128xf32>
    %78 = vector.shape_cast %3 : vector<16x16x128xf32> to vector<256x128xf32>
    %79 = arith.addf %77, %78 : vector<256x128xf32>
    %cst_86 = arith.constant 0.000000e+00 : f32
    %80 = vector.broadcast %cst_86 : f32 to vector<256x128xf32>
    %81 = arith.maximumf %79, %80 : vector<256x128xf32>
    %82 = vector.shape_cast %81 : vector<256x128xf32> to vector<16x16x128xf32>
    %c0_87 = arith.constant 0 : index
    %c0_88 = arith.constant 0 : index
    %c0_89 = arith.constant 0 : index
    %c0_90 = arith.constant 0 : index
    %83 = vector.load %arg10[%c0_87, %c0_88, %c0_89, %c0_90] : memref<1x16x16x128xf32, #tpu.memory_space<vmem>>, vector<1x16x16x128xf32>
    %84 = vector.shape_cast %83 : vector<1x16x16x128xf32> to vector<16x16x128xf32>
    %85 = vector.shape_cast %82 : vector<16x16x128xf32> to vector<1x16x16x128xf32>
    tpu.vector_store %arg10[%c0_87, %c0_88, %c0_89, %c0_90], %85 {strides = array<i32>} : memref<1x16x16x128xf32, #tpu.memory_space<vmem>>, vector<1x16x16x128xf32>,
    return
  }
  func.func @transform_0(%arg0: i32) -> (i32, i32, i32, i32) {
    %c0_i32 = arith.constant 0 : i32
    %c0_i32_0 = arith.constant 0 : i32
    %c0_i32_1 = arith.constant 0 : i32
    %c0_i32_2 = arith.constant 0 : i32
    return %arg0, %c0_i32, %c0_i32_0, %c0_i32_1 : i32, i32, i32, i32
  }
  func.func @transform_1(%arg0: i32) -> (i32, i32) {
    %c0_i32 = arith.constant 0 : i32
    %c0_i32_0 = arith.constant 0 : i32
    %c0_i32_1 = arith.constant 0 : i32
    return %c0_i32, %c0_i32_0 : i32, i32
  }
  func.func @transform_2(%arg0: i32) -> (i32, i32) {
    %c0_i32 = arith.constant 0 : i32
    %c0_i32_0 = arith.constant 0 : i32
    %c0_i32_1 = arith.constant 0 : i32
    return %c0_i32, %c0_i32_0 : i32, i32
  }
  func.func @transform_3(%arg0: i32) -> (i32, i32) {
    %c0_i32 = arith.constant 0 : i32
    %c0_i32_0 = arith.constant 0 : i32
    %c0_i32_1 = arith.constant 0 : i32
    return %c0_i32, %c0_i32_0 : i32, i32
  }
  func.func @transform_4(%arg0: i32) -> (i32, i32) {
    %c0_i32 = arith.constant 0 : i32
    %c0_i32_0 = arith.constant 0 : i32
    %c0_i32_1 = arith.constant 0 : i32
    return %c0_i32, %c0_i32_0 : i32, i32
  }
  func.func @transform_5(%arg0: i32) -> (i32, i32) {
    %c0_i32 = arith.constant 0 : i32
    %c0_i32_0 = arith.constant 0 : i32
    %c0_i32_1 = arith.constant 0 : i32
    return %c0_i32, %c0_i32_0 : i32, i32
  }
  func.func @transform_6(%arg0: i32) -> (i32, i32) {
    %c0_i32 = arith.constant 0 : i32
    %c0_i32_0 = arith.constant 0 : i32
    %c0_i32_1 = arith.constant 0 : i32
    return %c0_i32, %c0_i32_0 : i32, i32
  }
  func.func @transform_7(%arg0: i32) -> (i32, i32) {
    %c0_i32 = arith.constant 0 : i32
    %c0_i32_0 = arith.constant 0 : i32
    %c0_i32_1 = arith.constant 0 : i32
    return %c0_i32, %c0_i32_0 : i32, i32
  }
  func.func @transform_8(%arg0: i32) -> (i32, i32) {
    %c0_i32 = arith.constant 0 : i32
    %c0_i32_0 = arith.constant 0 : i32
    %c0_i32_1 = arith.constant 0 : i32
    return %c0_i32, %c0_i32_0 : i32, i32
  }
  func.func @transform_9(%arg0: i32) -> (i32, i32, i32, i32) {
    %c0_i32 = arith.constant 0 : i32
    %c0_i32_0 = arith.constant 0 : i32
    %c0_i32_1 = arith.constant 0 : i32
    %c0_i32_2 = arith.constant 0 : i32
    return %arg0, %c0_i32, %c0_i32_0, %c0_i32_1 : i32, i32, i32, i32
  }
}

</mosaic_0001>

<llo_original>
// kernel: residual_block_forward.1
$region0: #{residual_block_forward.1}
  #allocation0 [shape = 'u32[]', space=smem, size = 0x4, offset = 0x4, fixed_abs, tag = 'smem constant byte address 0x4 - core index']
  #allocation1 [shape = 'u32[144,128]{1,0:T(1,128)}', space=vmem, size = 0x12000, scoped, tag = 'internal scratch']
  #allocation2 [shape = 'f32[18,25,128]{2,1,0:T(8,128)}', space=vmem, size = 0x48000, scoped, tag = 'scratch operand']
  %s0 = inlined_call_operand.hbm [shape: f32[2,16,16,128], index: 0, kind: input, shape index: {}]
  %s1 = inlined_call_operand.hbm [shape: f32[1152,128], index: 1, kind: input, shape index: {}]
  %s2 = inlined_call_operand.vmem [shape: f32[1,128], index: 2, kind: input, shape index: {}]
  %s3 = inlined_call_operand.hbm [shape: f32[1152,128], index: 3, kind: input, shape index: {}]
  %s4 = inlined_call_operand.vmem [shape: f32[1,128], index: 4, kind: input, shape index: {}]
  %s5 = inlined_call_operand.vmem [shape: f32[128,16], index: 5, kind: input, shape index: {}]
  %s6 = inlined_call_operand.vmem [shape: f32[1,16], index: 6, kind: input, shape index: {}]
  %s7 = inlined_call_operand.vmem [shape: f32[16,128], index: 7, kind: input, shape index: {}]
  %s8 = inlined_call_operand.vmem [shape: f32[1,128], index: 8, kind: input, shape index: {}]
  %s9 = inlined_call_operand.hbm [shape: f32[2,16,16,128], index: 9, kind: output, shape index: {}]
  %s10 = sld [smem:[#allocation0]]
  $region81: #{residual_block_forward.1} parent=0
    _
  %s12 = ssub.s32 1, %s10
  %s13 = scalar_select 0, %s12, %s10
  $region1: #{residual_block_forward.1} parent=0
    #allocation3 [shape = 'u8[262144]{0}', space=vmem, size = 0x40000, scoped, tag = 'input window, operand 0']
    #allocation4 [shape = 's32[2]{0}', space=sflag, size = 0x8, scoped, tag = 'scoped memory for residual_block_forward.1']
    #allocation5 [shape = 's32[2]{0}', space=sflag, size = 0x8, scoped, tag = 'scoped memory for residual_block_forward.1']
    #allocation6 [shape = 'u8[589824]{0}', space=vmem, size = 0x90000, scoped, tag = 'input window, operand 1, single buffered']
    #allocation7 [shape = 's32[1]{0}', space=sflag, size = 0x4, scoped, tag = 'scoped memory for residual_block_forward.1']
    #allocation8 [shape = 'u8[589824]{0}', space=vmem, size = 0x90000, scoped, tag = 'input window, operand 3, single buffered']
    #allocation9 [shape = 'u8[262144]{0}', space=vmem, size = 0x40000, scoped, tag = 'output window, operand 0']
    %14 = vsyncpa [#allocation4], 0
    %s15 = scalar_lea.sflag [#allocation4], 1
    %16 = vsyncpa %s15, 0
    %17 = vsyncpa [#allocation7], 0
    %18 = vsyncpa [#allocation5], 0
    %s19 = scalar_lea.sflag [#allocation5], 1
    %20 = vsyncpa %s19, 0
    loop: start=0, step=1, limit=4
    $region2: #{residual_block_forward.1} parent=1 // loop_pre_header
      _
    $region3: #{residual_block_forward.1} parent=1 // loop_header
      %s22 = sphi 0, %s26
      %p23 = scmp.ge.s32.totalorder %s22, 4
      %s32 = sphi 0, %s34
      %s35 = sphi 0, %s32
      %s36 = sphi 0, %s35
      %s52 = sphi 0, %s36
      %s56 = sphi 0, %s56
      %s58 = sphi 0, %s56
      %s59 = sphi 0, %s58
      %s73 = sphi 0, %s59
      %s77 = sphi 0, %s77
      %s79 = sphi 0, %s77
      %s80 = sphi 0, %s79
      %s94 = sphi 0, %s80
      %s98 = sphi 0, %s98
      %s100 = sphi 0, %s98
      %s101 = sphi 0, %s100
      %s115 = sphi 0, %s101
      %s119 = sphi 0, %s119
      %s121 = sphi 0, %s119
      %s122 = sphi 0, %s121
      %s136 = sphi 0, %s122
      %s140 = sphi 0, %s140
      %s142 = sphi 0, %s140
      %s143 = sphi 0, %s142
      %s157 = sphi 0, %s143
      %s161 = sphi 0, %s161
      %s163 = sphi 0, %s161
      %s164 = sphi 0, %s163
      %s178 = sphi 0, %s164
      %s182 = sphi 0, %s182
      %s184 = sphi 0, %s182
      %s185 = sphi 0, %s184
      %s199 = sphi 0, %s185
      %s203 = sphi 0, %s203
      %s205 = sphi 0, %s203
      %s206 = sphi 0, %s205
      %s220 = sphi 0, %s206
      %s226 = sphi 0, %s228
      %s229 = sphi 0, %s226
      %s230 = sphi 0, %s229
      %s246 = sphi 0, %s230
    $region4: #{residual_block_forward.1} parent=1 // loop_header_branch
      %25 = sbr.rel (%p23) target = $region8
    $region5: #{residual_block_forward.1} parent=1 // loop_body
      %s27 = ssub.s32 %s22, 1
      %s28 = ssub.s32 %s22, 2
      %s29 = sadd.s32 %s22, 1
      %s30 = ssub.s32 %s22, %s29
      %p31 = scmp.eq.s32.totalorder %s30, 0
      %s33 = sadd.s32 %s32, 1
      %s34 = scalar_select %p31, %s32, %s33
      %p37 = pneg %p31
      %p38 = scmp.eq.s32.totalorder %s22, 1
      %p39 = por %p37, %p38
      %p40 = scmp.ne.s32.totalorder %s32, %s35
      %p41 = scmp.eq.s32.totalorder %s22, 0
      %p42 = por %p40, %p41
      %p43 = scmp.ne.s32.totalorder %s32, %s35
      %p44 = scmp.eq.s32.totalorder %s27, 1
      %p45 = por %p43, %p44
      %p46 = scmp.ne.s32.totalorder %s35, %s36
      %p47 = scmp.eq.s32.totalorder %s27, 0
      %p48 = por %p46, %p47
      %p49 = scmp.ne.s32.totalorder %s35, %s36
      %p50 = scmp.eq.s32.totalorder %s28, 1
      %p51 = por %p49, %p50
      %p53 = scmp.ne.s32.totalorder %s36, %s52
      %p54 = scmp.eq.s32.totalorder %s28, 0
      %p55 = por %p53, %p54
      %s57 = sadd.s32 %s56, 1
      %p60 = scmp.eq.s32.totalorder %s22, 1
      %p61 = scmp.ne.s32.totalorder %s56, %s58
      %p62 = scmp.eq.s32.totalorder %s22, 0
      %p63 = por %p61, %p62
      %p64 = scmp.ne.s32.totalorder %s56, %s58
      %p65 = scmp.eq.s32.totalorder %s27, 1
      %p66 = por %p64, %p65
      %p67 = scmp.ne.s32.totalorder %s58, %s59
      %p68 = scmp.eq.s32.totalorder %s27, 0
      %p69 = por %p67, %p68
      %p70 = scmp.ne.s32.totalorder %s58, %s59
      %p71 = scmp.eq.s32.totalorder %s28, 1
      %p72 = por %p70, %p71
      %p74 = scmp.ne.s32.totalorder %s59, %s73
      %p75 = scmp.eq.s32.totalorder %s28, 0
      %p76 = por %p74, %p75
      %s78 = sadd.s32 %s77, 1
      %p81 = scmp.eq.s32.totalorder %s22, 1
      %p82 = scmp.ne.s32.totalorder %s77, %s79
      %p83 = scmp.eq.s32.totalorder %s22, 0
      %p84 = por %p82, %p83
      %p85 = scmp.ne.s32.totalorder %s77, %s79
      %p86 = scmp.eq.s32.totalorder %s27, 1
      %p87 = por %p85, %p86
      %p88 = scmp.ne.s32.totalorder %s79, %s80
      %p89 = scmp.eq.s32.totalorder %s27, 0
      %p90 = por %p88, %p89
      %p91 = scmp.ne.s32.totalorder %s79, %s80
      %p92 = scmp.eq.s32.totalorder %s28, 1
      %p93 = por %p91, %p92
      %p95 = scmp.ne.s32.totalorder %s80, %s94
      %p96 = scmp.eq.s32.totalorder %s28, 0
      %p97 = por %p95, %p96
      %s99 = sadd.s32 %s98, 1
      %p102 = scmp.eq.s32.totalorder %s22, 1
      %p103 = scmp.ne.s32.totalorder %s98, %s100
      %p104 = scmp.eq.s32.totalorder %s22, 0
      %p105 = por %p103, %p104
      %p106 = scmp.ne.s32.totalorder %s98, %s100
      %p107 = scmp.eq.s32.totalorder %s27, 1
      %p108 = por %p106, %p107
      %p109 = scmp.ne.s32.totalorder %s100, %s101
      %p110 = scmp.eq.s32.totalorder %s27, 0
      %p111 = por %p109, %p110
      %p112 = scmp.ne.s32.totalorder %s100, %s101
      %p113 = scmp.eq.s32.totalorder %s28, 1
      %p114 = por %p112, %p113
      %p116 = scmp.ne.s32.totalorder %s101, %s115
      %p117 = scmp.eq.s32.totalorder %s28, 0
      %p118 = por %p116, %p117
      %s120 = sadd.s32 %s119, 1
      %p123 = scmp.eq.s32.totalorder %s22, 1
      %p124 = scmp.ne.s32.totalorder %s119, %s121
      %p125 = scmp.eq.s32.totalorder %s22, 0
      %p126 = por %p124, %p125
      %p127 = scmp.ne.s32.totalorder %s119, %s121
      %p128 = scmp.eq.s32.totalorder %s27, 1
      %p129 = por %p127, %p128
      %p130 = scmp.ne.s32.totalorder %s121, %s122
      %p131 = scmp.eq.s32.totalorder %s27, 0
      %p132 = por %p130, %p131
      %p133 = scmp.ne.s32.totalorder %s121, %s122
      %p134 = scmp.eq.s32.totalorder %s28, 1
      %p135 = por %p133, %p134
      %p137 = scmp.ne.s32.totalorder %s122, %s136
      %p138 = scmp.eq.s32.totalorder %s28, 0
      %p139 = por %p137, %p138
      %s141 = sadd.s32 %s140, 1
      %p144 = scmp.eq.s32.totalorder %s22, 1
      %p145 = scmp.ne.s32.totalorder %s140, %s142
      %p146 = scmp.eq.s32.totalorder %s22, 0
      %p147 = por %p145, %p146
      %p148 = scmp.ne.s32.totalorder %s140, %s142
      %p149 = scmp.eq.s32.totalorder %s27, 1
      %p150 = por %p148, %p149
      %p151 = scmp.ne.s32.totalorder %s142, %s143
      %p152 = scmp.eq.s32.totalorder %s27, 0
      %p153 = por %p151, %p152
      %p154 = scmp.ne.s32.totalorder %s142, %s143
      %p155 = scmp.eq.s32.totalorder %s28, 1
      %p156 = por %p154, %p155
      %p158 = scmp.ne.s32.totalorder %s143, %s157
      %p159 = scmp.eq.s32.totalorder %s28, 0
      %p160 = por %p158, %p159
      %s162 = sadd.s32 %s161, 1
      %p165 = scmp.eq.s32.totalorder %s22, 1
      %p166 = scmp.ne.s32.totalorder %s161, %s163
      %p167 = scmp.eq.s32.totalorder %s22, 0
      %p168 = por %p166, %p167
      %p169 = scmp.ne.s32.totalorder %s161, %s163
      %p170 = scmp.eq.s32.totalorder %s27, 1
      %p171 = por %p169, %p170
      %p172 = scmp.ne.s32.totalorder %s163, %s164
      %p173 = scmp.eq.s32.totalorder %s27, 0
      %p174 = por %p172, %p173
      %p175 = scmp.ne.s32.totalorder %s163, %s164
      %p176 = scmp.eq.s32.totalorder %s28, 1
      %p177 = por %p175, %p176
      %p179 = scmp.ne.s32.totalorder %s164, %s178
      %p180 = scmp.eq.s32.totalorder %s28, 0
      %p181 = por %p179, %p180
      %s183 = sadd.s32 %s182, 1
      %p186 = scmp.eq.s32.totalorder %s22, 1
      %p187 = scmp.ne.s32.totalorder %s182, %s184
      %p188 = scmp.eq.s32.totalorder %s22, 0
      %p189 = por %p187, %p188
      %p190 = scmp.ne.s32.totalorder %s182, %s184
      %p191 = scmp.eq.s32.totalorder %s27, 1
      %p192 = por %p190, %p191
      %p193 = scmp.ne.s32.totalorder %s184, %s185
      %p194 = scmp.eq.s32.totalorder %s27, 0
      %p195 = por %p193, %p194
      %p196 = scmp.ne.s32.totalorder %s184, %s185
      %p197 = scmp.eq.s32.totalorder %s28, 1
      %p198 = por %p196, %p197
      %p200 = scmp.ne.s32.totalorder %s185, %s199
      %p201 = scmp.eq.s32.totalorder %s28, 0
      %p202 = por %p200, %p201
      %s204 = sadd.s32 %s203, 1
      %p207 = scmp.eq.s32.totalorder %s22, 1
      %p208 = scmp.ne.s32.totalorder %s203, %s205
      %p209 = scmp.eq.s32.totalorder %s22, 0
      %p210 = por %p208, %p209
      %p211 = scmp.ne.s32.totalorder %s203, %s205
      %p212 = scmp.eq.s32.totalorder %s27, 1
      %p213 = por %p211, %p212
      %p214 = scmp.ne.s32.totalorder %s205, %s206
      %p215 = scmp.eq.s32.totalorder %s27, 0
      %p216 = por %p214, %p215
      %p217 = scmp.ne.s32.totalorder %s205, %s206
      %p218 = scmp.eq.s32.totalorder %s28, 1
      %p219 = por %p217, %p218
      %p221 = scmp.ne.s32.totalorder %s206, %s220
      %p222 = scmp.eq.s32.totalorder %s28, 0
      %p223 = por %p221, %p222
      %s224 = ssub.s32 %s22, %s29
      %p225 = scmp.eq.s32.totalorder %s224, 0
      %s227 = sadd.s32 %s226, 1
      %s228 = scalar_select %p225, %s226, %s227
      %p231 = pneg %p225
      %p232 = scmp.eq.s32.totalorder %s22, 1
      %p233 = por %p231, %p232
      %p234 = scmp.ne.s32.totalorder %s226, %s229
      %p235 = scmp.eq.s32.totalorder %s22, 0
      %p236 = por %p234, %p235
      %p237 = scmp.ne.s32.totalorder %s226, %s229
      %p238 = scmp.eq.s32.totalorder %s27, 1
      %p239 = por %p237, %p238
      %p240 = scmp.ne.s32.totalorder %s229, %s230
      %p241 = scmp.eq.s32.totalorder %s27, 0
      %p242 = por %p240, %p241
      %p243 = scmp.ne.s32.totalorder %s229, %s230
      %p244 = scmp.eq.s32.totalorder %s28, 1
      %p245 = por %p243, %p244
      %p247 = scmp.ne.s32.totalorder %s230, %s246
      %p248 = scmp.eq.s32.totalorder %s28, 0
      %p249 = por %p247, %p248
      %p250 = scmp.le.s32.totalorder 1, %s22
      %p251 = scmp.lt.s32.totalorder %s22, 3
      %p252 = pnand %p250, %p251
      %p253 = pneg %p252
      // Predicated region
      $region9: #{residual_block_forward.1} parent=5 // pred_check
        _
      $region10: #{residual_block_forward.1} parent=5 // pred_check_branch
        %255 = sbr.rel (%p252) target = $region12
      $region11: #{residual_block_forward.1} parent=5 // pred_region
        %s256 = ssub.s32 %s22, 1
        // Predicated region
        $region13: #{residual_block_forward.1} parent=11 // pred_check
          %p257 = pneg %p69
        $region14: #{residual_block_forward.1} parent=11 // pred_check_branch
          %259 = sbr.rel (%p257) target = $region16
        $region15: #{residual_block_forward.1} parent=11 // pred_region
          %s261 = ssub.s32 18432, 18432
          %262 = vsyncadd [#allocation7], %s261
          %s263 = sshll.u32 [#allocation6], 4
          %s264 = int_to_ptr.vmem [resolvable:$true] %s263
          %269 = dma.hbm_to_vmem [thread:$0]  %s1, 18432, %s264, [#allocation7], 128, 128, 8
        $region16: #{residual_block_forward.1} parent=11 // pred_fallthru
          _
        // Predicated region
        $region17: #{residual_block_forward.1} parent=11 // pred_check
          %p270 = pneg %p90
        $region18: #{residual_block_forward.1} parent=11 // pred_check_branch
          %272 = sbr.rel (%p270) target = $region20
        $region19: #{residual_block_forward.1} parent=11 // pred_region
          _
        $region20: #{residual_block_forward.1} parent=11 // pred_fallthru
          _
        // Predicated region
        $region21: #{residual_block_forward.1} parent=11 // pred_check
          %p273 = pneg %p111
        $region22: #{residual_block_forward.1} parent=11 // pred_check_branch
          %275 = sbr.rel (%p273) target = $region24
        $region23: #{residual_block_forward.1} parent=11 // pred_region
          %s277 = ssub.s32 18432, 18432
          %278 = vsyncadd [#allocation7], %s277
          %s279 = sshll.u32 [#allocation8], 4
          %s280 = int_to_ptr.vmem [resolvable:$true] %s279
          %285 = dma.hbm_to_vmem [thread:$0]  %s3, 18432, %s280, [#allocation7], 128, 128, 8
        $region24: #{residual_block_forward.1} parent=11 // pred_fallthru
          _
        // Predicated region
        $region25: #{residual_block_forward.1} parent=11 // pred_check
          %p286 = pneg %p132
        $region26: #{residual_block_forward.1} parent=11 // pred_check_branch
          %288 = sbr.rel (%p286) target = $region28
        $region27: #{residual_block_forward.1} parent=11 // pred_region
          _
        $region28: #{residual_block_forward.1} parent=11 // pred_fallthru
          _
        // Predicated region
        $region29: #{residual_block_forward.1} parent=11 // pred_check
          %p289 = pneg %p153
        $region30: #{residual_block_forward.1} parent=11 // pred_check_branch
          %291 = sbr.rel (%p289) target = $region32
        $region31: #{residual_block_forward.1} parent=11 // pred_region
          _
        $region32: #{residual_block_forward.1} parent=11 // pred_fallthru
          _
        // Predicated region
        $region33: #{residual_block_forward.1} parent=11 // pred_check
          %p292 = pneg %p174
        $region34: #{residual_block_forward.1} parent=11 // pred_check_branch
          %294 = sbr.rel (%p292) target = $region36
        $region35: #{residual_block_forward.1} parent=11 // pred_region
          _
        $region36: #{residual_block_forward.1} parent=11 // pred_fallthru
          _
        // Predicated region
        $region37: #{residual_block_forward.1} parent=11 // pred_check
          %p295 = pneg %p195
        $region38: #{residual_block_forward.1} parent=11 // pred_check_branch
          %297 = sbr.rel (%p295) target = $region40
        $region39: #{residual_block_forward.1} parent=11 // pred_region
          _
        $region40: #{residual_block_forward.1} parent=11 // pred_fallthru
          _
        // Predicated region
        $region41: #{residual_block_forward.1} parent=11 // pred_check
          %p298 = pneg %p216
        $region42: #{residual_block_forward.1} parent=11 // pred_check_branch
          %300 = sbr.rel (%p298) target = $region44
        $region43: #{residual_block_forward.1} parent=11 // pred_region
          _
        $region44: #{residual_block_forward.1} parent=11 // pred_fallthru
          _
      $region12: #{residual_block_forward.1} parent=5 // pred_fallthru
        _
      %p301 = scmp.lt.s32.totalorder %s22, 2
      // Predicated region
      $region45: #{residual_block_forward.1} parent=5 // pred_check
        %p302 = pneg %p301
      $region46: #{residual_block_forward.1} parent=5 // pred_check_branch
        %304 = sbr.rel (%p302) target = $region48
      $region47: #{residual_block_forward.1} parent=5 // pred_region
        // Predicated region
        $region49: #{residual_block_forward.1} parent=47 // pred_check
          %p305 = pneg %p42
        $region50: #{residual_block_forward.1} parent=47 // pred_check_branch
          %307 = sbr.rel (%p305) target = $region52
        $region51: #{residual_block_forward.1} parent=47 // pred_region
          %s308 = sand.u32 %s32, 1
          %s309 = scalar_lea.sflag [#allocation4], %s308
          %s310 = sand.u32 %s32, 1
          %s311 = smul.addr %s310, 256
          %s312 = scalar_lea.vmem [#allocation3], %s311
          %s314 = ssub.s32 4096, 4096
          %315 = vsyncadd %s309, %s314
          %s316 = smul.addr %s22, 32
          %s317 = smul.addr %s316, 128
          %s318 = scalar_lea.hbm %s0, %s317
          %s319 = sshll.u32 %s312, 4
          %s320 = int_to_ptr.vmem [resolvable:$true] %s319
          %325 = dma.hbm_to_vmem [thread:$0]  %s318, 4096, %s320, %s309, 128, 128, 8
        $region52: #{residual_block_forward.1} parent=47 // pred_fallthru
          _
      $region48: #{residual_block_forward.1} parent=5 // pred_fallthru
        _
      %p326 = scmp.le.s32.totalorder 1, %s22
      %p327 = scmp.lt.s32.totalorder %s22, 3
      %p328 = pnand %p326, %p327
      %p329 = pneg %p328
      // Predicated region
      $region53: #{residual_block_forward.1} parent=5 // pred_check
        _
      $region54: #{residual_block_forward.1} parent=5 // pred_check_branch
        %331 = sbr.rel (%p328) target = $region56
      $region55: #{residual_block_forward.1} parent=5 // pred_region
        %s332 = ssub.s32 %s22, 1
        %s333 = sand.u32 %s35, 1
        %s334 = scalar_lea.sflag [#allocation4], %s333
        %s335 = sand.u32 %s35, 1
        %s336 = smul.addr %s335, 256
        %s337 = scalar_lea.vmem [#allocation3], %s336
        // Predicated region
        $region57: #{residual_block_forward.1} parent=55 // pred_check
          %p338 = pneg %p48
        $region58: #{residual_block_forward.1} parent=55 // pred_check_branch
          %340 = sbr.rel (%p338) target = $region60
        $region59: #{residual_block_forward.1} parent=55 // pred_region
          %341 = dma.done %s334, 4096
        $region60: #{residual_block_forward.1} parent=55 // pred_fallthru
          _
        // Predicated region
        $region61: #{residual_block_forward.1} parent=55 // pred_check
          %p342 = pneg %p69
        $region62: #{residual_block_forward.1} parent=55 // pred_check_branch
          %344 = sbr.rel (%p342) target = $region64
        $region63: #{residual_block_forward.1} parent=55 // pred_region
          %345 = dma.done [#allocation7], 18432
        $region64: #{residual_block_forward.1} parent=55 // pred_fallthru
          _
        // Predicated region
        $region65: #{residual_block_forward.1} parent=55 // pred_check
          %p346 = pneg %p111
        $region66: #{residual_block_forward.1} parent=55 // pred_check_branch
          %348 = sbr.rel (%p346) target = $region68
        $region67: #{residual_block_forward.1} parent=55 // pred_region
          %349 = dma.done [#allocation7], 18432
        $region68: #{residual_block_forward.1} parent=55 // pred_fallthru
          _
        %s350 = sand.u32 %s35, 1
        %s351 = scalar_lea.sflag [#allocation4], %s350
        %s352 = sand.u32 %s35, 1
        %s353 = smul.addr %s352, 256
        %s354 = scalar_lea.vmem [#allocation3], %s353
        %p355 = pneg %p48
        %p356 = pneg %p45
        %p357 = pneg %p69
        %p358 = pneg %p66
        %p359 = pneg %p90
        %p360 = pneg %p87
        %p361 = pneg %p111
        %p362 = pneg %p108
        %p363 = pneg %p132
        %p364 = pneg %p129
        %p365 = pneg %p153
        %p366 = pneg %p150
        %p367 = pneg %p174
        %p368 = pneg %p171
        %p369 = pneg %p195
        %p370 = pneg %p192
        %p371 = pneg %p216
        %p372 = pneg %p213
        %p373 = pneg %p242
        %p374 = pneg %p239
        %s375 = sand.u32 %s229, 1
        %s376 = scalar_lea.sflag [#allocation5], %s375
        %s377 = sand.u32 %s229, 1
        %s378 = smul.addr %s377, 256
        %s379 = scalar_lea.vmem [#allocation9], %s378
        %380 = vst [vmem:[#allocation2] sm:$0xff] 0.0
        %381 = vst [vmem:[#allocation2 + $0x8] sm:$0xff] 0.0
        %382 = vst [vmem:[#allocation2 + $0x10] sm:$0xff] 0.0
        %383 = vst [vmem:[#allocation2 + $0x18] sm:$0x1] 0.0
        %384 = vst [vmem:[#allocation2 + $0x20] sm:$0xff] 0.0
        %385 = vst [vmem:[#allocation2 + $0x28] sm:$0xff] 0.0
        %386 = vst [vmem:[#allocation2 + $0x30] sm:$0xff] 0.0
        %387 = vst [vmem:[#allocation2 + $0x38] sm:$0x1] 0.0
        %388 = vst [vmem:[#allocation2 + $0x40] sm:$0xff] 0.0
        %389 = vst [vmem:[#allocation2 + $0x48] sm:$0xff] 0.0
        %390 = vst [vmem:[#allocation2 + $0x50] sm:$0xff] 0.0
        %391 = vst [vmem:[#allocation2 + $0x58] sm:$0x1] 0.0
        %392 = vst [vmem:[#allocation2 + $0x60] sm:$0xff] 0.0
        %393 = vst [vmem:[#allocation2 + $0x68] sm:$0xff] 0.0
        %394 = vst [vmem:[#allocation2 + $0x70] sm:$0xff] 0.0
        %395 = vst [vmem:[#allocation2 + $0x78] sm:$0x1] 0.0
        %396 = vst [vmem:[#allocation2 + $0x80] sm:$0xff] 0.0
        %397 = vst [vmem:[#allocation2 + $0x88] sm:$0xff] 0.0
        %398 = vst [vmem:[#allocation2 + $0x90] sm:$0xff] 0.0
        %399 = vst [vmem:[#allocation2 + $0x98] sm:$0x1] 0.0
        %400 = vst [vmem:[#allocation2 + $0xa0] sm:$0xff] 0.0
        %401 = vst [vmem:[#allocation2 + $0xa8] sm:$0xff] 0.0
        %402 = vst [vmem:[#allocation2 + $0xb0] sm:$0xff] 0.0
        %403 = vst [vmem:[#allocation2 + $0xb8] sm:$0x1] 0.0
        %404 = vst [vmem:[#allocation2 + $0xc0] sm:$0xff] 0.0
        %405 = vst [vmem:[#allocation2 + $0xc8] sm:$0xff] 0.0
        %406 = vst [vmem:[#allocation2 + $0xd0] sm:$0xff] 0.0
        %407 = vst [vmem:[#allocation2 + $0xd8] sm:$0x1] 0.0
        %408 = vst [vmem:[#allocation2 + $0xe0] sm:$0xff] 0.0
        %409 = vst [vmem:[#allocation2 + $0xe8] sm:$0xff] 0.0
        %410 = vst [vmem:[#allocation2 + $0xf0] sm:$0xff] 0.0
        %411 = vst [vmem:[#allocation2 + $0xf8] sm:$0x1] 0.0
        %412 = vst [vmem:[#allocation2 + $0x100] sm:$0xff] 0.0
        %413 = vst [vmem:[#allocation2 + $0x108] sm:$0xff] 0.0
        %414 = vst [vmem:[#allocation2 + $0x110] sm:$0xff] 0.0
        %415 = vst [vmem:[#allocation2 + $0x118] sm:$0x1] 0.0
        %416 = vst [vmem:[#allocation2 + $0x120] sm:$0xff] 0.0
        %417 = vst [vmem:[#allocation2 + $0x128] sm:$0xff] 0.0
        %418 = vst [vmem:[#allocation2 + $0x130] sm:$0xff] 0.0
        %419 = vst [vmem:[#allocation2 + $0x138] sm:$0x1] 0.0
        %420 = vst [vmem:[#allocation2 + $0x140] sm:$0xff] 0.0
        %421 = vst [vmem:[#allocation2 + $0x148] sm:$0xff] 0.0
        %422 = vst [vmem:[#allocation2 + $0x150] sm:$0xff] 0.0
        %423 = vst [vmem:[#allocation2 + $0x158] sm:$0x1] 0.0
        %424 = vst [vmem:[#allocation2 + $0x160] sm:$0xff] 0.0
        %425 = vst [vmem:[#allocation2 + $0x168] sm:$0xff] 0.0
        %426 = vst [vmem:[#allocation2 + $0x170] sm:$0xff] 0.0
        %427 = vst [vmem:[#allocation2 + $0x178] sm:$0x1] 0.0
        %428 = vst [vmem:[#allocation2 + $0x180] sm:$0xff] 0.0
        %429 = vst [vmem:[#allocation2 + $0x188] sm:$0xff] 0.0
        %430 = vst [vmem:[#allocation2 + $0x190] sm:$0xff] 0.0
        %431 = vst [vmem:[#allocation2 + $0x198] sm:$0x1] 0.0
        %432 = vst [vmem:[#allocation2 + $0x1a0] sm:$0xff] 0.0
        %433 = vst [vmem:[#allocation2 + $0x1a8] sm:$0xff] 0.0
        %434 = vst [vmem:[#allocation2 + $0x1b0] sm:$0xff] 0.0
        %435 = vst [vmem:[#allocation2 + $0x1b8] sm:$0x1] 0.0
        %436 = vst [vmem:[#allocation2 + $0x1c0] sm:$0xff] 0.0
        %437 = vst [vmem:[#allocation2 + $0x1c8] sm:$0xff] 0.0
        %438 = vst [vmem:[#allocation2 + $0x1d0] sm:$0xff] 0.0
        %439 = vst [vmem:[#allocation2 + $0x1d8] sm:$0x1] 0.0
        %440 = vst [vmem:[#allocation2 + $0x1e0] sm:$0xff] 0.0
        %441 = vst [vmem:[#allocation2 + $0x1e8] sm:$0xff] 0.0
        %442 = vst [vmem:[#allocation2 + $0x1f0] sm:$0xff] 0.0
        %443 = vst [vmem:[#allocation2 + $0x1f8] sm:$0x1] 0.0
        %444 = vst [vmem:[#allocation2 + $0x200] sm:$0xff] 0.0
        %445 = vst [vmem:[#allocation2 + $0x208] sm:$0xff] 0.0
        %446 = vst [vmem:[#allocation2 + $0x210] sm:$0xff] 0.0
        %447 = vst [vmem:[#allocation2 + $0x218] sm:$0x1] 0.0
        %448 = vst [vmem:[#allocation2 + $0x220] sm:$0xff] 0.0
        %449 = vst [vmem:[#allocation2 + $0x228] sm:$0xff] 0.0
        %450 = vst [vmem:[#allocation2 + $0x230] sm:$0xff] 0.0
        %451 = vst [vmem:[#allocation2 + $0x238] sm:$0x1] 0.0
        %v452 = vld [vmem:[%s337] sm:$0xff]
        %v453 = vld [vmem:[%s337 + $0x8] sm:$0xff]
        %v454 = vld [vmem:[%s337 + $0x10] sm:$0xff]
        %v455 = vld [vmem:[%s337 + $0x18] sm:$0xff]
        %v456 = vld [vmem:[%s337 + $0x20] sm:$0xff]
        %v457 = vld [vmem:[%s337 + $0x28] sm:$0xff]
        %v458 = vld [vmem:[%s337 + $0x30] sm:$0xff]
        %v459 = vld [vmem:[%s337 + $0x38] sm:$0xff]
        %v460 = vld [vmem:[%s337 + $0x40] sm:$0xff]
        %v461 = vld [vmem:[%s337 + $0x48] sm:$0xff]
        %v462 = vld [vmem:[%s337 + $0x50] sm:$0xff]
        %v463 = vld [vmem:[%s337 + $0x58] sm:$0xff]
        %v464 = vld [vmem:[%s337 + $0x60] sm:$0xff]
        %v465 = vld [vmem:[%s337 + $0x68] sm:$0xff]
        %v466 = vld [vmem:[%s337 + $0x70] sm:$0xff]
        %v467 = vld [vmem:[%s337 + $0x78] sm:$0xff]
        %v468 = vld [vmem:[%s337 + $0x80] sm:$0xff]
        %v469 = vld [vmem:[%s337 + $0x88] sm:$0xff]
        %v470 = vld [vmem:[%s337 + $0x90] sm:$0xff]
        %v471 = vld [vmem:[%s337 + $0x98] sm:$0xff]
        %v472 = vld [vmem:[%s337 + $0xa0] sm:$0xff]
        %v473 = vld [vmem:[%s337 + $0xa8] sm:$0xff]
        %v474 = vld [vmem:[%s337 + $0xb0] sm:$0xff]
        %v475 = vld [vmem:[%s337 + $0xb8] sm:$0xff]
        %v476 = vld [vmem:[%s337 + $0xc0] sm:$0xff]
        %v477 = vld [vmem:[%s337 + $0xc8] sm:$0xff]
        %v478 = vld [vmem:[%s337 + $0xd0] sm:$0xff]
        %v479 = vld [vmem:[%s337 + $0xd8] sm:$0xff]
        %v480 = vld [vmem:[%s337 + $0xe0] sm:$0xff]
        %v481 = vld [vmem:[%s337 + $0xe8] sm:$0xff]
        %v482 = vld [vmem:[%s337 + $0xf0] sm:$0xff]
        %v483 = vld [vmem:[%s337 + $0xf8] sm:$0xff]
        %s484 = scalar_lea.vmem [#allocation2], 32
        %485 = vst [vmem:[%s484 + $0x8] sm:$0xff] %v452
        %486 = vst [vmem:[%s484 + $0x10] sm:$0xff] %v453
        %487 = vst [vmem:[%s484 + $0x28] sm:$0xff] %v454
        %488 = vst [vmem:[%s484 + $0x30] sm:$0xff] %v455
        %489 = vst [vmem:[%s484 + $0x48] sm:$0xff] %v456
        %490 = vst [vmem:[%s484 + $0x50] sm:$0xff] %v457
        %491 = vst [vmem:[%s484 + $0x68] sm:$0xff] %v458
        %492 = vst [vmem:[%s484 + $0x70] sm:$0xff] %v459
        %493 = vst [vmem:[%s484 + $0x88] sm:$0xff] %v460
        %494 = vst [vmem:[%s484 + $0x90] sm:$0xff] %v461
        %495 = vst [vmem:[%s484 + $0xa8] sm:$0xff] %v462
        %496 = vst [vmem:[%s484 + $0xb0] sm:$0xff] %v463
        %497 = vst [vmem:[%s484 + $0xc8] sm:$0xff] %v464
        %498 = vst [vmem:[%s484 + $0xd0] sm:$0xff] %v465
        %499 = vst [vmem:[%s484 + $0xe8] sm:$0xff] %v466
        %500 = vst [vmem:[%s484 + $0xf0] sm:$0xff] %v467
        %501 = vst [vmem:[%s484 + $0x108] sm:$0xff] %v468
        %502 = vst [vmem:[%s484 + $0x110] sm:$0xff] %v469
        %503 = vst [vmem:[%s484 + $0x128] sm:$0xff] %v470
        %504 = vst [vmem:[%s484 + $0x130] sm:$0xff] %v471
        %505 = vst [vmem:[%s484 + $0x148] sm:$0xff] %v472
        %506 = vst [vmem:[%s484 + $0x150] sm:$0xff] %v473
        %507 = vst [vmem:[%s484 + $0x168] sm:$0xff] %v474
        %508 = vst [vmem:[%s484 + $0x170] sm:$0xff] %v475
        %509 = vst [vmem:[%s484 + $0x188] sm:$0xff] %v476
        %510 = vst [vmem:[%s484 + $0x190] sm:$0xff] %v477
        %511 = vst [vmem:[%s484 + $0x1a8] sm:$0xff] %v478
        %512 = vst [vmem:[%s484 + $0x1b0] sm:$0xff] %v479
        %513 = vst [vmem:[%s484 + $0x1c8] sm:$0xff] %v480
        %514 = vst [vmem:[%s484 + $0x1d0] sm:$0xff] %v481
        %515 = vst [vmem:[%s484 + $0x1e8] sm:$0xff] %v482
        %516 = vst [vmem:[%s484 + $0x1f0] sm:$0xff] %v483
        %v517 = vld [vmem:[#allocation2 + $0x7] sm:$0xff]
        %v518 = vld [vmem:[#allocation2 + $0xf] sm:$0xff]
        %v519 = vld [vmem:[#allocation2 + $0x27] sm:$0xff]
        %v520 = vld [vmem:[#allocation2 + $0x2f] sm:$0xff]
        %v521 = vld [vmem:[#allocation2 + $0x47] sm:$0xff]
        %v522 = vld [vmem:[#allocation2 + $0x4f] sm:$0xff]
        %v523 = vld [vmem:[#allocation2 + $0x67] sm:$0xff]
        %v524 = vld [vmem:[#allocation2 + $0x6f] sm:$0xff]
        %v525 = vld [vmem:[#allocation2 + $0x87] sm:$0xff]
        %v526 = vld [vmem:[#allocation2 + $0x8f] sm:$0xff]
        %v527 = vld [vmem:[#allocation2 + $0xa7] sm:$0xff]
        %v528 = vld [vmem:[#allocation2 + $0xaf] sm:$0xff]
        %v529 = vld [vmem:[#allocation2 + $0xc7] sm:$0xff]
        %v530 = vld [vmem:[#allocation2 + $0xcf] sm:$0xff]
        %v531 = vld [vmem:[#allocation2 + $0xe7] sm:$0xff]
        %v532 = vld [vmem:[#allocation2 + $0xef] sm:$0xff]
        %v533 = vld [vmem:[#allocation2 + $0x107] sm:$0xff]
        %v534 = vld [vmem:[#allocation2 + $0x10f] sm:$0xff]
        %v535 = vld [vmem:[#allocation2 + $0x127] sm:$0xff]
        %v536 = vld [vmem:[#allocation2 + $0x12f] sm:$0xff]
        %v537 = vld [vmem:[#allocation2 + $0x147] sm:$0xff]
        %v538 = vld [vmem:[#allocation2 + $0x14f] sm:$0xff]
        %v539 = vld [vmem:[#allocation2 + $0x167] sm:$0xff]
        %v540 = vld [vmem:[#allocation2 + $0x16f] sm:$0xff]
        %v541 = vld [vmem:[#allocation2 + $0x187] sm:$0xff]
        %v542 = vld [vmem:[#allocation2 + $0x18f] sm:$0xff]
        %v543 = vld [vmem:[#allocation2 + $0x1a7] sm:$0xff]
        %v544 = vld [vmem:[#allocation2 + $0x1af] sm:$0xff]
        %v545 = vld [vmem:[#allocation2 + $0x1c7] sm:$0xff]
        %v546 = vld [vmem:[#allocation2 + $0x1cf] sm:$0xff]
        %v547 = vld [vmem:[#allocation2 + $0x1e7] sm:$0xff]
        %v548 = vld [vmem:[#allocation2 + $0x1ef] sm:$0xff]
        %v549 = vld [vmem:[#allocation2 + $0x8] sm:$0xff]
        %v550 = vld [vmem:[#allocation2 + $0x10] sm:$0xff]
        %v551 = vld [vmem:[#allocation2 + $0x28] sm:$0xff]
        %v552 = vld [vmem:[#allocation2 + $0x30] sm:$0xff]
        %v553 = vld [vmem:[#allocation2 + $0x48] sm:$0xff]
        %v554 = vld [vmem:[#allocation2 + $0x50] sm:$0xff]
        %v555 = vld [vmem:[#allocation2 + $0x68] sm:$0xff]
        %v556 = vld [vmem:[#allocation2 + $0x70] sm:$0xff]
        %v557 = vld [vmem:[#allocation2 + $0x88] sm:$0xff]
        %v558 = vld [vmem:[#allocation2 + $0x90] sm:$0xff]
        %v559 = vld [vmem:[#allocation2 + $0xa8] sm:$0xff]
        %v560 = vld [vmem:[#allocation2 + $0xb0] sm:$0xff]
        %v561 = vld [vmem:[#allocation2 + $0xc8] sm:$0xff]
        %v562 = vld [vmem:[#allocation2 + $0xd0] sm:$0xff]
        %v563 = vld [vmem:[#allocation2 + $0xe8] sm:$0xff]
        %v564 = vld [vmem:[#allocation2 + $0xf0] sm:$0xff]
        %v565 = vld [vmem:[#allocation2 + $0x108] sm:$0xff]
        %v566 = vld [vmem:[#allocation2 + $0x110] sm:$0xff]
        %v567 = vld [vmem:[#allocation2 + $0x128] sm:$0xff]
        %v568 = vld [vmem:[#allocation2 + $0x130] sm:$0xff]
        %v569 = vld [vmem:[#allocation2 + $0x148] sm:$0xff]
        %v570 = vld [vmem:[#allocation2 + $0x150] sm:$0xff]
        %v571 = vld [vmem:[#allocation2 + $0x168] sm:$0xff]
        %v572 = vld [vmem:[#allocation2 + $0x170] sm:$0xff]
        %v573 = vld [vmem:[#allocation2 + $0x188] sm:$0xff]
        %v574 = vld [vmem:[#allocation2 + $0x190] sm:$0xff]
        %v575 = vld [vmem:[#allocation2 + $0x1a8] sm:$0xff]
        %v576 = vld [vmem:[#allocation2 + $0x1b0] sm:$0xff]
        %v577 = vld [vmem:[#allocation2 + $0x1c8] sm:$0xff]
        %v578 = vld [vmem:[#allocation2 + $0x1d0] sm:$0xff]
        %v579 = vld [vmem:[#allocation2 + $0x1e8] sm:$0xff]
        %v580 = vld [vmem:[#allocation2 + $0x1f0] sm:$0xff]
        %v581 = vld [vmem:[#allocation2 + $0x9] sm:$0xff]
        %v582 = vld [vmem:[#allocation2 + $0x11] sm:$0xff]
        %v583 = vld [vmem:[#allocation2 + $0x29] sm:$0xff]
        %v584 = vld [vmem:[#allocation2 + $0x31] sm:$0xff]
        %v585 = vld [vmem:[#allocation2 + $0x49] sm:$0xff]
        %v586 = vld [vmem:[#allocation2 + $0x51] sm:$0xff]
        %v587 = vld [vmem:[#allocation2 + $0x69] sm:$0xff]
        %v588 = vld [vmem:[#allocation2 + $0x71] sm:$0xff]
        %v589 = vld [vmem:[#allocation2 + $0x89] sm:$0xff]
        %v590 = vld [vmem:[#allocation2 + $0x91] sm:$0xff]
        %v591 = vld [vmem:[#allocation2 + $0xa9] sm:$0xff]
        %v592 = vld [vmem:[#allocation2 + $0xb1] sm:$0xff]
        %v593 = vld [vmem:[#allocation2 + $0xc9] sm:$0xff]
        %v594 = vld [vmem:[#allocation2 + $0xd1] sm:$0xff]
        %v595 = vld [vmem:[#allocation2 + $0xe9] sm:$0xff]
        %v596 = vld [vmem:[#allocation2 + $0xf1] sm:$0xff]
        %v597 = vld [vmem:[#allocation2 + $0x109] sm:$0xff]
        %v598 = vld [vmem:[#allocation2 + $0x111] sm:$0xff]
        %v599 = vld [vmem:[#allocation2 + $0x129] sm:$0xff]
        %v600 = vld [vmem:[#allocation2 + $0x131] sm:$0xff]
        %v601 = vld [vmem:[#allocation2 + $0x149] sm:$0xff]
        %v602 = vld [vmem:[#allocation2 + $0x151] sm:$0xff]
        %v603 = vld [vmem:[#allocation2 + $0x169] sm:$0xff]
        %v604 = vld [vmem:[#allocation2 + $0x171] sm:$0xff]
        %v605 = vld [vmem:[#allocation2 + $0x189] sm:$0xff]
        %v606 = vld [vmem:[#allocation2 + $0x191] sm:$0xff]
        %v607 = vld [vmem:[#allocation2 + $0x1a9] sm:$0xff]
        %v608 = vld [vmem:[#allocation2 + $0x1b1] sm:$0xff]
        %v609 = vld [vmem:[#allocation2 + $0x1c9] sm:$0xff]
        %v610 = vld [vmem:[#allocation2 + $0x1d1] sm:$0xff]
        %v611 = vld [vmem:[#allocation2 + $0x1e9] sm:$0xff]
        %v612 = vld [vmem:[#allocation2 + $0x1f1] sm:$0xff]
        %v613 = vld [vmem:[%s484 + $0x7] sm:$0xff]
        %v614 = vld [vmem:[%s484 + $0xf] sm:$0xff]
        %v615 = vld [vmem:[%s484 + $0x27] sm:$0xff]
        %v616 = vld [vmem:[%s484 + $0x2f] sm:$0xff]
        %v617 = vld [vmem:[%s484 + $0x47] sm:$0xff]
        %v618 = vld [vmem:[%s484 + $0x4f] sm:$0xff]
        %v619 = vld [vmem:[%s484 + $0x67] sm:$0xff]
        %v620 = vld [vmem:[%s484 + $0x6f] sm:$0xff]
        %v621 = vld [vmem:[%s484 + $0x87] sm:$0xff]
        %v622 = vld [vmem:[%s484 + $0x8f] sm:$0xff]
        %v623 = vld [vmem:[%s484 + $0xa7] sm:$0xff]
        %v624 = vld [vmem:[%s484 + $0xaf] sm:$0xff]
        %v625 = vld [vmem:[%s484 + $0xc7] sm:$0xff]
        %v626 = vld [vmem:[%s484 + $0xcf] sm:$0xff]
        %v627 = vld [vmem:[%s484 + $0xe7] sm:$0xff]
        %v628 = vld [vmem:[%s484 + $0xef] sm:$0xff]
        %v629 = vld [vmem:[%s484 + $0x107] sm:$0xff]
        %v630 = vld [vmem:[%s484 + $0x10f] sm:$0xff]
        %v631 = vld [vmem:[%s484 + $0x127] sm:$0xff]
        %v632 = vld [vmem:[%s484 + $0x12f] sm:$0xff]
        %v633 = vld [vmem:[%s484 + $0x147] sm:$0xff]
        %v634 = vld [vmem:[%s484 + $0x14f] sm:$0xff]
        %v635 = vld [vmem:[%s484 + $0x167] sm:$0xff]
        %v636 = vld [vmem:[%s484 + $0x16f] sm:$0xff]
        %v637 = vld [vmem:[%s484 + $0x187] sm:$0xff]
        %v638 = vld [vmem:[%s484 + $0x18f] sm:$0xff]
        %v639 = vld [vmem:[%s484 + $0x1a7] sm:$0xff]
        %v640 = vld [vmem:[%s484 + $0x1af] sm:$0xff]
        %v641 = vld [vmem:[%s484 + $0x1c7] sm:$0xff]
        %v642 = vld [vmem:[%s484 + $0x1cf] sm:$0xff]
        %v643 = vld [vmem:[%s484 + $0x1e7] sm:$0xff]
        %v644 = vld [vmem:[%s484 + $0x1ef] sm:$0xff]
        %v645 = vld [vmem:[%s484 + $0x8] sm:$0xff]
        %v646 = vld [vmem:[%s484 + $0x10] sm:$0xff]
        %v647 = vld [vmem:[%s484 + $0x28] sm:$0xff]
        %v648 = vld [vmem:[%s484 + $0x30] sm:$0xff]
        %v649 = vld [vmem:[%s484 + $0x48] sm:$0xff]
        %v650 = vld [vmem:[%s484 + $0x50] sm:$0xff]
        %v651 = vld [vmem:[%s484 + $0x68] sm:$0xff]
        %v652 = vld [vmem:[%s484 + $0x70] sm:$0xff]
        %v653 = vld [vmem:[%s484 + $0x88] sm:$0xff]
        %v654 = vld [vmem:[%s484 + $0x90] sm:$0xff]
        %v655 = vld [vmem:[%s484 + $0xa8] sm:$0xff]
        %v656 = vld [vmem:[%s484 + $0xb0] sm:$0xff]
        %v657 = vld [vmem:[%s484 + $0xc8] sm:$0xff]
        %v658 = vld [vmem:[%s484 + $0xd0] sm:$0xff]
        %v659 = vld [vmem:[%s484 + $0xe8] sm:$0xff]
        %v660 = vld [vmem:[%s484 + $0xf0] sm:$0xff]
        %v661 = vld [vmem:[%s484 + $0x108] sm:$0xff]
        %v662 = vld [vmem:[%s484 + $0x110] sm:$0xff]
        %v663 = vld [vmem:[%s484 + $0x128] sm:$0xff]
        %v664 = vld [vmem:[%s484 + $0x130] sm:$0xff]
        %v665 = vld [vmem:[%s484 + $0x148] sm:$0xff]
        %v666 = vld [vmem:[%s484 + $0x150] sm:$0xff]
        %v667 = vld [vmem:[%s484 + $0x168] sm:$0xff]
        %v668 = vld [vmem:[%s484 + $0x170] sm:$0xff]
        %v669 = vld [vmem:[%s484 + $0x188] sm:$0xff]
        %v670 = vld [vmem:[%s484 + $0x190] sm:$0xff]
        %v671 = vld [vmem:[%s484 + $0x1a8] sm:$0xff]
        %v672 = vld [vmem:[%s484 + $0x1b0] sm:$0xff]
        %v673 = vld [vmem:[%s484 + $0x1c8] sm:$0xff]
        %v674 = vld [vmem:[%s484 + $0x1d0] sm:$0xff]
        %v675 = vld [vmem:[%s484 + $0x1e8] sm:$0xff]
        %v676 = vld [vmem:[%s484 + $0x1f0] sm:$0xff]
        %v677 = vld [vmem:[%s484 + $0x9] sm:$0xff]
        %v678 = vld [vmem:[%s484 + $0x11] sm:$0xff]
        %v679 = vld [vmem:[%s484 + $0x29] sm:$0xff]
        %v680 = vld [vmem:[%s484 + $0x31] sm:$0xff]
        %v681 = vld [vmem:[%s484 + $0x49] sm:$0xff]
        %v682 = vld [vmem:[%s484 + $0x51] sm:$0xff]
        %v683 = vld [vmem:[%s484 + $0x69] sm:$0xff]
        %v684 = vld [vmem:[%s484 + $0x71] sm:$0xff]
        %v685 = vld [vmem:[%s484 + $0x89] sm:$0xff]
        %v686 = vld [vmem:[%s484 + $0x91] sm:$0xff]
        %v687 = vld [vmem:[%s484 + $0xa9] sm:$0xff]
        %v688 = vld [vmem:[%s484 + $0xb1] sm:$0xff]
        %v689 = vld [vmem:[%s484 + $0xc9] sm:$0xff]
        %v690 = vld [vmem:[%s484 + $0xd1] sm:$0xff]
        %v691 = vld [vmem:[%s484 + $0xe9] sm:$0xff]
        %v692 = vld [vmem:[%s484 + $0xf1] sm:$0xff]
        %v693 = vld [vmem:[%s484 + $0x109] sm:$0xff]
        %v694 = vld [vmem:[%s484 + $0x111] sm:$0xff]
        %v695 = vld [vmem:[%s484 + $0x129] sm:$0xff]
        %v696 = vld [vmem:[%s484 + $0x131] sm:$0xff]
        %v697 = vld [vmem:[%s484 + $0x149] sm:$0xff]
        %v698 = vld [vmem:[%s484 + $0x151] sm:$0xff]
        %v699 = vld [vmem:[%s484 + $0x169] sm:$0xff]
        %v700 = vld [vmem:[%s484 + $0x171] sm:$0xff]
        %v701 = vld [vmem:[%s484 + $0x189] sm:$0xff]
        %v702 = vld [vmem:[%s484 + $0x191] sm:$0xff]
        %v703 = vld [vmem:[%s484 + $0x1a9] sm:$0xff]
        %v704 = vld [vmem:[%s484 + $0x1b1] sm:$0xff]
        %v705 = vld [vmem:[%s484 + $0x1c9] sm:$0xff]
        %v706 = vld [vmem:[%s484 + $0x1d1] sm:$0xff]
        %v707 = vld [vmem:[%s484 + $0x1e9] sm:$0xff]
        %v708 = vld [vmem:[%s484 + $0x1f1] sm:$0xff]
        %s709 = scalar_lea.vmem [#allocation2], 64
        %v710 = vld [vmem:[%s709 + $0x7] sm:$0xff]
        %v711 = vld [vmem:[%s709 + $0xf] sm:$0xff]
        %v712 = vld [vmem:[%s709 + $0x27] sm:$0xff]
        %v713 = vld [vmem:[%s709 + $0x2f] sm:$0xff]
        %v714 = vld [vmem:[%s709 + $0x47] sm:$0xff]
        %v715 = vld [vmem:[%s709 + $0x4f] sm:$0xff]
        %v716 = vld [vmem:[%s709 + $0x67] sm:$0xff]
        %v717 = vld [vmem:[%s709 + $0x6f] sm:$0xff]
        %v718 = vld [vmem:[%s709 + $0x87] sm:$0xff]
        %v719 = vld [vmem:[%s709 + $0x8f] sm:$0xff]
        %v720 = vld [vmem:[%s709 + $0xa7] sm:$0xff]
        %v721 = vld [vmem:[%s709 + $0xaf] sm:$0xff]
        %v722 = vld [vmem:[%s709 + $0xc7] sm:$0xff]
        %v723 = vld [vmem:[%s709 + $0xcf] sm:$0xff]
        %v724 = vld [vmem:[%s709 + $0xe7] sm:$0xff]
        %v725 = vld [vmem:[%s709 + $0xef] sm:$0xff]
        %v726 = vld [vmem:[%s709 + $0x107] sm:$0xff]
        %v727 = vld [vmem:[%s709 + $0x10f] sm:$0xff]
        %v728 = vld [vmem:[%s709 + $0x127] sm:$0xff]
        %v729 = vld [vmem:[%s709 + $0x12f] sm:$0xff]
        %v730 = vld [vmem:[%s709 + $0x147] sm:$0xff]
        %v731 = vld [vmem:[%s709 + $0x14f] sm:$0xff]
        %v732 = vld [vmem:[%s709 + $0x167] sm:$0xff]
        %v733 = vld [vmem:[%s709 + $0x16f] sm:$0xff]
        %v734 = vld [vmem:[%s709 + $0x187] sm:$0xff]
        %v735 = vld [vmem:[%s709 + $0x18f] sm:$0xff]
        %v736 = vld [vmem:[%s709 + $0x1a7] sm:$0xff]
        %v737 = vld [vmem:[%s709 + $0x1af] sm:$0xff]
        %v738 = vld [vmem:[%s709 + $0x1c7] sm:$0xff]
        %v739 = vld [vmem:[%s709 + $0x1cf] sm:$0xff]
        %v740 = vld [vmem:[%s709 + $0x1e7] sm:$0xff]
        %v741 = vld [vmem:[%s709 + $0x1ef] sm:$0xff]
        %v742 = vld [vmem:[%s709 + $0x8] sm:$0xff]
        %v743 = vld [vmem:[%s709 + $0x10] sm:$0xff]
        %v744 = vld [vmem:[%s709 + $0x28] sm:$0xff]
        %v745 = vld [vmem:[%s709 + $0x30] sm:$0xff]
        %v746 = vld [vmem:[%s709 + $0x48] sm:$0xff]
        %v747 = vld [vmem:[%s709 + $0x50] sm:$0xff]
        %v748 = vld [vmem:[%s709 + $0x68] sm:$0xff]
        %v749 = vld [vmem:[%s709 + $0x70] sm:$0xff]
        %v750 = vld [vmem:[%s709 + $0x88] sm:$0xff]
        %v751 = vld [vmem:[%s709 + $0x90] sm:$0xff]
        %v752 = vld [vmem:[%s709 + $0xa8] sm:$0xff]
        %v753 = vld [vmem:[%s709 + $0xb0] sm:$0xff]
        %v754 = vld [vmem:[%s709 + $0xc8] sm:$0xff]
        %v755 = vld [vmem:[%s709 + $0xd0] sm:$0xff]
        %v756 = vld [vmem:[%s709 + $0xe8] sm:$0xff]
        %v757 = vld [vmem:[%s709 + $0xf0] sm:$0xff]
        %v758 = vld [vmem:[%s709 + $0x108] sm:$0xff]
        %v759 = vld [vmem:[%s709 + $0x110] sm:$0xff]
        %v760 = vld [vmem:[%s709 + $0x128] sm:$0xff]
        %v761 = vld [vmem:[%s709 + $0x130] sm:$0xff]
        %v762 = vld [vmem:[%s709 + $0x148] sm:$0xff]
        %v763 = vld [vmem:[%s709 + $0x150] sm:$0xff]
        %v764 = vld [vmem:[%s709 + $0x168] sm:$0xff]
        %v765 = vld [vmem:[%s709 + $0x170] sm:$0xff]
        %v766 = vld [vmem:[%s709 + $0x188] sm:$0xff]
        %v767 = vld [vmem:[%s709 + $0x190] sm:$0xff]
        %v768 = vld [vmem:[%s709 + $0x1a8] sm:$0xff]
        %v769 = vld [vmem:[%s709 + $0x1b0] sm:$0xff]
        %v770 = vld [vmem:[%s709 + $0x1c8] sm:$0xff]
        %v771 = vld [vmem:[%s709 + $0x1d0] sm:$0xff]
        %v772 = vld [vmem:[%s709 + $0x1e8] sm:$0xff]
        %v773 = vld [vmem:[%s709 + $0x1f0] sm:$0xff]
        %v774 = vld [vmem:[%s709 + $0x9] sm:$0xff]
        %v775 = vld [vmem:[%s709 + $0x11] sm:$0xff]
        %v776 = vld [vmem:[%s709 + $0x29] sm:$0xff]
        %v777 = vld [vmem:[%s709 + $0x31] sm:$0xff]
        %v778 = vld [vmem:[%s709 + $0x49] sm:$0xff]
        %v779 = vld [vmem:[%s709 + $0x51] sm:$0xff]
        %v780 = vld [vmem:[%s709 + $0x69] sm:$0xff]
        %v781 = vld [vmem:[%s709 + $0x71] sm:$0xff]
        %v782 = vld [vmem:[%s709 + $0x89] sm:$0xff]
        %v783 = vld [vmem:[%s709 + $0x91] sm:$0xff]
        %v784 = vld [vmem:[%s709 + $0xa9] sm:$0xff]
        %v785 = vld [vmem:[%s709 + $0xb1] sm:$0xff]
        %v786 = vld [vmem:[%s709 + $0xc9] sm:$0xff]
        %v787 = vld [vmem:[%s709 + $0xd1] sm:$0xff]
        %v788 = vld [vmem:[%s709 + $0xe9] sm:$0xff]
        %v789 = vld [vmem:[%s709 + $0xf1] sm:$0xff]
        %v790 = vld [vmem:[%s709 + $0x109] sm:$0xff]
        %v791 = vld [vmem:[%s709 + $0x111] sm:$0xff]
        %v792 = vld [vmem:[%s709 + $0x129] sm:$0xff]
        %v793 = vld [vmem:[%s709 + $0x131] sm:$0xff]
        %v794 = vld [vmem:[%s709 + $0x149] sm:$0xff]
        %v795 = vld [vmem:[%s709 + $0x151] sm:$0xff]
        %v796 = vld [vmem:[%s709 + $0x169] sm:$0xff]
        %v797 = vld [vmem:[%s709 + $0x171] sm:$0xff]
        %v798 = vld [vmem:[%s709 + $0x189] sm:$0xff]
        %v799 = vld [vmem:[%s709 + $0x191] sm:$0xff]
        %v800 = vld [vmem:[%s709 + $0x1a9] sm:$0xff]
        %v801 = vld [vmem:[%s709 + $0x1b1] sm:$0xff]
        %v802 = vld [vmem:[%s709 + $0x1c9] sm:$0xff]
        %v803 = vld [vmem:[%s709 + $0x1d1] sm:$0xff]
        %v804 = vld [vmem:[%s709 + $0x1e9] sm:$0xff]
        %v805 = vld [vmem:[%s709 + $0x1f1] sm:$0xff]
        %v806 = vld [vmem:[#allocation6] sm:$0xff]
        %v807 = vld [vmem:[#allocation6 + $0x8] sm:$0xff]
        %v808 = vld [vmem:[#allocation6 + $0x10] sm:$0xff]
        %v809 = vld [vmem:[#allocation6 + $0x18] sm:$0xff]
        %v810 = vld [vmem:[#allocation6 + $0x20] sm:$0xff]
        %v811 = vld [vmem:[#allocation6 + $0x28] sm:$0xff]
        %v812 = vld [vmem:[#allocation6 + $0x30] sm:$0xff]
        %v813 = vld [vmem:[#allocation6 + $0x38] sm:$0xff]
        %v814 = vld [vmem:[#allocation6 + $0x40] sm:$0xff]
        %v815 = vld [vmem:[#allocation6 + $0x48] sm:$0xff]
        %v816 = vld [vmem:[#allocation6 + $0x50] sm:$0xff]
        %v817 = vld [vmem:[#allocation6 + $0x58] sm:$0xff]
        %v818 = vld [vmem:[#allocation6 + $0x60] sm:$0xff]
        %v819 = vld [vmem:[#allocation6 + $0x68] sm:$0xff]
        %v820 = vld [vmem:[#allocation6 + $0x70] sm:$0xff]
        %v821 = vld [vmem:[#allocation6 + $0x78] sm:$0xff]
        %v822 = vld [vmem:[#allocation6 + $0x80] sm:$0xff]
        %v823 = vld [vmem:[#allocation6 + $0x88] sm:$0xff]
        %v824 = vld [vmem:[#allocation6 + $0x90] sm:$0xff]
        %v825 = vld [vmem:[#allocation6 + $0x98] sm:$0xff]
        %v826 = vld [vmem:[#allocation6 + $0xa0] sm:$0xff]
        %v827 = vld [vmem:[#allocation6 + $0xa8] sm:$0xff]
        %v828 = vld [vmem:[#allocation6 + $0xb0] sm:$0xff]
        %v829 = vld [vmem:[#allocation6 + $0xb8] sm:$0xff]
        %v830 = vld [vmem:[#allocation6 + $0xc0] sm:$0xff]
        %v831 = vld [vmem:[#allocation6 + $0xc8] sm:$0xff]
        %v832 = vld [vmem:[#allocation6 + $0xd0] sm:$0xff]
        %v833 = vld [vmem:[#allocation6 + $0xd8] sm:$0xff]
        %v834 = vld [vmem:[#allocation6 + $0xe0] sm:$0xff]
        %v835 = vld [vmem:[#allocation6 + $0xe8] sm:$0xff]
        %v836 = vld [vmem:[#allocation6 + $0xf0] sm:$0xff]
        %v837 = vld [vmem:[#allocation6 + $0xf8] sm:$0xff]
        %v838 = vld [vmem:[#allocation6 + $0x100] sm:$0xff]
        %v839 = vld [vmem:[#allocation6 + $0x108] sm:$0xff]
        %v840 = vld [vmem:[#allocation6 + $0x110] sm:$0xff]
        %v841 = vld [vmem:[#allocation6 + $0x118] sm:$0xff]
        %v842 = vld [vmem:[#allocation6 + $0x120] sm:$0xff]
        %v843 = vld [vmem:[#allocation6 + $0x128] sm:$0xff]
        %v844 = vld [vmem:[#allocation6 + $0x130] sm:$0xff]
        %v845 = vld [vmem:[#allocation6 + $0x138] sm:$0xff]
        %v846 = vld [vmem:[#allocation6 + $0x140] sm:$0xff]
        %v847 = vld [vmem:[#allocation6 + $0x148] sm:$0xff]
        %v848 = vld [vmem:[#allocation6 + $0x150] sm:$0xff]
        %v849 = vld [vmem:[#allocation6 + $0x158] sm:$0xff]
        %v850 = vld [vmem:[#allocation6 + $0x160] sm:$0xff]
        %v851 = vld [vmem:[#allocation6 + $0x168] sm:$0xff]
        %v852 = vld [vmem:[#allocation6 + $0x170] sm:$0xff]
        %v853 = vld [vmem:[#allocation6 + $0x178] sm:$0xff]
        %v854 = vld [vmem:[#allocation6 + $0x180] sm:$0xff]
        %v855 = vld [vmem:[#allocation6 + $0x188] sm:$0xff]
        %v856 = vld [vmem:[#allocation6 + $0x190] sm:$0xff]
        %v857 = vld [vmem:[#allocation6 + $0x198] sm:$0xff]
        %v858 = vld [vmem:[#allocation6 + $0x1a0] sm:$0xff]
        %v859 = vld [vmem:[#allocation6 + $0x1a8] sm:$0xff]
        %v860 = vld [vmem:[#allocation6 + $0x1b0] sm:$0xff]
        %v861 = vld [vmem:[#allocation6 + $0x1b8] sm:$0xff]
        %v862 = vld [vmem:[#allocation6 + $0x1c0] sm:$0xff]
        %v863 = vld [vmem:[#allocation6 + $0x1c8] sm:$0xff]
        %v864 = vld [vmem:[#allocation6 + $0x1d0] sm:$0xff]
        %v865 = vld [vmem:[#allocation6 + $0x1d8] sm:$0xff]
        %v866 = vld [vmem:[#allocation6 + $0x1e0] sm:$0xff]
        %v867 = vld [vmem:[#allocation6 + $0x1e8] sm:$0xff]
        %v868 = vld [vmem:[#allocation6 + $0x1f0] sm:$0xff]
        %v869 = vld [vmem:[#allocation6 + $0x1f8] sm:$0xff]
        %v870 = vld [vmem:[#allocation6 + $0x200] sm:$0xff]
        %v871 = vld [vmem:[#allocation6 + $0x208] sm:$0xff]
        %v872 = vld [vmem:[#allocation6 + $0x210] sm:$0xff]
        %v873 = vld [vmem:[#allocation6 + $0x218] sm:$0xff]
        %v874 = vld [vmem:[#allocation6 + $0x220] sm:$0xff]
        %v875 = vld [vmem:[#allocation6 + $0x228] sm:$0xff]
        %v876 = vld [vmem:[#allocation6 + $0x230] sm:$0xff]
        %v877 = vld [vmem:[#allocation6 + $0x238] sm:$0xff]
        %v878 = vld [vmem:[#allocation6 + $0x240] sm:$0xff]
        %v879 = vld [vmem:[#allocation6 + $0x248] sm:$0xff]
        %v880 = vld [vmem:[#allocation6 + $0x250] sm:$0xff]
        %v881 = vld [vmem:[#allocation6 + $0x258] sm:$0xff]
        %v882 = vld [vmem:[#allocation6 + $0x260] sm:$0xff]
        %v883 = vld [vmem:[#allocation6 + $0x268] sm:$0xff]
        %v884 = vld [vmem:[#allocation6 + $0x270] sm:$0xff]
        %v885 = vld [vmem:[#allocation6 + $0x278] sm:$0xff]
        %v886 = vld [vmem:[#allocation6 + $0x280] sm:$0xff]
        %v887 = vld [vmem:[#allocation6 + $0x288] sm:$0xff]
        %v888 = vld [vmem:[#allocation6 + $0x290] sm:$0xff]
        %v889 = vld [vmem:[#allocation6 + $0x298] sm:$0xff]
        %v890 = vld [vmem:[#allocation6 + $0x2a0] sm:$0xff]
        %v891 = vld [vmem:[#allocation6 + $0x2a8] sm:$0xff]
        %v892 = vld [vmem:[#allocation6 + $0x2b0] sm:$0xff]
        %v893 = vld [vmem:[#allocation6 + $0x2b8] sm:$0xff]
        %v894 = vld [vmem:[#allocation6 + $0x2c0] sm:$0xff]
        %v895 = vld [vmem:[#allocation6 + $0x2c8] sm:$0xff]
        %v896 = vld [vmem:[#allocation6 + $0x2d0] sm:$0xff]
        %v897 = vld [vmem:[#allocation6 + $0x2d8] sm:$0xff]
        %v898 = vld [vmem:[#allocation6 + $0x2e0] sm:$0xff]
        %v899 = vld [vmem:[#allocation6 + $0x2e8] sm:$0xff]
        %v900 = vld [vmem:[#allocation6 + $0x2f0] sm:$0xff]
        %v901 = vld [vmem:[#allocation6 + $0x2f8] sm:$0xff]
        %v902 = vld [vmem:[#allocation6 + $0x300] sm:$0xff]
        %v903 = vld [vmem:[#allocation6 + $0x308] sm:$0xff]
        %v904 = vld [vmem:[#allocation6 + $0x310] sm:$0xff]
        %v905 = vld [vmem:[#allocation6 + $0x318] sm:$0xff]
        %v906 = vld [vmem:[#allocation6 + $0x320] sm:$0xff]
        %v907 = vld [vmem:[#allocation6 + $0x328] sm:$0xff]
        %v908 = vld [vmem:[#allocation6 + $0x330] sm:$0xff]
        %v909 = vld [vmem:[#allocation6 + $0x338] sm:$0xff]
        %v910 = vld [vmem:[#allocation6 + $0x340] sm:$0xff]
        %v911 = vld [vmem:[#allocation6 + $0x348] sm:$0xff]
        %v912 = vld [vmem:[#allocation6 + $0x350] sm:$0xff]
        %v913 = vld [vmem:[#allocation6 + $0x358] sm:$0xff]
        %v914 = vld [vmem:[#allocation6 + $0x360] sm:$0xff]
        %v915 = vld [vmem:[#allocation6 + $0x368] sm:$0xff]
        %v916 = vld [vmem:[#allocation6 + $0x370] sm:$0xff]
        %v917 = vld [vmem:[#allocation6 + $0x378] sm:$0xff]
        %v918 = vld [vmem:[#allocation6 + $0x380] sm:$0xff]
        %v919 = vld [vmem:[#allocation6 + $0x388] sm:$0xff]
        %v920 = vld [vmem:[#allocation6 + $0x390] sm:$0xff]
        %v921 = vld [vmem:[#allocation6 + $0x398] sm:$0xff]
        %v922 = vld [vmem:[#allocation6 + $0x3a0] sm:$0xff]
        %v923 = vld [vmem:[#allocation6 + $0x3a8] sm:$0xff]
        %v924 = vld [vmem:[#allocation6 + $0x3b0] sm:$0xff]
        %v925 = vld [vmem:[#allocation6 + $0x3b8] sm:$0xff]
        %v926 = vld [vmem:[#allocation6 + $0x3c0] sm:$0xff]
        %v927 = vld [vmem:[#allocation6 + $0x3c8] sm:$0xff]
        %v928 = vld [vmem:[#allocation6 + $0x3d0] sm:$0xff]
        %v929 = vld [vmem:[#allocation6 + $0x3d8] sm:$0xff]
        %v930 = vld [vmem:[#allocation6 + $0x3e0] sm:$0xff]
        %v931 = vld [vmem:[#allocation6 + $0x3e8] sm:$0xff]
        %v932 = vld [vmem:[#allocation6 + $0x3f0] sm:$0xff]
        %v933 = vld [vmem:[#allocation6 + $0x3f8] sm:$0xff]
        %v934 = vld [vmem:[#allocation6 + $0x400] sm:$0xff]
        %v935 = vld [vmem:[#allocation6 + $0x408] sm:$0xff]
        %v936 = vld [vmem:[#allocation6 + $0x410] sm:$0xff]
        %v937 = vld [vmem:[#allocation6 + $0x418] sm:$0xff]
        %v938 = vld [vmem:[#allocation6 + $0x420] sm:$0xff]
        %v939 = vld [vmem:[#allocation6 + $0x428] sm:$0xff]
        %v940 = vld [vmem:[#allocation6 + $0x430] sm:$0xff]
        %v941 = vld [vmem:[#allocation6 + $0x438] sm:$0xff]
        %v942 = vld [vmem:[#allocation6 + $0x440] sm:$0xff]
        %v943 = vld [vmem:[#allocation6 + $0x448] sm:$0xff]
        %v944 = vld [vmem:[#allocation6 + $0x450] sm:$0xff]
        %v945 = vld [vmem:[#allocation6 + $0x458] sm:$0xff]
        %v946 = vld [vmem:[#allocation6 + $0x460] sm:$0xff]
        %v947 = vld [vmem:[#allocation6 + $0x468] sm:$0xff]
        %v948 = vld [vmem:[#allocation6 + $0x470] sm:$0xff]
        %v949 = vld [vmem:[#allocation6 + $0x478] sm:$0xff]
        %v950 = vld [vmem:[%s2] sm:$0x1]
        %v952 = vlaneseq
        %v953 = vshrl.u32 %v952, 7
        %v954 = vsub.s32 0, %v953
        %v955 = vrot.slane %v950, %v954
        %957 = vmatprep.subr.mxu0 0.0
        %958 = vmatpush1.msra.mxu0 %v806
        %959 = vmatprep.subr.mxu0 0.0
        %960 = vmatpush1.msra.mxu0 %v807
        %961 = vmatprep.subr.mxu0 0.0
        %962 = vmatpush1.msra.mxu0 %v808
        %963 = vmatprep.subr.mxu0 0.0
        %964 = vmatpush1.msra.mxu0 %v809
        %965 = vmatprep.subr.mxu0 0.0
        %966 = vmatpush1.msra.mxu0 %v810
        %967 = vmatprep.subr.mxu0 0.0
        %968 = vmatpush1.msra.mxu0 %v811
        %969 = vmatprep.subr.mxu0 0.0
        %970 = vmatpush1.msra.mxu0 %v812
        %971 = vmatprep.subr.mxu0 0.0
        %972 = vmatpush1.msra.mxu0 %v813
        %973 = vmatprep.subr.mxu0 0.0
        %974 = vmatpush1.msra.mxu0 %v814
        %975 = vmatprep.subr.mxu0 0.0
        %976 = vmatpush1.msra.mxu0 %v815
        %977 = vmatprep.subr.mxu0 0.0
        %978 = vmatpush1.msra.mxu0 %v816
        %979 = vmatprep.subr.mxu0 0.0
        %980 = vmatpush1.msra.mxu0 %v817
        %981 = vmatprep.subr.mxu0 0.0
        %982 = vmatpush1.msra.mxu0 %v818
        %983 = vmatprep.subr.mxu0 0.0
        %984 = vmatpush1.msra.mxu0 %v819
        %985 = vmatprep.subr.mxu0 0.0
        %986 = vmatpush1.msra.mxu0 %v820
        %987 = vmatprep.subr.mxu0 0.0
        %988 = vmatpush1.msra.mxu0 %v821
        %989 = vmatprep.subr.mxu0 0.0
        %990 = vmatpush1.msra.mxu0 %v822
        %991 = vmatprep.subr.mxu0 0.0
        %992 = vmatpush1.msra.mxu0 %v823
        %993 = vmatprep.subr.mxu0 0.0
        %994 = vmatpush1.msra.mxu0 %v824
        %995 = vmatprep.subr.mxu0 0.0
        %996 = vmatpush1.msra.mxu0 %v825
        %997 = vmatprep.subr.mxu0 0.0
        %998 = vmatpush1.msra.mxu0 %v826
        %999 = vmatprep.subr.mxu0 0.0
        %1000 = vmatpush1.msra.mxu0 %v827
        %1001 = vmatprep.subr.mxu0 0.0
        %1002 = vmatpush1.msra.mxu0 %v828
        %1003 = vmatprep.subr.mxu0 0.0
        %1004 = vmatpush1.msra.mxu0 %v829
        %1005 = vmatprep.subr.mxu0 0.0
        %1006 = vmatpush1.msra.mxu0 %v830
        %1007 = vmatprep.subr.mxu0 0.0
        %1008 = vmatpush1.msra.mxu0 %v831
        %1009 = vmatprep.subr.mxu0 0.0
        %1010 = vmatpush1.msra.mxu0 %v832
        %1011 = vmatprep.subr.mxu0 0.0
        %1012 = vmatpush1.msra.mxu0 %v833
        %1013 = vmatprep.subr.mxu0 0.0
        %1014 = vmatpush1.msra.mxu0 %v834
        %1015 = vmatprep.subr.mxu0 0.0
        %1016 = vmatpush1.msra.mxu0 %v835
        %1017 = vmatprep.subr.mxu0 0.0
        %1018 = vmatpush1.msra.mxu0 %v836
        %1019 = vmatprep.subr.mxu0 0.0
        %1020 = vmatpush1.msra.mxu0 %v837
        %1021 = vmatprep.mubr.f32.mxu0 %v549
        %1022 = vmatmul.mubr.f32.gmra.mrb[0].mxu0 %v517
        %v1023 = vpop.f32.mrb[0].mxu0
        %v1024 = vadd.f32 %v955, %v1023
        %v1025 = vpop.f32.mrb[0].mxu0
        %1026 = vmatprep.mubr.f32.mxu0 %v550
        %1027 = vmatmul.mubr.f32.gmra.mrb[0].mxu0 %v518
        %v1028 = vpop.f32.mrb[0].mxu0
        %v1029 = vadd.f32 %v955, %v1028
        %v1030 = vpop.f32.mrb[0].mxu0
        %1031 = vmatprep.mubr.f32.mxu0 %v551
        %1032 = vmatmul.mubr.f32.gmra.mrb[0].mxu0 %v519
        %v1033 = vpop.f32.mrb[0].mxu0
        %v1034 = vadd.f32 %v955, %v1033
        %v1035 = vpop.f32.mrb[0].mxu0
        %1036 = vmatprep.mubr.f32.mxu0 %v552
        %1037 = vmatmul.mubr.f32.gmra.mrb[0].mxu0 %v520
        %v1038 = vpop.f32.mrb[0].mxu0
        %v1039 = vadd.f32 %v955, %v1038
        %v1040 = vpop.f32.mrb[0].mxu0
        %1041 = vmatprep.mubr.f32.mxu0 %v553
        %1042 = vmatmul.mubr.f32.gmra.mrb[0].mxu0 %v521
        %v1043 = vpop.f32.mrb[0].mxu0
        %v1044 = vadd.f32 %v955, %v1043
        %v1045 = vpop.f32.mrb[0].mxu0
        %1046 = vmatprep.mubr.f32.mxu0 %v554
        %1047 = vmatmul.mubr.f32.gmra.mrb[0].mxu0 %v522
        %v1048 = vpop.f32.mrb[0].mxu0
        %v1049 = vadd.f32 %v955, %v1048
        %v1050 = vpop.f32.mrb[0].mxu0
        %1051 = vmatprep.mubr.f32.mxu0 %v555
        %1052 = vmatmul.mubr.f32.gmra.mrb[0].mxu0 %v523
        %v1053 = vpop.f32.mrb[0].mxu0
        %v1054 = vadd.f32 %v955, %v1053
        %v1055 = vpop.f32.mrb[0].mxu0
        %1056 = vmatprep.mubr.f32.mxu0 %v556
        %1057 = vmatmul.mubr.f32.gmra.mrb[0].mxu0 %v524
        %v1058 = vpop.f32.mrb[0].mxu0
        %v1059 = vadd.f32 %v955, %v1058
        %v1060 = vpop.f32.mrb[0].mxu0
        %1061 = vmatprep.mubr.f32.mxu0 %v557
        %1062 = vmatmul.mubr.f32.gmra.mrb[0].mxu0 %v525
        %v1063 = vpop.f32.mrb[0].mxu0
        %v1064 = vadd.f32 %v955, %v1063
        %v1065 = vpop.f32.mrb[0].mxu0
        %1066 = vmatprep.mubr.f32.mxu0 %v558
        %1067 = vmatmul.mubr.f32.gmra.mrb[0].mxu0 %v526
        %v1068 = vpop.f32.mrb[0].mxu0
        %v1069 = vadd.f32 %v955, %v1068
        %v1070 = vpop.f32.mrb[0].mxu0
        %1071 = vmatprep.mubr.f32.mxu0 %v559
        %1072 = vmatmul.mubr.f32.gmra.mrb[0].mxu0 %v527
        %v1073 = vpop.f32.mrb[0].mxu0
        %v1074 = vadd.f32 %v955, %v1073
        %v1075 = vpop.f32.mrb[0].mxu0
        %1076 = vmatprep.mubr.f32.mxu0 %v560
        %1077 = vmatmul.mubr.f32.gmra.mrb[0].mxu0 %v528
        %v1078 = vpop.f32.mrb[0].mxu0
        %v1079 = vadd.f32 %v955, %v1078
        %v1080 = vpop.f32.mrb[0].mxu0
        %1081 = vmatprep.mubr.f32.mxu0 %v561
        %1082 = vmatmul.mubr.f32.gmra.mrb[0].mxu0 %v529
        %v1083 = vpop.f32.mrb[0].mxu0
        %v1084 = vadd.f32 %v955, %v1083
        %v1085 = vpop.f32.mrb[0].mxu0
        %1086 = vmatprep.mubr.f32.mxu0 %v562
        %1087 = vmatmul.mubr.f32.gmra.mrb[0].mxu0 %v530
        %v1088 = vpop.f32.mrb[0].mxu0
        %v1089 = vadd.f32 %v955, %v1088
        %v1090 = vpop.f32.mrb[0].mxu0
        %1091 = vmatprep.mubr.f32.mxu0 %v563
        %1092 = vmatmul.mubr.f32.gmra.mrb[0].mxu0 %v531
        %v1093 = vpop.f32.mrb[0].mxu0
        %v1094 = vadd.f32 %v955, %v1093
        %v1095 = vpop.f32.mrb[0].mxu0
        %1096 = vmatprep.mubr.f32.mxu0 %v564
        %1097 = vmatmul.mubr.f32.gmra.mrb[0].mxu0 %v532
        %v1098 = vpop.f32.mrb[0].mxu0
        %v1099 = vadd.f32 %v955, %v1098
        %v1100 = vpop.f32.mrb[0].mxu0
        %1101 = vmatprep.mubr.f32.mxu0 %v565
        %1102 = vmatmul.mubr.f32.gmra.mrb[0].mxu0 %v533
        %v1103 = vpop.f32.mrb[0].mxu0
        %v1104 = vadd.f32 %v955, %v1103
        %v1105 = vpop.f32.mrb[0].mxu0
        %1106 = vmatprep.mubr.f32.mxu0 %v566
        %1107 = vmatmul.mubr.f32.gmra.mrb[0].mxu0 %v534
        %v1108 = vpop.f32.mrb[0].mxu0
        %v1109 = vadd.f32 %v955, %v1108
        %v1110 = vpop.f32.mrb[0].mxu0
        %1111 = vmatprep.mubr.f32.mxu0 %v567
        %1112 = vmatmul.mubr.f32.gmra.mrb[0].mxu0 %v535
        %v1113 = vpop.f32.mrb[0].mxu0
        %v1114 = vadd.f32 %v955, %v1113
        %v1115 = vpop.f32.mrb[0].mxu0
        %1116 = vmatprep.mubr.f32.mxu0 %v568
        %1117 = vmatmul.mubr.f32.gmra.mrb[0].mxu0 %v536
        %v1118 = vpop.f32.mrb[0].mxu0
        %v1119 = vadd.f32 %v955, %v1118
        %v1120 = vpop.f32.mrb[0].mxu0
        %1121 = vmatprep.mubr.f32.mxu0 %v569
        %1122 = vmatmul.mubr.f32.gmra.mrb[0].mxu0 %v537
        %v1123 = vpop.f32.mrb[0].mxu0
        %v1124 = vadd.f32 %v955, %v1123
        %v1125 = vpop.f32.mrb[0].mxu0
        %1126 = vmatprep.mubr.f32.mxu0 %v570
        %1127 = vmatmul.mubr.f32.gmra.mrb[0].mxu0 %v538
        %v1128 = vpop.f32.mrb[0].mxu0
        %v1129 = vadd.f32 %v955, %v1128
        %v1130 = vpop.f32.mrb[0].mxu0
        %1131 = vmatprep.mubr.f32.mxu0 %v571
        %1132 = vmatmul.mubr.f32.gmra.mrb[0].mxu0 %v539
        %v1133 = vpop.f32.mrb[0].mxu0
        %v1134 = vadd.f32 %v955, %v1133
        %v1135 = vpop.f32.mrb[0].mxu0
        %1136 = vmatprep.mubr.f32.mxu0 %v572
        %1137 = vmatmul.mubr.f32.gmra.mrb[0].mxu0 %v540
        %v1138 = vpop.f32.mrb[0].mxu0
        %v1139 = vadd.f32 %v955, %v1138
        %v1140 = vpop.f32.mrb[0].mxu0
        %1141 = vmatprep.mubr.f32.mxu0 %v573
        %1142 = vmatmul.mubr.f32.gmra.mrb[0].mxu0 %v541
        %v1143 = vpop.f32.mrb[0].mxu0
        %v1144 = vadd.f32 %v955, %v1143
        %v1145 = vpop.f32.mrb[0].mxu0
        %1146 = vmatprep.mubr.f32.mxu0 %v574
        %1147 = vmatmul.mubr.f32.gmra.mrb[0].mxu0 %v542
        %v1148 = vpop.f32.mrb[0].mxu0
        %v1149 = vadd.f32 %v955, %v1148
        %v1150 = vpop.f32.mrb[0].mxu0
        %1151 = vmatprep.mubr.f32.mxu0 %v575
        %1152 = vmatmul.mubr.f32.gmra.mrb[0].mxu0 %v543
        %v1153 = vpop.f32.mrb[0].mxu0
        %v1154 = vadd.f32 %v955, %v1153
        %v1155 = vpop.f32.mrb[0].mxu0
        %1156 = vmatprep.mubr.f32.mxu0 %v576
        %1157 = vmatmul.mubr.f32.gmra.mrb[0].mxu0 %v544
        %v1158 = vpop.f32.mrb[0].mxu0
        %v1159 = vadd.f32 %v955, %v1158
        %v1160 = vpop.f32.mrb[0].mxu0
        %1161 = vmatprep.mubr.f32.mxu0 %v577
        %1162 = vmatmul.mubr.f32.gmra.mrb[0].mxu0 %v545
        %v1163 = vpop.f32.mrb[0].mxu0
        %v1164 = vadd.f32 %v955, %v1163
        %v1165 = vpop.f32.mrb[0].mxu0
        %1166 = vmatprep.mubr.f32.mxu0 %v578
        %1167 = vmatmul.mubr.f32.gmra.mrb[0].mxu0 %v546
        %v1168 = vpop.f32.mrb[0].mxu0
        %v1169 = vadd.f32 %v955, %v1168
        %v1170 = vpop.f32.mrb[0].mxu0
        %1171 = vmatprep.mubr.f32.mxu0 %v579
        %1172 = vmatmul.mubr.f32.gmra.mrb[0].mxu0 %v547
        %v1173 = vpop.f32.mrb[0].mxu0
        %v1174 = vadd.f32 %v955, %v1173
        %v1175 = vpop.f32.mrb[0].mxu0
        %1176 = vmatprep.mubr.f32.mxu0 %v580
        %1177 = vmatmul.mubr.f32.gmra.mrb[0].mxu0 %v548
        %v1178 = vpop.f32.mrb[0].mxu0
        %v1179 = vadd.f32 %v955, %v1178
        %v1180 = vpop.f32.mrb[0].mxu0
        %1181 = vdwg.mxu0
        %1182 = vmatprep.subr.mxu0 0.0
        %1183 = vmatpush1.msra.mxu0 %v838
        %1184 = vmatprep.subr.mxu0 0.0
        %1185 = vmatpush1.msra.mxu0 %v839
        %1186 = vmatprep.subr.mxu0 0.0
        %1187 = vmatpush1.msra.mxu0 %v840
        %1188 = vmatprep.subr.mxu0 0.0
        %1189 = vmatpush1.msra.mxu0 %v841
        %1190 = vmatprep.subr.mxu0 0.0
        %1191 = vmatpush1.msra.mxu0 %v842
        %1192 = vmatprep.subr.mxu0 0.0
        %1193 = vmatpush1.msra.mxu0 %v843
        %1194 = vmatprep.subr.mxu0 0.0
        %1195 = vmatpush1.msra.mxu0 %v844
        %1196 = vmatprep.subr.mxu0 0.0
        %1197 = vmatpush1.msra.mxu0 %v845
        %1198 = vmatprep.subr.mxu0 0.0
        %1199 = vmatpush1.msra.mxu0 %v846
        %1200 = vmatprep.subr.mxu0 0.0
        %1201 = vmatpush1.msra.mxu0 %v847
        %1202 = vmatprep.subr.mxu0 0.0
        %1203 = vmatpush1.msra.mxu0 %v848
        %1204 = vmatprep.subr.mxu0 0.0
        %1205 = vmatpush1.msra.mxu0 %v849
        %1206 = vmatprep.subr.mxu0 0.0
        %1207 = vmatpush1.msra.mxu0 %v850
        %1208 = vmatprep.subr.mxu0 0.0
        %1209 = vmatpush1.msra.mxu0 %v851
        %1210 = vmatprep.subr.mxu0 0.0
        %1211 = vmatpush1.msra.mxu0 %v852
        %1212 = vmatprep.subr.mxu0 0.0
        %1213 = vmatpush1.msra.mxu0 %v853
        %1214 = vmatprep.subr.mxu0 0.0
        %1215 = vmatpush1.msra.mxu0 %v854
        %1216 = vmatprep.subr.mxu0 0.0
        %1217 = vmatpush1.msra.mxu0 %v855
        %1218 = vmatprep.subr.mxu0 0.0
        %1219 = vmatpush1.msra.mxu0 %v856
        %1220 = vmatprep.subr.mxu0 0.0
        %1221 = vmatpush1.msra.mxu0 %v857
        %1222 = vmatprep.subr.mxu0 0.0
        %1223 = vmatpush1.msra.mxu0 %v858
        %1224 = vmatprep.subr.mxu0 0.0
        %1225 = vmatpush1.msra.mxu0 %v859
        %1226 = vmatprep.subr.mxu0 0.0
        %1227 = vmatpush1.msra.mxu0 %v860
        %1228 = vmatprep.subr.mxu0 0.0
        %1229 = vmatpush1.msra.mxu0 %v861
        %1230 = vmatprep.subr.mxu0 0.0
        %1231 = vmatpush1.msra.mxu0 %v862
        %1232 = vmatprep.subr.mxu0 0.0
        %1233 = vmatpush1.msra.mxu0 %v863
        %1234 = vmatprep.subr.mxu0 0.0
        %1235 = vmatpush1.msra.mxu0 %v864
        %1236 = vmatprep.subr.mxu0 0.0
        %1237 = vmatpush1.msra.mxu0 %v865
        %1238 = vmatprep.subr.mxu0 0.0
        %1239 = vmatpush1.msra.mxu0 %v866
        %1240 = vmatprep.subr.mxu0 0.0
        %1241 = vmatpush1.msra.mxu0 %v867
        %1242 = vmatprep.subr.mxu0 0.0
        %1243 = vmatpush1.msra.mxu0 %v868
        %1244 = vmatprep.subr.mxu0 0.0
        %1245 = vmatpush1.msra.mxu0 %v869
        %1246 = vmatprep.mubr.f32.mxu0 %v613
        %1247 = vmatmul.mubr.f32.gmra.mrb[0].mxu0 %v581
        %v1248 = vpop.f32.mrb[0].mxu0
        %v1249 = vadd.f32 %v1024, %v1248
        %v1250 = vpop.f32.mrb[0].mxu0
        %1251 = vmatprep.mubr.f32.mxu0 %v614
        %1252 = vmatmul.mubr.f32.gmra.mrb[0].mxu0 %v582
        %v1253 = vpop.f32.mrb[0].mxu0
        %v1254 = vadd.f32 %v1029, %v1253
        %v1255 = vpop.f32.mrb[0].mxu0
        %1256 = vmatprep.mubr.f32.mxu0 %v615
        %1257 = vmatmul.mubr.f32.gmra.mrb[0].mxu0 %v583
        %v1258 = vpop.f32.mrb[0].mxu0
        %v1259 = vadd.f32 %v1034, %v1258
        %v1260 = vpop.f32.mrb[0].mxu0
        %1261 = vmatprep.mubr.f32.mxu0 %v616
        %1262 = vmatmul.mubr.f32.gmra.mrb[0].mxu0 %v584
        %v1263 = vpop.f32.mrb[0].mxu0
        %v1264 = vadd.f32 %v1039, %v1263
        %v1265 = vpop.f32.mrb[0].mxu0
        %1266 = vmatprep.mubr.f32.mxu0 %v617
        %1267 = vmatmul.mubr.f32.gmra.mrb[0].mxu0 %v585
        %v1268 = vpop.f32.mrb[0].mxu0
        %v1269 = vadd.f32 %v1044, %v1268
        %v1270 = vpop.f32.mrb[0].mxu0
        %1271 = vmatprep.mubr.f32.mxu0 %v618
        %1272 = vmatmul.mubr.f32.gmra.mrb[0].mxu0 %v586
        %v1273 = vpop.f32.mrb[0].mxu0
        %v1274 = vadd.f32 %v1049, %v1273
        %v1275 = vpop.f32.mrb[0].mxu0
        %1276 = vmatprep.mubr.f32.mxu0 %v619
        %1277 = vmatmul.mubr.f32.gmra.mrb[0].mxu0 %v587
        %v1278 = vpop.f32.mrb[0].mxu0
        %v1279 = vadd.f32 %v1054, %v1278
        %v1280 = vpop.f32.mrb[0].mxu0
        %1281 = vmatprep.mubr.f32.mxu0 %v620
        %1282 = vmatmul.mubr.f32.gmra.mrb[0].mxu0 %v588
        %v1283 = vpop.f32.mrb[0].mxu0
        %v1284 = vadd.f32 %v1059, %v1283
        %v1285 = vpop.f32.mrb[0].mxu0
        %1286 = vmatprep.mubr.f32.mxu0 %v621
        %1287 = vmatmul.mubr.f32.gmra.mrb[0].mxu0 %v589
        %v1288 = vpop.f32.mrb[0].mxu0
        %v1289 = vadd.f32 %v1064, %v1288
        %v1290 = vpop.f32.mrb[0].mxu0
        %1291 = vmatprep.mubr.f32.mxu0 %v622
        %1292 = vmatmul.mubr.f32.gmra.mrb[0].mxu0 %v590
        %v1293 = vpop.f32.mrb[0].mxu0
        %v1294 = vadd.f32 %v1069, %v1293
        %v1295 = vpop.f32.mrb[0].mxu0
        %1296 = vmatprep.mubr.f32.mxu0 %v623
        %1297 = vmatmul.mubr.f32.gmra.mrb[0].mxu0 %v591
        %v1298 = vpop.f32.mrb[0].mxu0
        %v1299 = vadd.f32 %v1074, %v1298
        %v1300 = vpop.f32.mrb[0].mxu0
        %1301 = vmatprep.mubr.f32.mxu0 %v624
        %1302 = vmatmul.mubr.f32.gmra.mrb[0].mxu0 %v592
        %v1303 = vpop.f32.mrb[0].mxu0
        %v1304 = vadd.f32 %v1079, %v1303
        %v1305 = vpop.f32.mrb[0].mxu0
        %1306 = vmatprep.mubr.f32.mxu0 %v625
        %1307 = vmatmul.mubr.f32.gmra.mrb[0].mxu0 %v593
        %v1308 = vpop.f32.mrb[0].mxu0
        %v1309 = vadd.f32 %v1084, %v1308
        %v1310 = vpop.f32.mrb[0].mxu0
        %1311 = vmatprep.mubr.f32.mxu0 %v626
        %1312 = vmatmul.mubr.f32.gmra.mrb[0].mxu0 %v594
        %v1313 = vpop.f32.mrb[0].mxu0
        %v1314 = vadd.f32 %v1089, %v1313
        %v1315 = vpop.f32.mrb[0].mxu0
        %1316 = vmatprep.mubr.f32.mxu0 %v627
        %1317 = vmatmul.mubr.f32.gmra.mrb[0].mxu0 %v595
        %v1318 = vpop.f32.mrb[0].mxu0
        %v1319 = vadd.f32 %v1094, %v1318
        %v1320 = vpop.f32.mrb[0].mxu0
        %1321 = vmatprep.mubr.f32.mxu0 %v628
        %1322 = vmatmul.mubr.f32.gmra.mrb[0].mxu0 %v596
        %v1323 = vpop.f32.mrb[0].mxu0
        %v1324 = vadd.f32 %v1099, %v1323
        %v1325 = vpop.f32.mrb[0].mxu0
        %1326 = vmatprep.mubr.f32.mxu0 %v629
        %1327 = vmatmul.mubr.f32.gmra.mrb[0].mxu0 %v597
        %v1328 = vpop.f32.mrb[0].mxu0
        %v1329 = vadd.f32 %v1104, %v1328
        %v1330 = vpop.f32.mrb[0].mxu0
        %1331 = vmatprep.mubr.f32.mxu0 %v630
        %1332 = vmatmul.mubr.f32.gmra.mrb[0].mxu0 %v598
        %v1333 = vpop.f32.mrb[0].mxu0
        %v1334 = vadd.f32 %v1109, %v1333
        %v1335 = vpop.f32.mrb[0].mxu0
        %1336 = vmatprep.mubr.f32.mxu0 %v631
        %1337 = vmatmul.mubr.f32.gmra.mrb[0].mxu0 %v599
        %v1338 = vpop.f32.mrb[0].mxu0
        %v1339 = vadd.f32 %v1114, %v1338
        %v1340 = vpop.f32.mrb[0].mxu0
        %1341 = vmatprep.mubr.f32.mxu0 %v632
        %1342 = vmatmul.mubr.f32.gmra.mrb[0].mxu0 %v600
        %v1343 = vpop.f32.mrb[0].mxu0
        %v1344 = vadd.f32 %v1119, %v1343
        %v1345 = vpop.f32.mrb[0].mxu0
        %1346 = vmatprep.mubr.f32.mxu0 %v633
        %1347 = vmatmul.mubr.f32.gmra.mrb[0].mxu0 %v601
        %v1348 = vpop.f32.mrb[0].mxu0
        %v1349 = vadd.f32 %v1124, %v1348
        %v1350 = vpop.f32.mrb[0].mxu0
        %1351 = vmatprep.mubr.f32.mxu0 %v634
        %1352 = vmatmul.mubr.f32.gmra.mrb[0].mxu0 %v602
        %v1353 = vpop.f32.mrb[0].mxu0
        %v1354 = vadd.f32 %v1129, %v1353
        %v1355 = vpop.f32.mrb[0].mxu0
        %1356 = vmatprep.mubr.f32.mxu0 %v635
        %1357 = vmatmul.mubr.f32.gmra.mrb[0].mxu0 %v603
        %v1358 = vpop.f32.mrb[0].mxu0
        %v1359 = vadd.f32 %v1134, %v1358
        %v1360 = vpop.f32.mrb[0].mxu0
        %1361 = vmatprep.mubr.f32.mxu0 %v636
        %1362 = vmatmul.mubr.f32.gmra.mrb[0].mxu0 %v604
        %v1363 = vpop.f32.mrb[0].mxu0
        %v1364 = vadd.f32 %v1139, %v1363
        %v1365 = vpop.f32.mrb[0].mxu0
        %1366 = vmatprep.mubr.f32.mxu0 %v637
        %1367 = vmatmul.mubr.f32.gmra.mrb[0].mxu0 %v605
        %v1368 = vpop.f32.mrb[0].mxu0
        %v1369 = vadd.f32 %v1144, %v1368
        %v1370 = vpop.f32.mrb[0].mxu0
        %1371 = vmatprep.mubr.f32.mxu0 %v638
        %1372 = vmatmul.mubr.f32.gmra.mrb[0].mxu0 %v606
        %v1373 = vpop.f32.mrb[0].mxu0
        %v1374 = vadd.f32 %v1149, %v1373
        %v1375 = vpop.f32.mrb[0].mxu0
        %1376 = vmatprep.mubr.f32.mxu0 %v639
        %1377 = vmatmul.mubr.f32.gmra.mrb[0].mxu0 %v607
        %v1378 = vpop.f32.mrb[0].mxu0
        %v1379 = vadd.f32 %v1154, %v1378
        %v1380 = vpop.f32.mrb[0].mxu0
        %1381 = vmatprep.mubr.f32.mxu0 %v640
        %1382 = vmatmul.mubr.f32.gmra.mrb[0].mxu0 %v608
        %v1383 = vpop.f32.mrb[0].mxu0
        %v1384 = vadd.f32 %v1159, %v1383
        %v1385 = vpop.f32.mrb[0].mxu0
        %1386 = vmatprep.mubr.f32.mxu0 %v641
        %1387 = vmatmul.mubr.f32.gmra.mrb[0].mxu0 %v609
        %v1388 = vpop.f32.mrb[0].mxu0
        %v1389 = vadd.f32 %v1164, %v1388
        %v1390 = vpop.f32.mrb[0].mxu0
        %1391 = vmatprep.mubr.f32.mxu0 %v642
        %1392 = vmatmul.mubr.f32.gmra.mrb[0].mxu0 %v610
        %v1393 = vpop.f32.mrb[0].mxu0
        %v1394 = vadd.f32 %v1169, %v1393
        %v1395 = vpop.f32.mrb[0].mxu0
        %1396 = vmatprep.mubr.f32.mxu0 %v643
        %1397 = vmatmul.mubr.f32.gmra.mrb[0].mxu0 %v611
        %v1398 = vpop.f32.mrb[0].mxu0
        %v1399 = vadd.f32 %v1174, %v1398
        %v1400 = vpop.f32.mrb[0].mxu0
        %1401 = vmatprep.mubr.f32.mxu0 %v644
        %1402 = vmatmul.mubr.f32.gmra.mrb[0].mxu0 %v612
        %v1403 = vpop.f32.mrb[0].mxu0
        %v1404 = vadd.f32 %v1179, %v1403
        %v1405 = vpop.f32.mrb[0].mxu0
        %1406 = vdwg.mxu0
        %1407 = vmatprep.subr.mxu0 0.0
        %1408 = vmatpush1.msra.mxu0 %v870
        %1409 = vmatprep.subr.mxu0 0.0
        %1410 = vmatpush1.msra.mxu0 %v871
        %1411 = vmatprep.subr.mxu0 0.0
        %1412 = vmatpush1.msra.mxu0 %v872
        %1413 = vmatprep.subr.mxu0 0.0
        %1414 = vmatpush1.msra.mxu0 %v873
        %1415 = vmatprep.subr.mxu0 0.0
        %1416 = vmatpush1.msra.mxu0 %v874
        %1417 = vmatprep.subr.mxu0 0.0
        %1418 = vmatpush1.msra.mxu0 %v875
        %1419 = vmatprep.subr.mxu0 0.0
        %1420 = vmatpush1.msra.mxu0 %v876
        %1421 = vmatprep.subr.mxu0 0.0
        %1422 = vmatpush1.msra.mxu0 %v877
        %1423 = vmatprep.subr.mxu0 0.0
        %1424 = vmatpush1.msra.mxu0 %v878
        %1425 = vmatprep.subr.mxu0 0.0
        %1426 = vmatpush1.msra.mxu0 %v879
        %1427 = vmatprep.subr.mxu0 0.0
        %1428 = vmatpush1.msra.mxu0 %v880
        %1429 = vmatprep.subr.mxu0 0.0
        %1430 = vmatpush1.msra.mxu0 %v881
        %1431 = vmatprep.subr.mxu0 0.0
        %1432 = vmatpush1.msra.mxu0 %v882
        %1433 = vmatprep.subr.mxu0 0.0
        %1434 = vmatpush1.msra.mxu0 %v883
        %1435 = vmatprep.subr.mxu0 0.0
        %1436 = vmatpush1.msra.mxu0 %v884
        %1437 = vmatprep.subr.mxu0 0.0
        %1438 = vmatpush1.msra.mxu0 %v885
        %1439 = vmatprep.subr.mxu0 0.0
        %1440 = vmatpush1.msra.mxu0 %v886
        %1441 = vmatprep.subr.mxu0 0.0
        %1442 = vmatpush1.msra.mxu0 %v887
        %1443 = vmatprep.subr.mxu0 0.0
        %1444 = vmatpush1.msra.mxu0 %v888
        %1445 = vmatprep.subr.mxu0 0.0
        %1446 = vmatpush1.msra.mxu0 %v889
        %1447 = vmatprep.subr.mxu0 0.0
        %1448 = vmatpush1.msra.mxu0 %v890
        %1449 = vmatprep.subr.mxu0 0.0
        %1450 = vmatpush1.msra.mxu0 %v891
        %1451 = vmatprep.subr.mxu0 0.0
        %1452 = vmatpush1.msra.mxu0 %v892
        %1453 = vmatprep.subr.mxu0 0.0
        %1454 = vmatpush1.msra.mxu0 %v893
        %1455 = vmatprep.subr.mxu0 0.0
        %1456 = vmatpush1.msra.mxu0 %v894
        %1457 = vmatprep.subr.mxu0 0.0
        %1458 = vmatpush1.msra.mxu0 %v895
        %1459 = vmatprep.subr.mxu0 0.0
        %1460 = vmatpush1.msra.mxu0 %v896
        %1461 = vmatprep.subr.mxu0 0.0
        %1462 = vmatpush1.msra.mxu0 %v897
        %1463 = vmatprep.subr.mxu0 0.0
        %1464 = vmatpush1.msra.mxu0 %v898
        %1465 = vmatprep.subr.mxu0 0.0
        %1466 = vmatpush1.msra.mxu0 %v899
        %1467 = vmatprep.subr.mxu0 0.0
        %1468 = vmatpush1.msra.mxu0 %v900
        %1469 = vmatprep.subr.mxu0 0.0
        %1470 = vmatpush1.msra.mxu0 %v901
        %1471 = vmatprep.mubr.f32.mxu0 %v677
        %1472 = vmatmul.mubr.f32.gmra.mrb[0].mxu0 %v645
        %v1473 = vpop.f32.mrb[0].mxu0
        %v1474 = vadd.f32 %v1249, %v1473
        %v1475 = vpop.f32.mrb[0].mxu0
        %1476 = vmatprep.mubr.f32.mxu0 %v678
        %1477 = vmatmul.mubr.f32.gmra.mrb[0].mxu0 %v646
        %v1478 = vpop.f32.mrb[0].mxu0
        %v1479 = vadd.f32 %v1254, %v1478
        %v1480 = vpop.f32.mrb[0].mxu0
        %1481 = vmatprep.mubr.f32.mxu0 %v679
        %1482 = vmatmul.mubr.f32.gmra.mrb[0].mxu0 %v647
        %v1483 = vpop.f32.mrb[0].mxu0
        %v1484 = vadd.f32 %v1259, %v1483
        %v1485 = vpop.f32.mrb[0].mxu0
        %1486 = vmatprep.mubr.f32.mxu0 %v680
        %1487 = vmatmul.mubr.f32.gmra.mrb[0].mxu0 %v648
        %v1488 = vpop.f32.mrb[0].mxu0
        %v1489 = vadd.f32 %v1264, %v1488
        %v1490 = vpop.f32.mrb[0].mxu0
        %1491 = vmatprep.mubr.f32.mxu0 %v681
        %1492 = vmatmul.mubr.f32.gmra.mrb[0].mxu0 %v649
        %v1493 = vpop.f32.mrb[0].mxu0
        %v1494 = vadd.f32 %v1269, %v1493
        %v1495 = vpop.f32.mrb[0].mxu0
        %1496 = vmatprep.mubr.f32.mxu0 %v682
        %1497 = vmatmul.mubr.f32.gmra.mrb[0].mxu0 %v650
        %v1498 = vpop.f32.mrb[0].mxu0
        %v1499 = vadd.f32 %v1274, %v1498
        %v1500 = vpop.f32.mrb[0].mxu0
        %1501 = vmatprep.mubr.f32.mxu0 %v683
        %1502 = vmatmul.mubr.f32.gmra.mrb[0].mxu0 %v651
        %v1503 = vpop.f32.mrb[0].mxu0
        %v1504 = vadd.f32 %v1279, %v1503
        %v1505 = vpop.f32.mrb[0].mxu0
        %1506 = vmatprep.mubr.f32.mxu0 %v684
        %1507 = vmatmul.mubr.f32.gmra.mrb[0].mxu0 %v652
        %v1508 = vpop.f32.mrb[0].mxu0
        %v1509 = vadd.f32 %v1284, %v1508
        %v1510 = vpop.f32.mrb[0].mxu0
        %1511 = vmatprep.mubr.f32.mxu0 %v685
        %1512 = vmatmul.mubr.f32.gmra.mrb[0].mxu0 %v653
        %v1513 = vpop.f32.mrb[0].mxu0
        %v1514 = vadd.f32 %v1289, %v1513
        %v1515 = vpop.f32.mrb[0].mxu0
        %1516 = vmatprep.mubr.f32.mxu0 %v686
        %1517 = vmatmul.mubr.f32.gmra.mrb[0].mxu0 %v654
        %v1518 = vpop.f32.mrb[0].mxu0
        %v1519 = vadd.f32 %v1294, %v1518
        %v1520 = vpop.f32.mrb[0].mxu0
        %1521 = vmatprep.mubr.f32.mxu0 %v687
        %1522 = vmatmul.mubr.f32.gmra.mrb[0].mxu0 %v655
        %v1523 = vpop.f32.mrb[0].mxu0
        %v1524 = vadd.f32 %v1299, %v1523
        %v1525 = vpop.f32.mrb[0].mxu0
        %1526 = vmatprep.mubr.f32.mxu0 %v688
        %1527 = vmatmul.mubr.f32.gmra.mrb[0].mxu0 %v656
        %v1528 = vpop.f32.mrb[0].mxu0
        %v1529 = vadd.f32 %v1304, %v1528
        %v1530 = vpop.f32.mrb[0].mxu0
        %1531 = vmatprep.mubr.f32.mxu0 %v689
        %1532 = vmatmul.mubr.f32.gmra.mrb[0].mxu0 %v657
        %v1533 = vpop.f32.mrb[0].mxu0
        %v1534 = vadd.f32 %v1309, %v1533
        %v1535 = vpop.f32.mrb[0].mxu0
        %1536 = vmatprep.mubr.f32.mxu0 %v690
        %1537 = vmatmul.mubr.f32.gmra.mrb[0].mxu0 %v658
        %v1538 = vpop.f32.mrb[0].mxu0
        %v1539 = vadd.f32 %v1314, %v1538
        %v1540 = vpop.f32.mrb[0].mxu0
        %1541 = vmatprep.mubr.f32.mxu0 %v691
        %1542 = vmatmul.mubr.f32.gmra.mrb[0].mxu0 %v659
        %v1543 = vpop.f32.mrb[0].mxu0
        %v1544 = vadd.f32 %v1319, %v1543
        %v1545 = vpop.f32.mrb[0].mxu0
        %1546 = vmatprep.mubr.f32.mxu0 %v692
        %1547 = vmatmul.mubr.f32.gmra.mrb[0].mxu0 %v660
        %v1548 = vpop.f32.mrb[0].mxu0
        %v1549 = vadd.f32 %v1324, %v1548
        %v1550 = vpop.f32.mrb[0].mxu0
        %1551 = vmatprep.mubr.f32.mxu0 %v693
        %1552 = vmatmul.mubr.f32.gmra.mrb[0].mxu0 %v661
        %v1553 = vpop.f32.mrb[0].mxu0
        %v1554 = vadd.f32 %v1329, %v1553
        %v1555 = vpop.f32.mrb[0].mxu0
        %1556 = vmatprep.mubr.f32.mxu0 %v694
        %1557 = vmatmul.mubr.f32.gmra.mrb[0].mxu0 %v662
        %v1558 = vpop.f32.mrb[0].mxu0
        %v1559 = vadd.f32 %v1334, %v1558
        %v1560 = vpop.f32.mrb[0].mxu0
        %1561 = vmatprep.mubr.f32.mxu0 %v695
        %1562 = vmatmul.mubr.f32.gmra.mrb[0].mxu0 %v663
        %v1563 = vpop.f32.mrb[0].mxu0
        %v1564 = vadd.f32 %v1339, %v1563
        %v1565 = vpop.f32.mrb[0].mxu0
        %1566 = vmatprep.mubr.f32.mxu0 %v696
        %1567 = vmatmul.mubr.f32.gmra.mrb[0].mxu0 %v664
        %v1568 = vpop.f32.mrb[0].mxu0
        %v1569 = vadd.f32 %v1344, %v1568
        %v1570 = vpop.f32.mrb[0].mxu0
        %1571 = vmatprep.mubr.f32.mxu0 %v697
        %1572 = vmatmul.mubr.f32.gmra.mrb[0].mxu0 %v665
        %v1573 = vpop.f32.mrb[0].mxu0
        %v1574 = vadd.f32 %v1349, %v1573
        %v1575 = vpop.f32.mrb[0].mxu0
        %1576 = vmatprep.mubr.f32.mxu0 %v698
        %1577 = vmatmul.mubr.f32.gmra.mrb[0].mxu0 %v666
        %v1578 = vpop.f32.mrb[0].mxu0
        %v1579 = vadd.f32 %v1354, %v1578
        %v1580 = vpop.f32.mrb[0].mxu0
        %1581 = vmatprep.mubr.f32.mxu0 %v699
        %1582 = vmatmul.mubr.f32.gmra.mrb[0].mxu0 %v667
        %v1583 = vpop.f32.mrb[0].mxu0
        %v1584 = vadd.f32 %v1359, %v1583
        %v1585 = vpop.f32.mrb[0].mxu0
        %1586 = vmatprep.mubr.f32.mxu0 %v700
        %1587 = vmatmul.mubr.f32.gmra.mrb[0].mxu0 %v668
        %v1588 = vpop.f32.mrb[0].mxu0
        %v1589 = vadd.f32 %v1364, %v1588
        %v1590 = vpop.f32.mrb[0].mxu0
        %1591 = vmatprep.mubr.f32.mxu0 %v701
        %1592 = vmatmul.mubr.f32.gmra.mrb[0].mxu0 %v669
        %v1593 = vpop.f32.mrb[0].mxu0
        %v1594 = vadd.f32 %v1369, %v1593
        %v1595 = vpop.f32.mrb[0].mxu0
        %1596 = vmatprep.mubr.f32.mxu0 %v702
        %1597 = vmatmul.mubr.f32.gmra.mrb[0].mxu0 %v670
        %v1598 = vpop.f32.mrb[0].mxu0
        %v1599 = vadd.f32 %v1374, %v1598
        %v1600 = vpop.f32.mrb[0].mxu0
        %1601 = vmatprep.mubr.f32.mxu0 %v703
        %1602 = vmatmul.mubr.f32.gmra.mrb[0].mxu0 %v671
        %v1603 = vpop.f32.mrb[0].mxu0
        %v1604 = vadd.f32 %v1379, %v1603
        %v1605 = vpop.f32.mrb[0].mxu0
        %1606 = vmatprep.mubr.f32.mxu0 %v704
        %1607 = vmatmul.mubr.f32.gmra.mrb[0].mxu0 %v672
        %v1608 = vpop.f32.mrb[0].mxu0
        %v1609 = vadd.f32 %v1384, %v1608
        %v1610 = vpop.f32.mrb[0].mxu0
        %1611 = vmatprep.mubr.f32.mxu0 %v705
        %1612 = vmatmul.mubr.f32.gmra.mrb[0].mxu0 %v673
        %v1613 = vpop.f32.mrb[0].mxu0
        %v1614 = vadd.f32 %v1389, %v1613
        %v1615 = vpop.f32.mrb[0].mxu0
        %1616 = vmatprep.mubr.f32.mxu0 %v706
        %1617 = vmatmul.mubr.f32.gmra.mrb[0].mxu0 %v674
        %v1618 = vpop.f32.mrb[0].mxu0
        %v1619 = vadd.f32 %v1394, %v1618
        %v1620 = vpop.f32.mrb[0].mxu0
        %1621 = vmatprep.mubr.f32.mxu0 %v707
        %1622 = vmatmul.mubr.f32.gmra.mrb[0].mxu0 %v675
        %v1623 = vpop.f32.mrb[0].mxu0
        %v1624 = vadd.f32 %v1399, %v1623
        %v1625 = vpop.f32.mrb[0].mxu0
        %1626 = vmatprep.mubr.f32.mxu0 %v708
        %1627 = vmatmul.mubr.f32.gmra.mrb[0].mxu0 %v676
        %v1628 = vpop.f32.mrb[0].mxu0
        %v1629 = vadd.f32 %v1404, %v1628
        %v1630 = vpop.f32.mrb[0].mxu0
        %1631 = vdwg.mxu0
        %1632 = vmatprep.subr.mxu0 0.0
        %1633 = vmatpush1.msra.mxu0 %v902
        %1634 = vmatprep.subr.mxu0 0.0
        %1635 = vmatpush1.msra.mxu0 %v903
        %1636 = vmatprep.subr.mxu0 0.0
        %1637 = vmatpush1.msra.mxu0 %v904
        %1638 = vmatprep.subr.mxu0 0.0
        %1639 = vmatpush1.msra.mxu0 %v905
        %1640 = vmatprep.subr.mxu0 0.0
        %1641 = vmatpush1.msra.mxu0 %v906
        %1642 = vmatprep.subr.mxu0 0.0
        %1643 = vmatpush1.msra.mxu0 %v907
        %1644 = vmatprep.subr.mxu0 0.0
        %1645 = vmatpush1.msra.mxu0 %v908
        %1646 = vmatprep.subr.mxu0 0.0
        %1647 = vmatpush1.msra.mxu0 %v909
        %1648 = vmatprep.subr.mxu0 0.0
        %1649 = vmatpush1.msra.mxu0 %v910
        %1650 = vmatprep.subr.mxu0 0.0
        %1651 = vmatpush1.msra.mxu0 %v911
        %1652 = vmatprep.subr.mxu0 0.0
        %1653 = vmatpush1.msra.mxu0 %v912
        %1654 = vmatprep.subr.mxu0 0.0
        %1655 = vmatpush1.msra.mxu0 %v913
        %1656 = vmatprep.subr.mxu0 0.0
        %1657 = vmatpush1.msra.mxu0 %v914
        %1658 = vmatprep.subr.mxu0 0.0
        %1659 = vmatpush1.msra.mxu0 %v915
        %1660 = vmatprep.subr.mxu0 0.0
        %1661 = vmatpush1.msra.mxu0 %v916
        %1662 = vmatprep.subr.mxu0 0.0
        %1663 = vmatpush1.msra.mxu0 %v917
        %1664 = vmatprep.subr.mxu0 0.0
        %1665 = vmatpush1.msra.mxu0 %v918
        %1666 = vmatprep.subr.mxu0 0.0
        %1667 = vmatpush1.msra.mxu0 %v919
        %1668 = vmatprep.subr.mxu0 0.0
        %1669 = vmatpush1.msra.mxu0 %v920
        %1670 = vmatprep.subr.mxu0 0.0
        %1671 = vmatpush1.msra.mxu0 %v921
        %1672 = vmatprep.subr.mxu0 0.0
        %1673 = vmatpush1.msra.mxu0 %v922
        %1674 = vmatprep.subr.mxu0 0.0
        %1675 = vmatpush1.msra.mxu0 %v923
        %1676 = vmatprep.subr.mxu0 0.0
        %1677 = vmatpush1.msra.mxu0 %v924
        %1678 = vmatprep.subr.mxu0 0.0
        %1679 = vmatpush1.msra.mxu0 %v925
        %1680 = vmatprep.subr.mxu0 0.0
        %1681 = vmatpush1.msra.mxu0 %v926
        %1682 = vmatprep.subr.mxu0 0.0
        %1683 = vmatpush1.msra.mxu0 %v927
        %1684 = vmatprep.subr.mxu0 0.0
        %1685 = vmatpush1.msra.mxu0 %v928
        %1686 = vmatprep.subr.mxu0 0.0
        %1687 = vmatpush1.msra.mxu0 %v929
        %1688 = vmatprep.subr.mxu0 0.0
        %1689 = vmatpush1.msra.mxu0 %v930
        %1690 = vmatprep.subr.mxu0 0.0
        %1691 = vmatpush1.msra.mxu0 %v931
        %1692 = vmatprep.subr.mxu0 0.0
        %1693 = vmatpush1.msra.mxu0 %v932
        %1694 = vmatprep.subr.mxu0 0.0
        %1695 = vmatpush1.msra.mxu0 %v933
        %1696 = vmatprep.mubr.f32.mxu0 %v742
        %1697 = vmatmul.mubr.f32.gmra.mrb[0].mxu0 %v710
        %v1698 = vpop.f32.mrb[0].mxu0
        %v1699 = vadd.f32 %v1474, %v1698
        %v1700 = vpop.f32.mrb[0].mxu0
        %1701 = vmatprep.mubr.f32.mxu0 %v743
        %1702 = vmatmul.mubr.f32.gmra.mrb[0].mxu0 %v711
        %v1703 = vpop.f32.mrb[0].mxu0
        %v1704 = vadd.f32 %v1479, %v1703
        %v1705 = vpop.f32.mrb[0].mxu0
        %1706 = vmatprep.mubr.f32.mxu0 %v744
        %1707 = vmatmul.mubr.f32.gmra.mrb[0].mxu0 %v712
        %v1708 = vpop.f32.mrb[0].mxu0
        %v1709 = vadd.f32 %v1484, %v1708
        %v1710 = vpop.f32.mrb[0].mxu0
        %1711 = vmatprep.mubr.f32.mxu0 %v745
        %1712 = vmatmul.mubr.f32.gmra.mrb[0].mxu0 %v713
        %v1713 = vpop.f32.mrb[0].mxu0
        %v1714 = vadd.f32 %v1489, %v1713
        %v1715 = vpop.f32.mrb[0].mxu0
        %1716 = vmatprep.mubr.f32.mxu0 %v746
        %1717 = vmatmul.mubr.f32.gmra.mrb[0].mxu0 %v714
        %v1718 = vpop.f32.mrb[0].mxu0
        %v1719 = vadd.f32 %v1494, %v1718
        %v1720 = vpop.f32.mrb[0].mxu0
        %1721 = vmatprep.mubr.f32.mxu0 %v747
        %1722 = vmatmul.mubr.f32.gmra.mrb[0].mxu0 %v715
        %v1723 = vpop.f32.mrb[0].mxu0
        %v1724 = vadd.f32 %v1499, %v1723
        %v1725 = vpop.f32.mrb[0].mxu0
        %1726 = vmatprep.mubr.f32.mxu0 %v748
        %1727 = vmatmul.mubr.f32.gmra.mrb[0].mxu0 %v716
        %v1728 = vpop.f32.mrb[0].mxu0
        %v1729 = vadd.f32 %v1504, %v1728
        %v1730 = vpop.f32.mrb[0].mxu0
        %1731 = vmatprep.mubr.f32.mxu0 %v749
        %1732 = vmatmul.mubr.f32.gmra.mrb[0].mxu0 %v717
        %v1733 = vpop.f32.mrb[0].mxu0
        %v1734 = vadd.f32 %v1509, %v1733
        %v1735 = vpop.f32.mrb[0].mxu0
        %1736 = vmatprep.mubr.f32.mxu0 %v750
        %1737 = vmatmul.mubr.f32.gmra.mrb[0].mxu0 %v718
        %v1738 = vpop.f32.mrb[0].mxu0
        %v1739 = vadd.f32 %v1514, %v1738
        %v1740 = vpop.f32.mrb[0].mxu0
        %1741 = vmatprep.mubr.f32.mxu0 %v751
        %1742 = vmatmul.mubr.f32.gmra.mrb[0].mxu0 %v719
        %v1743 = vpop.f32.mrb[0].mxu0
        %v1744 = vadd.f32 %v1519, %v1743
        %v1745 = vpop.f32.mrb[0].mxu0
        %1746 = vmatprep.mubr.f32.mxu0 %v752
        %1747 = vmatmul.mubr.f32.gmra.mrb[0].mxu0 %v720
        %v1748 = vpop.f32.mrb[0].mxu0
        %v1749 = vadd.f32 %v1524, %v1748
        %v1750 = vpop.f32.mrb[0].mxu0
        %1751 = vmatprep.mubr.f32.mxu0 %v753
        %1752 = vmatmul.mubr.f32.gmra.mrb[0].mxu0 %v721
        %v1753 = vpop.f32.mrb[0].mxu0
        %v1754 = vadd.f32 %v1529, %v1753
        %v1755 = vpop.f32.mrb[0].mxu0
        %1756 = vmatprep.mubr.f32.mxu0 %v754
        %1757 = vmatmul.mubr.f32.gmra.mrb[0].mxu0 %v722
        %v1758 = vpop.f32.mrb[0].mxu0
        %v1759 = vadd.f32 %v1534, %v1758
        %v1760 = vpop.f32.mrb[0].mxu0
        %1761 = vmatprep.mubr.f32.mxu0 %v755
        %1762 = vmatmul.mubr.f32.gmra.mrb[0].mxu0 %v723
        %v1763 = vpop.f32.mrb[0].mxu0
        %v1764 = vadd.f32 %v1539, %v1763
        %v1765 = vpop.f32.mrb[0].mxu0
        %1766 = vmatprep.mubr.f32.mxu0 %v756
        %1767 = vmatmul.mubr.f32.gmra.mrb[0].mxu0 %v724
        %v1768 = vpop.f32.mrb[0].mxu0
        %v1769 = vadd.f32 %v1544, %v1768
        %v1770 = vpop.f32.mrb[0].mxu0
        %1771 = vmatprep.mubr.f32.mxu0 %v757
        %1772 = vmatmul.mubr.f32.gmra.mrb[0].mxu0 %v725
        %v1773 = vpop.f32.mrb[0].mxu0
        %v1774 = vadd.f32 %v1549, %v1773
        %v1775 = vpop.f32.mrb[0].mxu0
        %1776 = vmatprep.mubr.f32.mxu0 %v758
        %1777 = vmatmul.mubr.f32.gmra.mrb[0].mxu0 %v726
        %v1778 = vpop.f32.mrb[0].mxu0
        %v1779 = vadd.f32 %v1554, %v1778
        %v1780 = vpop.f32.mrb[0].mxu0
        %1781 = vmatprep.mubr.f32.mxu0 %v759
        %1782 = vmatmul.mubr.f32.gmra.mrb[0].mxu0 %v727
        %v1783 = vpop.f32.mrb[0].mxu0
        %v1784 = vadd.f32 %v1559, %v1783
        %v1785 = vpop.f32.mrb[0].mxu0
        %1786 = vmatprep.mubr.f32.mxu0 %v760
        %1787 = vmatmul.mubr.f32.gmra.mrb[0].mxu0 %v728
        %v1788 = vpop.f32.mrb[0].mxu0
        %v1789 = vadd.f32 %v1564, %v1788
        %v1790 = vpop.f32.mrb[0].mxu0
        %1791 = vmatprep.mubr.f32.mxu0 %v761
        %1792 = vmatmul.mubr.f32.gmra.mrb[0].mxu0 %v729
        %v1793 = vpop.f32.mrb[0].mxu0
        %v1794 = vadd.f32 %v1569, %v1793
        %v1795 = vpop.f32.mrb[0].mxu0
        %1796 = vmatprep.mubr.f32.mxu0 %v762
        %1797 = vmatmul.mubr.f32.gmra.mrb[0].mxu0 %v730
        %v1798 = vpop.f32.mrb[0].mxu0
        %v1799 = vadd.f32 %v1574, %v1798
        %v1800 = vpop.f32.mrb[0].mxu0
        %1801 = vmatprep.mubr.f32.mxu0 %v763
        %1802 = vmatmul.mubr.f32.gmra.mrb[0].mxu0 %v731
        %v1803 = vpop.f32.mrb[0].mxu0
        %v1804 = vadd.f32 %v1579, %v1803
        %v1805 = vpop.f32.mrb[0].mxu0
        %1806 = vmatprep.mubr.f32.mxu0 %v764
        %1807 = vmatmul.mubr.f32.gmra.mrb[0].mxu0 %v732
        %v1808 = vpop.f32.mrb[0].mxu0
        %v1809 = vadd.f32 %v1584, %v1808
        %v1810 = vpop.f32.mrb[0].mxu0
        %1811 = vmatprep.mubr.f32.mxu0 %v765
        %1812 = vmatmul.mubr.f32.gmra.mrb[0].mxu0 %v733
        %v1813 = vpop.f32.mrb[0].mxu0
        %v1814 = vadd.f32 %v1589, %v1813
        %v1815 = vpop.f32.mrb[0].mxu0
        %1816 = vmatprep.mubr.f32.mxu0 %v766
        %1817 = vmatmul.mubr.f32.gmra.mrb[0].mxu0 %v734
        %v1818 = vpop.f32.mrb[0].mxu0
        %v1819 = vadd.f32 %v1594, %v1818
        %v1820 = vpop.f32.mrb[0].mxu0
        %1821 = vmatprep.mubr.f32.mxu0 %v767
        %1822 = vmatmul.mubr.f32.gmra.mrb[0].mxu0 %v735
        %v1823 = vpop.f32.mrb[0].mxu0
        %v1824 = vadd.f32 %v1599, %v1823
        %v1825 = vpop.f32.mrb[0].mxu0
        %1826 = vmatprep.mubr.f32.mxu0 %v768
        %1827 = vmatmul.mubr.f32.gmra.mrb[0].mxu0 %v736
        %v1828 = vpop.f32.mrb[0].mxu0
        %v1829 = vadd.f32 %v1604, %v1828
        %v1830 = vpop.f32.mrb[0].mxu0
        %1831 = vmatprep.mubr.f32.mxu0 %v769
        %1832 = vmatmul.mubr.f32.gmra.mrb[0].mxu0 %v737
        %v1833 = vpop.f32.mrb[0].mxu0
        %v1834 = vadd.f32 %v1609, %v1833
        %v1835 = vpop.f32.mrb[0].mxu0
        %1836 = vmatprep.mubr.f32.mxu0 %v770
        %1837 = vmatmul.mubr.f32.gmra.mrb[0].mxu0 %v738
        %v1838 = vpop.f32.mrb[0].mxu0
        %v1839 = vadd.f32 %v1614, %v1838
        %v1840 = vpop.f32.mrb[0].mxu0
        %1841 = vmatprep.mubr.f32.mxu0 %v771
        %1842 = vmatmul.mubr.f32.gmra.mrb[0].mxu0 %v739
        %v1843 = vpop.f32.mrb[0].mxu0
        %v1844 = vadd.f32 %v1619, %v1843
        %v1845 = vpop.f32.mrb[0].mxu0
        %1846 = vmatprep.mubr.f32.mxu0 %v772
        %1847 = vmatmul.mubr.f32.gmra.mrb[0].mxu0 %v740
        %v1848 = vpop.f32.mrb[0].mxu0
        %v1849 = vadd.f32 %v1624, %v1848
        %v1850 = vpop.f32.mrb[0].mxu0
        %1851 = vmatprep.mubr.f32.mxu0 %v773
        %1852 = vmatmul.mubr.f32.gmra.mrb[0].mxu0 %v741
        %v1853 = vpop.f32.mrb[0].mxu0
        %v1854 = vadd.f32 %v1629, %v1853
        %v1855 = vpop.f32.mrb[0].mxu0
        %1856 = vdwg.mxu0
        %1857 = vmatprep.subr.mxu0 0.0
        %1858 = vmatpush1.msra.mxu0 %v934
        %1859 = vmatprep.subr.mxu0 0.0
        %1860 = vmatpush1.msra.mxu0 %v935
        %1861 = vmatprep.subr.mxu0 0.0
        %1862 = vmatpush1.msra.mxu0 %v936
        %1863 = vmatprep.subr.mxu0 0.0
        %1864 = vmatpush1.msra.mxu0 %v937
        %1865 = vmatprep.subr.mxu0 0.0
        %1866 = vmatpush1.msra.mxu0 %v938
        %1867 = vmatprep.subr.mxu0 0.0
        %1868 = vmatpush1.msra.mxu0 %v939
        %1869 = vmatprep.subr.mxu0 0.0
        %1870 = vmatpush1.msra.mxu0 %v940
        %1871 = vmatprep.subr.mxu0 0.0
        %1872 = vmatpush1.msra.mxu0 %v941
        %1873 = vmatprep.subr.mxu0 0.0
        %1874 = vmatpush1.msra.mxu0 %v942
        %1875 = vmatprep.subr.mxu0 0.0
        %1876 = vmatpush1.msra.mxu0 %v943
        %1877 = vmatprep.subr.mxu0 0.0
        %1878 = vmatpush1.msra.mxu0 %v944
        %1879 = vmatprep.subr.mxu0 0.0
        %1880 = vmatpush1.msra.mxu0 %v945
        %1881 = vmatprep.subr.mxu0 0.0
        %1882 = vmatpush1.msra.mxu0 %v946
        %1883 = vmatprep.subr.mxu0 0.0
        %1884 = vmatpush1.msra.mxu0 %v947
        %1885 = vmatprep.subr.mxu0 0.0
        %1886 = vmatpush1.msra.mxu0 %v948
        %1887 = vmatprep.subr.mxu0 0.0
        %1888 = vmatpush1.msra.mxu0 %v949
        %1889 = vmatprep.subr.mxu0 0.0
        %1890 = vmatpush1.msra.mxu0 0.0
        %1891 = vmatprep.subr.mxu0 0.0
        %1892 = vmatpush1.msra.mxu0 0.0
        %1893 = vmatprep.subr.mxu0 0.0
        %1894 = vmatpush1.msra.mxu0 0.0
        %1895 = vmatprep.subr.mxu0 0.0
        %1896 = vmatpush1.msra.mxu0 0.0
        %1897 = vmatprep.subr.mxu0 0.0
        %1898 = vmatpush1.msra.mxu0 0.0
        %1899 = vmatprep.subr.mxu0 0.0
        %1900 = vmatpush1.msra.mxu0 0.0
        %1901 = vmatprep.subr.mxu0 0.0
        %1902 = vmatpush1.msra.mxu0 0.0
        %1903 = vmatprep.subr.mxu0 0.0
        %1904 = vmatpush1.msra.mxu0 0.0
        %1905 = vmatprep.subr.mxu0 0.0
        %1906 = vmatpush1.msra.mxu0 0.0
        %1907 = vmatprep.subr.mxu0 0.0
        %1908 = vmatpush1.msra.mxu0 0.0
        %1909 = vmatprep.subr.mxu0 0.0
        %1910 = vmatpush1.msra.mxu0 0.0
        %1911 = vmatprep.subr.mxu0 0.0
        %1912 = vmatpush1.msra.mxu0 0.0
        %1913 = vmatprep.subr.mxu0 0.0
        %1914 = vmatpush1.msra.mxu0 0.0
        %1915 = vmatprep.subr.mxu0 0.0
        %1916 = vmatpush1.msra.mxu0 0.0
        %1917 = vmatprep.subr.mxu0 0.0
        %1918 = vmatpush1.msra.mxu0 0.0
        %1919 = vmatprep.subr.mxu0 0.0
        %1920 = vmatpush1.msra.mxu0 0.0
        %1921 = vmatprep.mubr.f32.mxu0 0.0
        %1922 = vmatmul.mubr.f32.gmra.mrb[0].mxu0 %v774
        %v1923 = vpop.f32.mrb[0].mxu0
        %v1924 = vadd.f32 %v1699, %v1923
        %v1925 = vpop.f32.mrb[0].mxu0
        %1926 = vmatprep.mubr.f32.mxu0 0.0
        %1927 = vmatmul.mubr.f32.gmra.mrb[0].mxu0 %v775
        %v1928 = vpop.f32.mrb[0].mxu0
        %v1929 = vadd.f32 %v1704, %v1928
        %v1930 = vpop.f32.mrb[0].mxu0
        %1931 = vmatprep.mubr.f32.mxu0 0.0
        %1932 = vmatmul.mubr.f32.gmra.mrb[0].mxu0 %v776
        %v1933 = vpop.f32.mrb[0].mxu0
        %v1934 = vadd.f32 %v1709, %v1933
        %v1935 = vpop.f32.mrb[0].mxu0
        %1936 = vmatprep.mubr.f32.mxu0 0.0
        %1937 = vmatmul.mubr.f32.gmra.mrb[0].mxu0 %v777
        %v1938 = vpop.f32.mrb[0].mxu0
        %v1939 = vadd.f32 %v1714, %v1938
        %v1940 = vpop.f32.mrb[0].mxu0
        %1941 = vmatprep.mubr.f32.mxu0 0.0
        %1942 = vmatmul.mubr.f32.gmra.mrb[0].mxu0 %v778
        %v1943 = vpop.f32.mrb[0].mxu0
        %v1944 = vadd.f32 %v1719, %v1943
        %v1945 = vpop.f32.mrb[0].mxu0
        %1946 = vmatprep.mubr.f32.mxu0 0.0
        %1947 = vmatmul.mubr.f32.gmra.mrb[0].mxu0 %v779
        %v1948 = vpop.f32.mrb[0].mxu0
        %v1949 = vadd.f32 %v1724, %v1948
        %v1950 = vpop.f32.mrb[0].mxu0
        %1951 = vmatprep.mubr.f32.mxu0 0.0
        %1952 = vmatmul.mubr.f32.gmra.mrb[0].mxu0 %v780
        %v1953 = vpop.f32.mrb[0].mxu0
        %v1954 = vadd.f32 %v1729, %v1953
        %v1955 = vpop.f32.mrb[0].mxu0
        %1956 = vmatprep.mubr.f32.mxu0 0.0
        %1957 = vmatmul.mubr.f32.gmra.mrb[0].mxu0 %v781
        %v1958 = vpop.f32.mrb[0].mxu0
        %v1959 = vadd.f32 %v1734, %v1958
        %v1960 = vpop.f32.mrb[0].mxu0
        %1961 = vmatprep.mubr.f32.mxu0 0.0
        %1962 = vmatmul.mubr.f32.gmra.mrb[0].mxu0 %v782
        %v1963 = vpop.f32.mrb[0].mxu0
        %v1964 = vadd.f32 %v1739, %v1963
        %v1965 = vpop.f32.mrb[0].mxu0
        %1966 = vmatprep.mubr.f32.mxu0 0.0
        %1967 = vmatmul.mubr.f32.gmra.mrb[0].mxu0 %v783
        %v1968 = vpop.f32.mrb[0].mxu0
        %v1969 = vadd.f32 %v1744, %v1968
        %v1970 = vpop.f32.mrb[0].mxu0
        %1971 = vmatprep.mubr.f32.mxu0 0.0
        %1972 = vmatmul.mubr.f32.gmra.mrb[0].mxu0 %v784
        %v1973 = vpop.f32.mrb[0].mxu0
        %v1974 = vadd.f32 %v1749, %v1973
        %v1975 = vpop.f32.mrb[0].mxu0
        %1976 = vmatprep.mubr.f32.mxu0 0.0
        %1977 = vmatmul.mubr.f32.gmra.mrb[0].mxu0 %v785
        %v1978 = vpop.f32.mrb[0].mxu0
        %v1979 = vadd.f32 %v1754, %v1978
        %v1980 = vpop.f32.mrb[0].mxu0
        %1981 = vmatprep.mubr.f32.mxu0 0.0
        %1982 = vmatmul.mubr.f32.gmra.mrb[0].mxu0 %v786
        %v1983 = vpop.f32.mrb[0].mxu0
        %v1984 = vadd.f32 %v1759, %v1983
        %v1985 = vpop.f32.mrb[0].mxu0
        %1986 = vmatprep.mubr.f32.mxu0 0.0
        %1987 = vmatmul.mubr.f32.gmra.mrb[0].mxu0 %v787
        %v1988 = vpop.f32.mrb[0].mxu0
        %v1989 = vadd.f32 %v1764, %v1988
        %v1990 = vpop.f32.mrb[0].mxu0
        %1991 = vmatprep.mubr.f32.mxu0 0.0
        %1992 = vmatmul.mubr.f32.gmra.mrb[0].mxu0 %v788
        %v1993 = vpop.f32.mrb[0].mxu0
        %v1994 = vadd.f32 %v1769, %v1993
        %v1995 = vpop.f32.mrb[0].mxu0
        %1996 = vmatprep.mubr.f32.mxu0 0.0
        %1997 = vmatmul.mubr.f32.gmra.mrb[0].mxu0 %v789
        %v1998 = vpop.f32.mrb[0].mxu0
        %v1999 = vadd.f32 %v1774, %v1998
        %v2000 = vpop.f32.mrb[0].mxu0
        %2001 = vmatprep.mubr.f32.mxu0 0.0
        %2002 = vmatmul.mubr.f32.gmra.mrb[0].mxu0 %v790
        %v2003 = vpop.f32.mrb[0].mxu0
        %v2004 = vadd.f32 %v1779, %v2003
        %v2005 = vpop.f32.mrb[0].mxu0
        %2006 = vmatprep.mubr.f32.mxu0 0.0
        %2007 = vmatmul.mubr.f32.gmra.mrb[0].mxu0 %v791
        %v2008 = vpop.f32.mrb[0].mxu0
        %v2009 = vadd.f32 %v1784, %v2008
        %v2010 = vpop.f32.mrb[0].mxu0
        %2011 = vmatprep.mubr.f32.mxu0 0.0
        %2012 = vmatmul.mubr.f32.gmra.mrb[0].mxu0 %v792
        %v2013 = vpop.f32.mrb[0].mxu0
        %v2014 = vadd.f32 %v1789, %v2013
        %v2015 = vpop.f32.mrb[0].mxu0
        %2016 = vmatprep.mubr.f32.mxu0 0.0
        %2017 = vmatmul.mubr.f32.gmra.mrb[0].mxu0 %v793
        %v2018 = vpop.f32.mrb[0].mxu0
        %v2019 = vadd.f32 %v1794, %v2018
        %v2020 = vpop.f32.mrb[0].mxu0
        %2021 = vmatprep.mubr.f32.mxu0 0.0
        %2022 = vmatmul.mubr.f32.gmra.mrb[0].mxu0 %v794
        %v2023 = vpop.f32.mrb[0].mxu0
        %v2024 = vadd.f32 %v1799, %v2023
        %v2025 = vpop.f32.mrb[0].mxu0
        %2026 = vmatprep.mubr.f32.mxu0 0.0
        %2027 = vmatmul.mubr.f32.gmra.mrb[0].mxu0 %v795
        %v2028 = vpop.f32.mrb[0].mxu0
        %v2029 = vadd.f32 %v1804, %v2028
        %v2030 = vpop.f32.mrb[0].mxu0
        %2031 = vmatprep.mubr.f32.mxu0 0.0
        %2032 = vmatmul.mubr.f32.gmra.mrb[0].mxu0 %v796
        %v2033 = vpop.f32.mrb[0].mxu0
        %v2034 = vadd.f32 %v1809, %v2033
        %v2035 = vpop.f32.mrb[0].mxu0
        %2036 = vmatprep.mubr.f32.mxu0 0.0
        %2037 = vmatmul.mubr.f32.gmra.mrb[0].mxu0 %v797
        %v2038 = vpop.f32.mrb[0].mxu0
        %v2039 = vadd.f32 %v1814, %v2038
        %v2040 = vpop.f32.mrb[0].mxu0
        %2041 = vmatprep.mubr.f32.mxu0 0.0
        %2042 = vmatmul.mubr.f32.gmra.mrb[0].mxu0 %v798
        %v2043 = vpop.f32.mrb[0].mxu0
        %v2044 = vadd.f32 %v1819, %v2043
        %v2045 = vpop.f32.mrb[0].mxu0
        %2046 = vmatprep.mubr.f32.mxu0 0.0
        %2047 = vmatmul.mubr.f32.gmra.mrb[0].mxu0 %v799
        %v2048 = vpop.f32.mrb[0].mxu0
        %v2049 = vadd.f32 %v1824, %v2048
        %v2050 = vpop.f32.mrb[0].mxu0
        %2051 = vmatprep.mubr.f32.mxu0 0.0
        %2052 = vmatmul.mubr.f32.gmra.mrb[0].mxu0 %v800
        %v2053 = vpop.f32.mrb[0].mxu0
        %v2054 = vadd.f32 %v1829, %v2053
        %v2055 = vpop.f32.mrb[0].mxu0
        %2056 = vmatprep.mubr.f32.mxu0 0.0
        %2057 = vmatmul.mubr.f32.gmra.mrb[0].mxu0 %v801
        %v2058 = vpop.f32.mrb[0].mxu0
        %v2059 = vadd.f32 %v1834, %v2058
        %v2060 = vpop.f32.mrb[0].mxu0
        %2061 = vmatprep.mubr.f32.mxu0 0.0
        %2062 = vmatmul.mubr.f32.gmra.mrb[0].mxu0 %v802
        %v2063 = vpop.f32.mrb[0].mxu0
        %v2064 = vadd.f32 %v1839, %v2063
        %v2065 = vpop.f32.mrb[0].mxu0
        %2066 = vmatprep.mubr.f32.mxu0 0.0
        %2067 = vmatmul.mubr.f32.gmra.mrb[0].mxu0 %v803
        %v2068 = vpop.f32.mrb[0].mxu0
        %v2069 = vadd.f32 %v1844, %v2068
        %v2070 = vpop.f32.mrb[0].mxu0
        %2071 = vmatprep.mubr.f32.mxu0 0.0
        %2072 = vmatmul.mubr.f32.gmra.mrb[0].mxu0 %v804
        %v2073 = vpop.f32.mrb[0].mxu0
        %v2074 = vadd.f32 %v1849, %v2073
        %v2075 = vpop.f32.mrb[0].mxu0
        %2076 = vmatprep.mubr.f32.mxu0 0.0
        %2077 = vmatmul.mubr.f32.gmra.mrb[0].mxu0 %v805
        %v2078 = vpop.f32.mrb[0].mxu0
        %v2079 = vadd.f32 %v1854, %v2078
        %v2080 = vpop.f32.mrb[0].mxu0
        %2081 = vdwg.mxu0
        %v2082 = vmax.f32 %v1924, 0.0
        %v2083 = vmax.f32 %v1929, 0.0
        %v2084 = vmax.f32 %v1934, 0.0
        %v2085 = vmax.f32 %v1939, 0.0
        %v2086 = vmax.f32 %v1944, 0.0
        %v2087 = vmax.f32 %v1949, 0.0
        %v2088 = vmax.f32 %v1954, 0.0
        %v2089 = vmax.f32 %v1959, 0.0
        %v2090 = vmax.f32 %v1964, 0.0
        %v2091 = vmax.f32 %v1969, 0.0
        %v2092 = vmax.f32 %v1974, 0.0
        %v2093 = vmax.f32 %v1979, 0.0
        %v2094 = vmax.f32 %v1984, 0.0
        %v2095 = vmax.f32 %v1989, 0.0
        %v2096 = vmax.f32 %v1994, 0.0
        %v2097 = vmax.f32 %v1999, 0.0
        %v2098 = vmax.f32 %v2004, 0.0
        %v2099 = vmax.f32 %v2009, 0.0
        %v2100 = vmax.f32 %v2014, 0.0
        %v2101 = vmax.f32 %v2019, 0.0
        %v2102 = vmax.f32 %v2024, 0.0
        %v2103 = vmax.f32 %v2029, 0.0
        %v2104 = vmax.f32 %v2034, 0.0
        %v2105 = vmax.f32 %v2039, 0.0
        %v2106 = vmax.f32 %v2044, 0.0
        %v2107 = vmax.f32 %v2049, 0.0
        %v2108 = vmax.f32 %v2054, 0.0
        %v2109 = vmax.f32 %v2059, 0.0
        %v2110 = vmax.f32 %v2064, 0.0
        %v2111 = vmax.f32 %v2069, 0.0
        %v2112 = vmax.f32 %v2074, 0.0
        %v2113 = vmax.f32 %v2079, 0.0
        %2114 = vst [vmem:[%s484 + $0x8] sm:$0xff] %v2082
        %2115 = vst [vmem:[%s484 + $0x10] sm:$0xff] %v2083
        %2116 = vst [vmem:[%s484 + $0x28] sm:$0xff] %v2084
        %2117 = vst [vmem:[%s484 + $0x30] sm:$0xff] %v2085
        %2118 = vst [vmem:[%s484 + $0x48] sm:$0xff] %v2086
        %2119 = vst [vmem:[%s484 + $0x50] sm:$0xff] %v2087
        %2120 = vst [vmem:[%s484 + $0x68] sm:$0xff] %v2088
        %2121 = vst [vmem:[%s484 + $0x70] sm:$0xff] %v2089
        %2122 = vst [vmem:[%s484 + $0x88] sm:$0xff] %v2090
        %2123 = vst [vmem:[%s484 + $0x90] sm:$0xff] %v2091
        %2124 = vst [vmem:[%s484 + $0xa8] sm:$0xff] %v2092
        %2125 = vst [vmem:[%s484 + $0xb0] sm:$0xff] %v2093
        %2126 = vst [vmem:[%s484 + $0xc8] sm:$0xff] %v2094
        %2127 = vst [vmem:[%s484 + $0xd0] sm:$0xff] %v2095
        %2128 = vst [vmem:[%s484 + $0xe8] sm:$0xff] %v2096
        %2129 = vst [vmem:[%s484 + $0xf0] sm:$0xff] %v2097
        %2130 = vst [vmem:[%s484 + $0x108] sm:$0xff] %v2098
        %2131 = vst [vmem:[%s484 + $0x110] sm:$0xff] %v2099
        %2132 = vst [vmem:[%s484 + $0x128] sm:$0xff] %v2100
        %2133 = vst [vmem:[%s484 + $0x130] sm:$0xff] %v2101
        %2134 = vst [vmem:[%s484 + $0x148] sm:$0xff] %v2102
        %2135 = vst [vmem:[%s484 + $0x150] sm:$0xff] %v2103
        %2136 = vst [vmem:[%s484 + $0x168] sm:$0xff] %v2104
        %2137 = vst [vmem:[%s484 + $0x170] sm:$0xff] %v2105
        %2138 = vst [vmem:[%s484 + $0x188] sm:$0xff] %v2106
        %2139 = vst [vmem:[%s484 + $0x190] sm:$0xff] %v2107
        %2140 = vst [vmem:[%s484 + $0x1a8] sm:$0xff] %v2108
        %2141 = vst [vmem:[%s484 + $0x1b0] sm:$0xff] %v2109
        %2142 = vst [vmem:[%s484 + $0x1c8] sm:$0xff] %v2110
        %2143 = vst [vmem:[%s484 + $0x1d0] sm:$0xff] %v2111
        %2144 = vst [vmem:[%s484 + $0x1e8] sm:$0xff] %v2112
        %2145 = vst [vmem:[%s484 + $0x1f0] sm:$0xff] %v2113
        %v2146 = vld [vmem:[#allocation2 + $0x7] sm:$0xff]
        %v2147 = vld [vmem:[#allocation2 + $0xf] sm:$0xff]
        %v2148 = vld [vmem:[#allocation2 + $0x27] sm:$0xff]
        %v2149 = vld [vmem:[#allocation2 + $0x2f] sm:$0xff]
        %v2150 = vld [vmem:[#allocation2 + $0x47] sm:$0xff]
        %v2151 = vld [vmem:[#allocation2 + $0x4f] sm:$0xff]
        %v2152 = vld [vmem:[#allocation2 + $0x67] sm:$0xff]
        %v2153 = vld [vmem:[#allocation2 + $0x6f] sm:$0xff]
        %v2154 = vld [vmem:[#allocation2 + $0x87] sm:$0xff]
        %v2155 = vld [vmem:[#allocation2 + $0x8f] sm:$0xff]
        %v2156 = vld [vmem:[#allocation2 + $0xa7] sm:$0xff]
        %v2157 = vld [vmem:[#allocation2 + $0xaf] sm:$0xff]
        %v2158 = vld [vmem:[#allocation2 + $0xc7] sm:$0xff]
        %v2159 = vld [vmem:[#allocation2 + $0xcf] sm:$0xff]
        %v2160 = vld [vmem:[#allocation2 + $0xe7] sm:$0xff]
        %v2161 = vld [vmem:[#allocation2 + $0xef] sm:$0xff]
        %v2162 = vld [vmem:[#allocation2 + $0x107] sm:$0xff]
        %v2163 = vld [vmem:[#allocation2 + $0x10f] sm:$0xff]
        %v2164 = vld [vmem:[#allocation2 + $0x127] sm:$0xff]
        %v2165 = vld [vmem:[#allocation2 + $0x12f] sm:$0xff]
        %v2166 = vld [vmem:[#allocation2 + $0x147] sm:$0xff]
        %v2167 = vld [vmem:[#allocation2 + $0x14f] sm:$0xff]
        %v2168 = vld [vmem:[#allocation2 + $0x167] sm:$0xff]
        %v2169 = vld [vmem:[#allocation2 + $0x16f] sm:$0xff]
        %v2170 = vld [vmem:[#allocation2 + $0x187] sm:$0xff]
        %v2171 = vld [vmem:[#allocation2 + $0x18f] sm:$0xff]
        %v2172 = vld [vmem:[#allocation2 + $0x1a7] sm:$0xff]
        %v2173 = vld [vmem:[#allocation2 + $0x1af] sm:$0xff]
        %v2174 = vld [vmem:[#allocation2 + $0x1c7] sm:$0xff]
        %v2175 = vld [vmem:[#allocation2 + $0x1cf] sm:$0xff]
        %v2176 = vld [vmem:[#allocation2 + $0x1e7] sm:$0xff]
        %v2177 = vld [vmem:[#allocation2 + $0x1ef] sm:$0xff]
        %v2178 = vld [vmem:[#allocation2 + $0x8] sm:$0xff]
        %v2179 = vld [vmem:[#allocation2 + $0x10] sm:$0xff]
        %v2180 = vld [vmem:[#allocation2 + $0x28] sm:$0xff]
        %v2181 = vld [vmem:[#allocation2 + $0x30] sm:$0xff]
        %v2182 = vld [vmem:[#allocation2 + $0x48] sm:$0xff]
        %v2183 = vld [vmem:[#allocation2 + $0x50] sm:$0xff]
        %v2184 = vld [vmem:[#allocation2 + $0x68] sm:$0xff]
        %v2185 = vld [vmem:[#allocation2 + $0x70] sm:$0xff]
        %v2186 = vld [vmem:[#allocation2 + $0x88] sm:$0xff]
        %v2187 = vld [vmem:[#allocation2 + $0x90] sm:$0xff]
        %v2188 = vld [vmem:[#allocation2 + $0xa8] sm:$0xff]
        %v2189 = vld [vmem:[#allocation2 + $0xb0] sm:$0xff]
        %v2190 = vld [vmem:[#allocation2 + $0xc8] sm:$0xff]
        %v2191 = vld [vmem:[#allocation2 + $0xd0] sm:$0xff]
        %v2192 = vld [vmem:[#allocation2 + $0xe8] sm:$0xff]
        %v2193 = vld [vmem:[#allocation2 + $0xf0] sm:$0xff]
        %v2194 = vld [vmem:[#allocation2 + $0x108] sm:$0xff]
        %v2195 = vld [vmem:[#allocation2 + $0x110] sm:$0xff]
        %v2196 = vld [vmem:[#allocation2 + $0x128] sm:$0xff]
        %v2197 = vld [vmem:[#allocation2 + $0x130] sm:$0xff]
        %v2198 = vld [vmem:[#allocation2 + $0x148] sm:$0xff]
        %v2199 = vld [vmem:[#allocation2 + $0x150] sm:$0xff]
        %v2200 = vld [vmem:[#allocation2 + $0x168] sm:$0xff]
        %v2201 = vld [vmem:[#allocation2 + $0x170] sm:$0xff]
        %v2202 = vld [vmem:[#allocation2 + $0x188] sm:$0xff]
        %v2203 = vld [vmem:[#allocation2 + $0x190] sm:$0xff]
        %v2204 = vld [vmem:[#allocation2 + $0x1a8] sm:$0xff]
        %v2205 = vld [vmem:[#allocation2 + $0x1b0] sm:$0xff]
        %v2206 = vld [vmem:[#allocation2 + $0x1c8] sm:$0xff]
        %v2207 = vld [vmem:[#allocation2 + $0x1d0] sm:$0xff]
        %v2208 = vld [vmem:[#allocation2 + $0x1e8] sm:$0xff]
        %v2209 = vld [vmem:[#allocation2 + $0x1f0] sm:$0xff]
        %v2210 = vld [vmem:[#allocation2 + $0x9] sm:$0xff]
        %v2211 = vld [vmem:[#allocation2 + $0x11] sm:$0xff]
        %v2212 = vld [vmem:[#allocation2 + $0x29] sm:$0xff]
        %v2213 = vld [vmem:[#allocation2 + $0x31] sm:$0xff]
        %v2214 = vld [vmem:[#allocation2 + $0x49] sm:$0xff]
        %v2215 = vld [vmem:[#allocation2 + $0x51] sm:$0xff]
        %v2216 = vld [vmem:[#allocation2 + $0x69] sm:$0xff]
        %v2217 = vld [vmem:[#allocation2 + $0x71] sm:$0xff]
        %v2218 = vld [vmem:[#allocation2 + $0x89] sm:$0xff]
        %v2219 = vld [vmem:[#allocation2 + $0x91] sm:$0xff]
        %v2220 = vld [vmem:[#allocation2 + $0xa9] sm:$0xff]
        %v2221 = vld [vmem:[#allocation2 + $0xb1] sm:$0xff]
        %v2222 = vld [vmem:[#allocation2 + $0xc9] sm:$0xff]
        %v2223 = vld [vmem:[#allocation2 + $0xd1] sm:$0xff]
        %v2224 = vld [vmem:[#allocation2 + $0xe9] sm:$0xff]
        %v2225 = vld [vmem:[#allocation2 + $0xf1] sm:$0xff]
        %v2226 = vld [vmem:[#allocation2 + $0x109] sm:$0xff]
        %v2227 = vld [vmem:[#allocation2 + $0x111] sm:$0xff]
        %v2228 = vld [vmem:[#allocation2 + $0x129] sm:$0xff]
        %v2229 = vld [vmem:[#allocation2 + $0x131] sm:$0xff]
        %v2230 = vld [vmem:[#allocation2 + $0x149] sm:$0xff]
        %v2231 = vld [vmem:[#allocation2 + $0x151] sm:$0xff]
        %v2232 = vld [vmem:[#allocation2 + $0x169] sm:$0xff]
        %v2233 = vld [vmem:[#allocation2 + $0x171] sm:$0xff]
        %v2234 = vld [vmem:[#allocation2 + $0x189] sm:$0xff]
        %v2235 = vld [vmem:[#allocation2 + $0x191] sm:$0xff]
        %v2236 = vld [vmem:[#allocation2 + $0x1a9] sm:$0xff]
        %v2237 = vld [vmem:[#allocation2 + $0x1b1] sm:$0xff]
        %v2238 = vld [vmem:[#allocation2 + $0x1c9] sm:$0xff]
        %v2239 = vld [vmem:[#allocation2 + $0x1d1] sm:$0xff]
        %v2240 = vld [vmem:[#allocation2 + $0x1e9] sm:$0xff]
        %v2241 = vld [vmem:[#allocation2 + $0x1f1] sm:$0xff]
        %v2242 = vld [vmem:[%s484 + $0x7] sm:$0xff]
        %v2243 = vld [vmem:[%s484 + $0xf] sm:$0xff]
        %v2244 = vld [vmem:[%s484 + $0x27] sm:$0xff]
        %v2245 = vld [vmem:[%s484 + $0x2f] sm:$0xff]
        %v2246 = vld [vmem:[%s484 + $0x47] sm:$0xff]
        %v2247 = vld [vmem:[%s484 + $0x4f] sm:$0xff]
        %v2248 = vld [vmem:[%s484 + $0x67] sm:$0xff]
        %v2249 = vld [vmem:[%s484 + $0x6f] sm:$0xff]
        %v2250 = vld [vmem:[%s484 + $0x87] sm:$0xff]
        %v2251 = vld [vmem:[%s484 + $0x8f] sm:$0xff]
        %v2252 = vld [vmem:[%s484 + $0xa7] sm:$0xff]
        %v2253 = vld [vmem:[%s484 + $0xaf] sm:$0xff]
        %v2254 = vld [vmem:[%s484 + $0xc7] sm:$0xff]
        %v2255 = vld [vmem:[%s484 + $0xcf] sm:$0xff]
        %v2256 = vld [vmem:[%s484 + $0xe7] sm:$0xff]
        %v2257 = vld [vmem:[%s484 + $0xef] sm:$0xff]
        %v2258 = vld [vmem:[%s484 + $0x107] sm:$0xff]
        %v2259 = vld [vmem:[%s484 + $0x10f] sm:$0xff]
        %v2260 = vld [vmem:[%s484 + $0x127] sm:$0xff]
        %v2261 = vld [vmem:[%s484 + $0x12f] sm:$0xff]
        %v2262 = vld [vmem:[%s484 + $0x147] sm:$0xff]
        %v2263 = vld [vmem:[%s484 + $0x14f] sm:$0xff]
        %v2264 = vld [vmem:[%s484 + $0x167] sm:$0xff]
        %v2265 = vld [vmem:[%s484 + $0x16f] sm:$0xff]
        %v2266 = vld [vmem:[%s484 + $0x187] sm:$0xff]
        %v2267 = vld [vmem:[%s484 + $0x18f] sm:$0xff]
        %v2268 = vld [vmem:[%s484 + $0x1a7] sm:$0xff]
        %v2269 = vld [vmem:[%s484 + $0x1af] sm:$0xff]
        %v2270 = vld [vmem:[%s484 + $0x1c7] sm:$0xff]
        %v2271 = vld [vmem:[%s484 + $0x1cf] sm:$0xff]
        %v2272 = vld [vmem:[%s484 + $0x1e7] sm:$0xff]
        %v2273 = vld [vmem:[%s484 + $0x1ef] sm:$0xff]
        %v2274 = vld [vmem:[%s484 + $0x8] sm:$0xff]
        %v2275 = vld [vmem:[%s484 + $0x10] sm:$0xff]
        %v2276 = vld [vmem:[%s484 + $0x28] sm:$0xff]
        %v2277 = vld [vmem:[%s484 + $0x30] sm:$0xff]
        %v2278 = vld [vmem:[%s484 + $0x48] sm:$0xff]
        %v2279 = vld [vmem:[%s484 + $0x50] sm:$0xff]
        %v2280 = vld [vmem:[%s484 + $0x68] sm:$0xff]
        %v2281 = vld [vmem:[%s484 + $0x70] sm:$0xff]
        %v2282 = vld [vmem:[%s484 + $0x88] sm:$0xff]
        %v2283 = vld [vmem:[%s484 + $0x90] sm:$0xff]
        %v2284 = vld [vmem:[%s484 + $0xa8] sm:$0xff]
        %v2285 = vld [vmem:[%s484 + $0xb0] sm:$0xff]
        %v2286 = vld [vmem:[%s484 + $0xc8] sm:$0xff]
        %v2287 = vld [vmem:[%s484 + $0xd0] sm:$0xff]
        %v2288 = vld [vmem:[%s484 + $0xe8] sm:$0xff]
        %v2289 = vld [vmem:[%s484 + $0xf0] sm:$0xff]
        %v2290 = vld [vmem:[%s484 + $0x108] sm:$0xff]
        %v2291 = vld [vmem:[%s484 + $0x110] sm:$0xff]
        %v2292 = vld [vmem:[%s484 + $0x128] sm:$0xff]
        %v2293 = vld [vmem:[%s484 + $0x130] sm:$0xff]
        %v2294 = vld [vmem:[%s484 + $0x148] sm:$0xff]
        %v2295 = vld [vmem:[%s484 + $0x150] sm:$0xff]
        %v2296 = vld [vmem:[%s484 + $0x168] sm:$0xff]
        %v2297 = vld [vmem:[%s484 + $0x170] sm:$0xff]
        %v2298 = vld [vmem:[%s484 + $0x188] sm:$0xff]
        %v2299 = vld [vmem:[%s484 + $0x190] sm:$0xff]
        %v2300 = vld [vmem:[%s484 + $0x1a8] sm:$0xff]
        %v2301 = vld [vmem:[%s484 + $0x1b0] sm:$0xff]
        %v2302 = vld [vmem:[%s484 + $0x1c8] sm:$0xff]
        %v2303 = vld [vmem:[%s484 + $0x1d0] sm:$0xff]
        %v2304 = vld [vmem:[%s484 + $0x1e8] sm:$0xff]
        %v2305 = vld [vmem:[%s484 + $0x1f0] sm:$0xff]
        %v2306 = vld [vmem:[%s484 + $0x9] sm:$0xff]
        %v2307 = vld [vmem:[%s484 + $0x11] sm:$0xff]
        %v2308 = vld [vmem:[%s484 + $0x29] sm:$0xff]
        %v2309 = vld [vmem:[%s484 + $0x31] sm:$0xff]
        %v2310 = vld [vmem:[%s484 + $0x49] sm:$0xff]
        %v2311 = vld [vmem:[%s484 + $0x51] sm:$0xff]
        %v2312 = vld [vmem:[%s484 + $0x69] sm:$0xff]
        %v2313 = vld [vmem:[%s484 + $0x71] sm:$0xff]
        %v2314 = vld [vmem:[%s484 + $0x89] sm:$0xff]
        %v2315 = vld [vmem:[%s484 + $0x91] sm:$0xff]
        %v2316 = vld [vmem:[%s484 + $0xa9] sm:$0xff]
        %v2317 = vld [vmem:[%s484 + $0xb1] sm:$0xff]
        %v2318 = vld [vmem:[%s484 + $0xc9] sm:$0xff]
        %v2319 = vld [vmem:[%s484 + $0xd1] sm:$0xff]
        %v2320 = vld [vmem:[%s484 + $0xe9] sm:$0xff]
        %v2321 = vld [vmem:[%s484 + $0xf1] sm:$0xff]
        %v2322 = vld [vmem:[%s484 + $0x109] sm:$0xff]
        %v2323 = vld [vmem:[%s484 + $0x111] sm:$0xff]
        %v2324 = vld [vmem:[%s484 + $0x129] sm:$0xff]
        %v2325 = vld [vmem:[%s484 + $0x131] sm:$0xff]
        %v2326 = vld [vmem:[%s484 + $0x149] sm:$0xff]
        %v2327 = vld [vmem:[%s484 + $0x151] sm:$0xff]
        %v2328 = vld [vmem:[%s484 + $0x169] sm:$0xff]
        %v2329 = vld [vmem:[%s484 + $0x171] sm:$0xff]
        %v2330 = vld [vmem:[%s484 + $0x189] sm:$0xff]
        %v2331 = vld [vmem:[%s484 + $0x191] sm:$0xff]
        %v2332 = vld [vmem:[%s484 + $0x1a9] sm:$0xff]
        %v2333 = vld [vmem:[%s484 + $0x1b1] sm:$0xff]
        %v2334 = vld [vmem:[%s484 + $0x1c9] sm:$0xff]
        %v2335 = vld [vmem:[%s484 + $0x1d1] sm:$0xff]
        %v2336 = vld [vmem:[%s484 + $0x1e9] sm:$0xff]
        %v2337 = vld [vmem:[%s484 + $0x1f1] sm:$0xff]
        %v2338 = vld [vmem:[%s709 + $0x7] sm:$0xff]
        %v2339 = vld [vmem:[%s709 + $0xf] sm:$0xff]
        %v2340 = vld [vmem:[%s709 + $0x27] sm:$0xff]
        %v2341 = vld [vmem:[%s709 + $0x2f] sm:$0xff]
        %v2342 = vld [vmem:[%s709 + $0x47] sm:$0xff]
        %v2343 = vld [vmem:[%s709 + $0x4f] sm:$0xff]
        %v2344 = vld [vmem:[%s709 + $0x67] sm:$0xff]
        %v2345 = vld [vmem:[%s709 + $0x6f] sm:$0xff]
        %v2346 = vld [vmem:[%s709 + $0x87] sm:$0xff]
        %v2347 = vld [vmem:[%s709 + $0x8f] sm:$0xff]
        %v2348 = vld [vmem:[%s709 + $0xa7] sm:$0xff]
        %v2349 = vld [vmem:[%s709 + $0xaf] sm:$0xff]
        %v2350 = vld [vmem:[%s709 + $0xc7] sm:$0xff]
        %v2351 = vld [vmem:[%s709 + $0xcf] sm:$0xff]
        %v2352 = vld [vmem:[%s709 + $0xe7] sm:$0xff]
        %v2353 = vld [vmem:[%s709 + $0xef] sm:$0xff]
        %v2354 = vld [vmem:[%s709 + $0x107] sm:$0xff]
        %v2355 = vld [vmem:[%s709 + $0x10f] sm:$0xff]
        %v2356 = vld [vmem:[%s709 + $0x127] sm:$0xff]
        %v2357 = vld [vmem:[%s709 + $0x12f] sm:$0xff]
        %v2358 = vld [vmem:[%s709 + $0x147] sm:$0xff]
        %v2359 = vld [vmem:[%s709 + $0x14f] sm:$0xff]
        %v2360 = vld [vmem:[%s709 + $0x167] sm:$0xff]
        %v2361 = vld [vmem:[%s709 + $0x16f] sm:$0xff]
        %v2362 = vld [vmem:[%s709 + $0x187] sm:$0xff]
        %v2363 = vld [vmem:[%s709 + $0x18f] sm:$0xff]
        %v2364 = vld [vmem:[%s709 + $0x1a7] sm:$0xff]
        %v2365 = vld [vmem:[%s709 + $0x1af] sm:$0xff]
        %v2366 = vld [vmem:[%s709 + $0x1c7] sm:$0xff]
        %v2367 = vld [vmem:[%s709 + $0x1cf] sm:$0xff]
        %v2368 = vld [vmem:[%s709 + $0x1e7] sm:$0xff]
        %v2369 = vld [vmem:[%s709 + $0x1ef] sm:$0xff]
        %v2370 = vld [vmem:[%s709 + $0x8] sm:$0xff]
        %v2371 = vld [vmem:[%s709 + $0x10] sm:$0xff]
        %v2372 = vld [vmem:[%s709 + $0x28] sm:$0xff]
        %v2373 = vld [vmem:[%s709 + $0x30] sm:$0xff]
        %v2374 = vld [vmem:[%s709 + $0x48] sm:$0xff]
        %v2375 = vld [vmem:[%s709 + $0x50] sm:$0xff]
        %v2376 = vld [vmem:[%s709 + $0x68] sm:$0xff]
        %v2377 = vld [vmem:[%s709 + $0x70] sm:$0xff]
        %v2378 = vld [vmem:[%s709 + $0x88] sm:$0xff]
        %v2379 = vld [vmem:[%s709 + $0x90] sm:$0xff]
        %v2380 = vld [vmem:[%s709 + $0xa8] sm:$0xff]
        %v2381 = vld [vmem:[%s709 + $0xb0] sm:$0xff]
        %v2382 = vld [vmem:[%s709 + $0xc8] sm:$0xff]
        %v2383 = vld [vmem:[%s709 + $0xd0] sm:$0xff]
        %v2384 = vld [vmem:[%s709 + $0xe8] sm:$0xff]
        %v2385 = vld [vmem:[%s709 + $0xf0] sm:$0xff]
        %v2386 = vld [vmem:[%s709 + $0x108] sm:$0xff]
        %v2387 = vld [vmem:[%s709 + $0x110] sm:$0xff]
        %v2388 = vld [vmem:[%s709 + $0x128] sm:$0xff]
        %v2389 = vld [vmem:[%s709 + $0x130] sm:$0xff]
        %v2390 = vld [vmem:[%s709 + $0x148] sm:$0xff]
        %v2391 = vld [vmem:[%s709 + $0x150] sm:$0xff]
        %v2392 = vld [vmem:[%s709 + $0x168] sm:$0xff]
        %v2393 = vld [vmem:[%s709 + $0x170] sm:$0xff]
        %v2394 = vld [vmem:[%s709 + $0x188] sm:$0xff]
        %v2395 = vld [vmem:[%s709 + $0x190] sm:$0xff]
        %v2396 = vld [vmem:[%s709 + $0x1a8] sm:$0xff]
        %v2397 = vld [vmem:[%s709 + $0x1b0] sm:$0xff]
        %v2398 = vld [vmem:[%s709 + $0x1c8] sm:$0xff]
        %v2399 = vld [vmem:[%s709 + $0x1d0] sm:$0xff]
        %v2400 = vld [vmem:[%s709 + $0x1e8] sm:$0xff]
        %v2401 = vld [vmem:[%s709 + $0x1f0] sm:$0xff]
        %v2402 = vld [vmem:[%s709 + $0x9] sm:$0xff]
        %v2403 = vld [vmem:[%s709 + $0x11] sm:$0xff]
        %v2404 = vld [vmem:[%s709 + $0x29] sm:$0xff]
        %v2405 = vld [vmem:[%s709 + $0x31] sm:$0xff]
        %v2406 = vld [vmem:[%s709 + $0x49] sm:$0xff]
        %v2407 = vld [vmem:[%s709 + $0x51] sm:$0xff]
        %v2408 = vld [vmem:[%s709 + $0x69] sm:$0xff]
        %v2409 = vld [vmem:[%s709 + $0x71] sm:$0xff]
        %v2410 = vld [vmem:[%s709 + $0x89] sm:$0xff]
        %v2411 = vld [vmem:[%s709 + $0x91] sm:$0xff]
        %v2412 = vld [vmem:[%s709 + $0xa9] sm:$0xff]
        %v2413 = vld [vmem:[%s709 + $0xb1] sm:$0xff]
        %v2414 = vld [vmem:[%s709 + $0xc9] sm:$0xff]
        %v2415 = vld [vmem:[%s709 + $0xd1] sm:$0xff]
        %v2416 = vld [vmem:[%s709 + $0xe9] sm:$0xff]
        %v2417 = vld [vmem:[%s709 + $0xf1] sm:$0xff]
        %v2418 = vld [vmem:[%s709 + $0x109] sm:$0xff]
        %v2419 = vld [vmem:[%s709 + $0x111] sm:$0xff]
        %v2420 = vld [vmem:[%s709 + $0x129] sm:$0xff]
        %v2421 = vld [vmem:[%s709 + $0x131] sm:$0xff]
        %v2422 = vld [vmem:[%s709 + $0x149] sm:$0xff]
        %v2423 = vld [vmem:[%s709 + $0x151] sm:$0xff]
        %v2424 = vld [vmem:[%s709 + $0x169] sm:$0xff]
        %v2425 = vld [vmem:[%s709 + $0x171] sm:$0xff]
        %v2426 = vld [vmem:[%s709 + $0x189] sm:$0xff]
        %v2427 = vld [vmem:[%s709 + $0x191] sm:$0xff]
        %v2428 = vld [vmem:[%s709 + $0x1a9] sm:$0xff]
        %v2429 = vld [vmem:[%s709 + $0x1b1] sm:$0xff]
        %v2430 = vld [vmem:[%s709 + $0x1c9] sm:$0xff]
        %v2431 = vld [vmem:[%s709 + $0x1d1] sm:$0xff]
        %v2432 = vld [vmem:[%s709 + $0x1e9] sm:$0xff]
        %v2433 = vld [vmem:[%s709 + $0x1f1] sm:$0xff]
        %v2434 = vld [vmem:[#allocation8] sm:$0xff]
        %v2435 = vld [vmem:[#allocation8 + $0x8] sm:$0xff]
        %v2436 = vld [vmem:[#allocation8 + $0x10] sm:$0xff]
        %v2437 = vld [vmem:[#allocation8 + $0x18] sm:$0xff]
        %v2438 = vld [vmem:[#allocation8 + $0x20] sm:$0xff]
        %v2439 = vld [vmem:[#allocation8 + $0x28] sm:$0xff]
        %v2440 = vld [vmem:[#allocation8 + $0x30] sm:$0xff]
        %v2441 = vld [vmem:[#allocation8 + $0x38] sm:$0xff]
        %v2442 = vld [vmem:[#allocation8 + $0x40] sm:$0xff]
        %v2443 = vld [vmem:[#allocation8 + $0x48] sm:$0xff]
        %v2444 = vld [vmem:[#allocation8 + $0x50] sm:$0xff]
        %v2445 = vld [vmem:[#allocation8 + $0x58] sm:$0xff]
        %v2446 = vld [vmem:[#allocation8 + $0x60] sm:$0xff]
        %v2447 = vld [vmem:[#allocation8 + $0x68] sm:$0xff]
        %v2448 = vld [vmem:[#allocation8 + $0x70] sm:$0xff]
        %v2449 = vld [vmem:[#allocation8 + $0x78] sm:$0xff]
        %v2450 = vld [vmem:[#allocation8 + $0x80] sm:$0xff]
        %v2451 = vld [vmem:[#allocation8 + $0x88] sm:$0xff]
        %v2452 = vld [vmem:[#allocation8 + $0x90] sm:$0xff]
        %v2453 = vld [vmem:[#allocation8 + $0x98] sm:$0xff]
        %v2454 = vld [vmem:[#allocation8 + $0xa0] sm:$0xff]
        %v2455 = vld [vmem:[#allocation8 + $0xa8] sm:$0xff]
        %v2456 = vld [vmem:[#allocation8 + $0xb0] sm:$0xff]
        %v2457 = vld [vmem:[#allocation8 + $0xb8] sm:$0xff]
        %v2458 = vld [vmem:[#allocation8 + $0xc0] sm:$0xff]
        %v2459 = vld [vmem:[#allocation8 + $0xc8] sm:$0xff]
        %v2460 = vld [vmem:[#allocation8 + $0xd0] sm:$0xff]
        %v2461 = vld [vmem:[#allocation8 + $0xd8] sm:$0xff]
        %v2462 = vld [vmem:[#allocation8 + $0xe0] sm:$0xff]
        %v2463 = vld [vmem:[#allocation8 + $0xe8] sm:$0xff]
        %v2464 = vld [vmem:[#allocation8 + $0xf0] sm:$0xff]
        %v2465 = vld [vmem:[#allocation8 + $0xf8] sm:$0xff]
        %v2466 = vld [vmem:[#allocation8 + $0x100] sm:$0xff]
        %v2467 = vld [vmem:[#allocation8 + $0x108] sm:$0xff]
        %v2468 = vld [vmem:[#allocation8 + $0x110] sm:$0xff]
        %v2469 = vld [vmem:[#allocation8 + $0x118] sm:$0xff]
        %v2470 = vld [vmem:[#allocation8 + $0x120] sm:$0xff]
        %v2471 = vld [vmem:[#allocation8 + $0x128] sm:$0xff]
        %v2472 = vld [vmem:[#allocation8 + $0x130] sm:$0xff]
        %v2473 = vld [vmem:[#allocation8 + $0x138] sm:$0xff]
        %v2474 = vld [vmem:[#allocation8 + $0x140] sm:$0xff]
        %v2475 = vld [vmem:[#allocation8 + $0x148] sm:$0xff]
        %v2476 = vld [vmem:[#allocation8 + $0x150] sm:$0xff]
        %v2477 = vld [vmem:[#allocation8 + $0x158] sm:$0xff]
        %v2478 = vld [vmem:[#allocation8 + $0x160] sm:$0xff]
        %v2479 = vld [vmem:[#allocation8 + $0x168] sm:$0xff]
        %v2480 = vld [vmem:[#allocation8 + $0x170] sm:$0xff]
        %v2481 = vld [vmem:[#allocation8 + $0x178] sm:$0xff]
        %v2482 = vld [vmem:[#allocation8 + $0x180] sm:$0xff]
        %v2483 = vld [vmem:[#allocation8 + $0x188] sm:$0xff]
        %v2484 = vld [vmem:[#allocation8 + $0x190] sm:$0xff]
        %v2485 = vld [vmem:[#allocation8 + $0x198] sm:$0xff]
        %v2486 = vld [vmem:[#allocation8 + $0x1a0] sm:$0xff]
        %v2487 = vld [vmem:[#allocation8 + $0x1a8] sm:$0xff]
        %v2488 = vld [vmem:[#allocation8 + $0x1b0] sm:$0xff]
        %v2489 = vld [vmem:[#allocation8 + $0x1b8] sm:$0xff]
        %v2490 = vld [vmem:[#allocation8 + $0x1c0] sm:$0xff]
        %v2491 = vld [vmem:[#allocation8 + $0x1c8] sm:$0xff]
        %v2492 = vld [vmem:[#allocation8 + $0x1d0] sm:$0xff]
        %v2493 = vld [vmem:[#allocation8 + $0x1d8] sm:$0xff]
        %v2494 = vld [vmem:[#allocation8 + $0x1e0] sm:$0xff]
        %v2495 = vld [vmem:[#allocation8 + $0x1e8] sm:$0xff]
        %v2496 = vld [vmem:[#allocation8 + $0x1f0] sm:$0xff]
        %v2497 = vld [vmem:[#allocation8 + $0x1f8] sm:$0xff]
        %v2498 = vld [vmem:[#allocation8 + $0x200] sm:$0xff]
        %v2499 = vld [vmem:[#allocation8 + $0x208] sm:$0xff]
        %v2500 = vld [vmem:[#allocation8 + $0x210] sm:$0xff]
        %v2501 = vld [vmem:[#allocation8 + $0x218] sm:$0xff]
        %v2502 = vld [vmem:[#allocation8 + $0x220] sm:$0xff]
        %v2503 = vld [vmem:[#allocation8 + $0x228] sm:$0xff]
        %v2504 = vld [vmem:[#allocation8 + $0x230] sm:$0xff]
        %v2505 = vld [vmem:[#allocation8 + $0x238] sm:$0xff]
        %v2506 = vld [vmem:[#allocation8 + $0x240] sm:$0xff]
        %v2507 = vld [vmem:[#allocation8 + $0x248] sm:$0xff]
        %v2508 = vld [vmem:[#allocation8 + $0x250] sm:$0xff]
        %v2509 = vld [vmem:[#allocation8 + $0x258] sm:$0xff]
        %v2510 = vld [vmem:[#allocation8 + $0x260] sm:$0xff]
        %v2511 = vld [vmem:[#allocation8 + $0x268] sm:$0xff]
        %v2512 = vld [vmem:[#allocation8 + $0x270] sm:$0xff]
        %v2513 = vld [vmem:[#allocation8 + $0x278] sm:$0xff]
        %v2514 = vld [vmem:[#allocation8 + $0x280] sm:$0xff]
        %v2515 = vld [vmem:[#allocation8 + $0x288] sm:$0xff]
        %v2516 = vld [vmem:[#allocation8 + $0x290] sm:$0xff]
        %v2517 = vld [vmem:[#allocation8 + $0x298] sm:$0xff]
        %v2518 = vld [vmem:[#allocation8 + $0x2a0] sm:$0xff]
        %v2519 = vld [vmem:[#allocation8 + $0x2a8] sm:$0xff]
        %v2520 = vld [vmem:[#allocation8 + $0x2b0] sm:$0xff]
        %v2521 = vld [vmem:[#allocation8 + $0x2b8] sm:$0xff]
        %v2522 = vld [vmem:[#allocation8 + $0x2c0] sm:$0xff]
        %v2523 = vld [vmem:[#allocation8 + $0x2c8] sm:$0xff]
        %v2524 = vld [vmem:[#allocation8 + $0x2d0] sm:$0xff]
        %v2525 = vld [vmem:[#allocation8 + $0x2d8] sm:$0xff]
        %v2526 = vld [vmem:[#allocation8 + $0x2e0] sm:$0xff]
        %v2527 = vld [vmem:[#allocation8 + $0x2e8] sm:$0xff]
        %v2528 = vld [vmem:[#allocation8 + $0x2f0] sm:$0xff]
        %v2529 = vld [vmem:[#allocation8 + $0x2f8] sm:$0xff]
        %v2530 = vld [vmem:[#allocation8 + $0x300] sm:$0xff]
        %v2531 = vld [vmem:[#allocation8 + $0x308] sm:$0xff]
        %v2532 = vld [vmem:[#allocation8 + $0x310] sm:$0xff]
        %v2533 = vld [vmem:[#allocation8 + $0x318] sm:$0xff]
        %v2534 = vld [vmem:[#allocation8 + $0x320] sm:$0xff]
        %v2535 = vld [vmem:[#allocation8 + $0x328] sm:$0xff]
        %v2536 = vld [vmem:[#allocation8 + $0x330] sm:$0xff]
        %v2537 = vld [vmem:[#allocation8 + $0x338] sm:$0xff]
        %v2538 = vld [vmem:[#allocation8 + $0x340] sm:$0xff]
        %v2539 = vld [vmem:[#allocation8 + $0x348] sm:$0xff]
        %v2540 = vld [vmem:[#allocation8 + $0x350] sm:$0xff]
        %v2541 = vld [vmem:[#allocation8 + $0x358] sm:$0xff]
        %v2542 = vld [vmem:[#allocation8 + $0x360] sm:$0xff]
        %v2543 = vld [vmem:[#allocation8 + $0x368] sm:$0xff]
        %v2544 = vld [vmem:[#allocation8 + $0x370] sm:$0xff]
        %v2545 = vld [vmem:[#allocation8 + $0x378] sm:$0xff]
        %v2546 = vld [vmem:[#allocation8 + $0x380] sm:$0xff]
        %v2547 = vld [vmem:[#allocation8 + $0x388] sm:$0xff]
        %v2548 = vld [vmem:[#allocation8 + $0x390] sm:$0xff]
        %v2549 = vld [vmem:[#allocation8 + $0x398] sm:$0xff]
        %v2550 = vld [vmem:[#allocation8 + $0x3a0] sm:$0xff]
        %v2551 = vld [vmem:[#allocation8 + $0x3a8] sm:$0xff]
        %v2552 = vld [vmem:[#allocation8 + $0x3b0] sm:$0xff]
        %v2553 = vld [vmem:[#allocation8 + $0x3b8] sm:$0xff]
        %v2554 = vld [vmem:[#allocation8 + $0x3c0] sm:$0xff]
        %v2555 = vld [vmem:[#allocation8 + $0x3c8] sm:$0xff]
        %v2556 = vld [vmem:[#allocation8 + $0x3d0] sm:$0xff]
        %v2557 = vld [vmem:[#allocation8 + $0x3d8] sm:$0xff]
        %v2558 = vld [vmem:[#allocation8 + $0x3e0] sm:$0xff]
        %v2559 = vld [vmem:[#allocation8 + $0x3e8] sm:$0xff]
        %v2560 = vld [vmem:[#allocation8 + $0x3f0] sm:$0xff]
        %v2561 = vld [vmem:[#allocation8 + $0x3f8] sm:$0xff]
        %v2562 = vld [vmem:[#allocation8 + $0x400] sm:$0xff]
        %v2563 = vld [vmem:[#allocation8 + $0x408] sm:$0xff]
        %v2564 = vld [vmem:[#allocation8 + $0x410] sm:$0xff]
        %v2565 = vld [vmem:[#allocation8 + $0x418] sm:$0xff]
        %v2566 = vld [vmem:[#allocation8 + $0x420] sm:$0xff]
        %v2567 = vld [vmem:[#allocation8 + $0x428] sm:$0xff]
        %v2568 = vld [vmem:[#allocation8 + $0x430] sm:$0xff]
        %v2569 = vld [vmem:[#allocation8 + $0x438] sm:$0xff]
        %v2570 = vld [vmem:[#allocation8 + $0x440] sm:$0xff]
        %v2571 = vld [vmem:[#allocation8 + $0x448] sm:$0xff]
        %v2572 = vld [vmem:[#allocation8 + $0x450] sm:$0xff]
        %v2573 = vld [vmem:[#allocation8 + $0x458] sm:$0xff]
        %v2574 = vld [vmem:[#allocation8 + $0x460] sm:$0xff]
        %v2575 = vld [vmem:[#allocation8 + $0x468] sm:$0xff]
        %v2576 = vld [vmem:[#allocation8 + $0x470] sm:$0xff]
        %v2577 = vld [vmem:[#allocation8 + $0x478] sm:$0xff]
        %v2578 = vld [vmem:[%s4] sm:$0x1]
        %v2580 = vlaneseq
        %v2581 = vshrl.u32 %v2580, 7
        %v2582 = vsub.s32 0, %v2581
        %v2583 = vrot.slane %v2578, %v2582
        %2585 = vmatprep.subr.mxu0 0.0
        %2586 = vmatpush1.msra.mxu0 %v2434
        %2587 = vmatprep.subr.mxu0 0.0
        %2588 = vmatpush1.msra.mxu0 %v2435
        %2589 = vmatprep.subr.mxu0 0.0
        %2590 = vmatpush1.msra.mxu0 %v2436
        %2591 = vmatprep.subr.mxu0 0.0
        %2592 = vmatpush1.msra.mxu0 %v2437
        %2593 = vmatprep.subr.mxu0 0.0
        %2594 = vmatpush1.msra.mxu0 %v2438
        %2595 = vmatprep.subr.mxu0 0.0
        %2596 = vmatpush1.msra.mxu0 %v2439
        %2597 = vmatprep.subr.mxu0 0.0
        %2598 = vmatpush1.msra.mxu0 %v2440
        %2599 = vmatprep.subr.mxu0 0.0
        %2600 = vmatpush1.msra.mxu0 %v2441
        %2601 = vmatprep.subr.mxu0 0.0
        %2602 = vmatpush1.msra.mxu0 %v2442
        %2603 = vmatprep.subr.mxu0 0.0
        %2604 = vmatpush1.msra.mxu0 %v2443
        %2605 = vmatprep.subr.mxu0 0.0
        %2606 = vmatpush1.msra.mxu0 %v2444
        %2607 = vmatprep.subr.mxu0 0.0
        %2608 = vmatpush1.msra.mxu0 %v2445
        %2609 = vmatprep.subr.mxu0 0.0
        %2610 = vmatpush1.msra.mxu0 %v2446
        %2611 = vmatprep.subr.mxu0 0.0
        %2612 = vmatpush1.msra.mxu0 %v2447
        %2613 = vmatprep.subr.mxu0 0.0
        %2614 = vmatpush1.msra.mxu0 %v2448
        %2615 = vmatprep.subr.mxu0 0.0
        %2616 = vmatpush1.msra.mxu0 %v2449
        %2617 = vmatprep.subr.mxu0 0.0
        %2618 = vmatpush1.msra.mxu0 %v2450
        %2619 = vmatprep.subr.mxu0 0.0
        %2620 = vmatpush1.msra.mxu0 %v2451
        %2621 = vmatprep.subr.mxu0 0.0
        %2622 = vmatpush1.msra.mxu0 %v2452
        %2623 = vmatprep.subr.mxu0 0.0
        %2624 = vmatpush1.msra.mxu0 %v2453
        %2625 = vmatprep.subr.mxu0 0.0
        %2626 = vmatpush1.msra.mxu0 %v2454
        %2627 = vmatprep.subr.mxu0 0.0
        %2628 = vmatpush1.msra.mxu0 %v2455
        %2629 = vmatprep.subr.mxu0 0.0
        %2630 = vmatpush1.msra.mxu0 %v2456
        %2631 = vmatprep.subr.mxu0 0.0
        %2632 = vmatpush1.msra.mxu0 %v2457
        %2633 = vmatprep.subr.mxu0 0.0
        %2634 = vmatpush1.msra.mxu0 %v2458
        %2635 = vmatprep.subr.mxu0 0.0
        %2636 = vmatpush1.msra.mxu0 %v2459
        %2637 = vmatprep.subr.mxu0 0.0
        %2638 = vmatpush1.msra.mxu0 %v2460
        %2639 = vmatprep.subr.mxu0 0.0
        %2640 = vmatpush1.msra.mxu0 %v2461
        %2641 = vmatprep.subr.mxu0 0.0
        %2642 = vmatpush1.msra.mxu0 %v2462
        %2643 = vmatprep.subr.mxu0 0.0
        %2644 = vmatpush1.msra.mxu0 %v2463
        %2645 = vmatprep.subr.mxu0 0.0
        %2646 = vmatpush1.msra.mxu0 %v2464
        %2647 = vmatprep.subr.mxu0 0.0
        %2648 = vmatpush1.msra.mxu0 %v2465
        %2649 = vmatprep.mubr.f32.mxu0 %v2178
        %2650 = vmatmul.mubr.f32.gmra.mrb[0].mxu0 %v2146
        %v2651 = vpop.f32.mrb[0].mxu0
        %v2652 = vadd.f32 %v2583, %v2651
        %v2653 = vpop.f32.mrb[0].mxu0
        %2654 = vmatprep.mubr.f32.mxu0 %v2179
        %2655 = vmatmul.mubr.f32.gmra.mrb[0].mxu0 %v2147
        %v2656 = vpop.f32.mrb[0].mxu0
        %v2657 = vadd.f32 %v2583, %v2656
        %v2658 = vpop.f32.mrb[0].mxu0
        %2659 = vmatprep.mubr.f32.mxu0 %v2180
        %2660 = vmatmul.mubr.f32.gmra.mrb[0].mxu0 %v2148
        %v2661 = vpop.f32.mrb[0].mxu0
        %v2662 = vadd.f32 %v2583, %v2661
        %v2663 = vpop.f32.mrb[0].mxu0
        %2664 = vmatprep.mubr.f32.mxu0 %v2181
        %2665 = vmatmul.mubr.f32.gmra.mrb[0].mxu0 %v2149
        %v2666 = vpop.f32.mrb[0].mxu0
        %v2667 = vadd.f32 %v2583, %v2666
        %v2668 = vpop.f32.mrb[0].mxu0
        %2669 = vmatprep.mubr.f32.mxu0 %v2182
        %2670 = vmatmul.mubr.f32.gmra.mrb[0].mxu0 %v2150
        %v2671 = vpop.f32.mrb[0].mxu0
        %v2672 = vadd.f32 %v2583, %v2671
        %v2673 = vpop.f32.mrb[0].mxu0
        %2674 = vmatprep.mubr.f32.mxu0 %v2183
        %2675 = vmatmul.mubr.f32.gmra.mrb[0].mxu0 %v2151
        %v2676 = vpop.f32.mrb[0].mxu0
        %v2677 = vadd.f32 %v2583, %v2676
        %v2678 = vpop.f32.mrb[0].mxu0
        %2679 = vmatprep.mubr.f32.mxu0 %v2184
        %2680 = vmatmul.mubr.f32.gmra.mrb[0].mxu0 %v2152
        %v2681 = vpop.f32.mrb[0].mxu0
        %v2682 = vadd.f32 %v2583, %v2681
        %v2683 = vpop.f32.mrb[0].mxu0
        %2684 = vmatprep.mubr.f32.mxu0 %v2185
        %2685 = vmatmul.mubr.f32.gmra.mrb[0].mxu0 %v2153
        %v2686 = vpop.f32.mrb[0].mxu0
        %v2687 = vadd.f32 %v2583, %v2686
        %v2688 = vpop.f32.mrb[0].mxu0
        %2689 = vmatprep.mubr.f32.mxu0 %v2186
        %2690 = vmatmul.mubr.f32.gmra.mrb[0].mxu0 %v2154
        %v2691 = vpop.f32.mrb[0].mxu0
        %v2692 = vadd.f32 %v2583, %v2691
        %v2693 = vpop.f32.mrb[0].mxu0
        %2694 = vmatprep.mubr.f32.mxu0 %v2187
        %2695 = vmatmul.mubr.f32.gmra.mrb[0].mxu0 %v2155
        %v2696 = vpop.f32.mrb[0].mxu0
        %v2697 = vadd.f32 %v2583, %v2696
        %v2698 = vpop.f32.mrb[0].mxu0
        %2699 = vmatprep.mubr.f32.mxu0 %v2188
        %2700 = vmatmul.mubr.f32.gmra.mrb[0].mxu0 %v2156
        %v2701 = vpop.f32.mrb[0].mxu0
        %v2702 = vadd.f32 %v2583, %v2701
        %v2703 = vpop.f32.mrb[0].mxu0
        %2704 = vmatprep.mubr.f32.mxu0 %v2189
        %2705 = vmatmul.mubr.f32.gmra.mrb[0].mxu0 %v2157
        %v2706 = vpop.f32.mrb[0].mxu0
        %v2707 = vadd.f32 %v2583, %v2706
        %v2708 = vpop.f32.mrb[0].mxu0
        %2709 = vmatprep.mubr.f32.mxu0 %v2190
        %2710 = vmatmul.mubr.f32.gmra.mrb[0].mxu0 %v2158
        %v2711 = vpop.f32.mrb[0].mxu0
        %v2712 = vadd.f32 %v2583, %v2711
        %v2713 = vpop.f32.mrb[0].mxu0
        %2714 = vmatprep.mubr.f32.mxu0 %v2191
        %2715 = vmatmul.mubr.f32.gmra.mrb[0].mxu0 %v2159
        %v2716 = vpop.f32.mrb[0].mxu0
        %v2717 = vadd.f32 %v2583, %v2716
        %v2718 = vpop.f32.mrb[0].mxu0
        %2719 = vmatprep.mubr.f32.mxu0 %v2192
        %2720 = vmatmul.mubr.f32.gmra.mrb[0].mxu0 %v2160
        %v2721 = vpop.f32.mrb[0].mxu0
        %v2722 = vadd.f32 %v2583, %v2721
        %v2723 = vpop.f32.mrb[0].mxu0
        %2724 = vmatprep.mubr.f32.mxu0 %v2193
        %2725 = vmatmul.mubr.f32.gmra.mrb[0].mxu0 %v2161
        %v2726 = vpop.f32.mrb[0].mxu0
        %v2727 = vadd.f32 %v2583, %v2726
        %v2728 = vpop.f32.mrb[0].mxu0
        %2729 = vmatprep.mubr.f32.mxu0 %v2194
        %2730 = vmatmul.mubr.f32.gmra.mrb[0].mxu0 %v2162
        %v2731 = vpop.f32.mrb[0].mxu0
        %v2732 = vadd.f32 %v2583, %v2731
        %v2733 = vpop.f32.mrb[0].mxu0
        %2734 = vmatprep.mubr.f32.mxu0 %v2195
        %2735 = vmatmul.mubr.f32.gmra.mrb[0].mxu0 %v2163
        %v2736 = vpop.f32.mrb[0].mxu0
        %v2737 = vadd.f32 %v2583, %v2736
        %v2738 = vpop.f32.mrb[0].mxu0
        %2739 = vmatprep.mubr.f32.mxu0 %v2196
        %2740 = vmatmul.mubr.f32.gmra.mrb[0].mxu0 %v2164
        %v2741 = vpop.f32.mrb[0].mxu0
        %v2742 = vadd.f32 %v2583, %v2741
        %v2743 = vpop.f32.mrb[0].mxu0
        %2744 = vmatprep.mubr.f32.mxu0 %v2197
        %2745 = vmatmul.mubr.f32.gmra.mrb[0].mxu0 %v2165
        %v2746 = vpop.f32.mrb[0].mxu0
        %v2747 = vadd.f32 %v2583, %v2746
        %v2748 = vpop.f32.mrb[0].mxu0
        %2749 = vmatprep.mubr.f32.mxu0 %v2198
        %2750 = vmatmul.mubr.f32.gmra.mrb[0].mxu0 %v2166
        %v2751 = vpop.f32.mrb[0].mxu0
        %v2752 = vadd.f32 %v2583, %v2751
        %v2753 = vpop.f32.mrb[0].mxu0
        %2754 = vmatprep.mubr.f32.mxu0 %v2199
        %2755 = vmatmul.mubr.f32.gmra.mrb[0].mxu0 %v2167
        %v2756 = vpop.f32.mrb[0].mxu0
        %v2757 = vadd.f32 %v2583, %v2756
        %v2758 = vpop.f32.mrb[0].mxu0
        %2759 = vmatprep.mubr.f32.mxu0 %v2200
        %2760 = vmatmul.mubr.f32.gmra.mrb[0].mxu0 %v2168
        %v2761 = vpop.f32.mrb[0].mxu0
        %v2762 = vadd.f32 %v2583, %v2761
        %v2763 = vpop.f32.mrb[0].mxu0
        %2764 = vmatprep.mubr.f32.mxu0 %v2201
        %2765 = vmatmul.mubr.f32.gmra.mrb[0].mxu0 %v2169
        %v2766 = vpop.f32.mrb[0].mxu0
        %v2767 = vadd.f32 %v2583, %v2766
        %v2768 = vpop.f32.mrb[0].mxu0
        %2769 = vmatprep.mubr.f32.mxu0 %v2202
        %2770 = vmatmul.mubr.f32.gmra.mrb[0].mxu0 %v2170
        %v2771 = vpop.f32.mrb[0].mxu0
        %v2772 = vadd.f32 %v2583, %v2771
        %v2773 = vpop.f32.mrb[0].mxu0
        %2774 = vmatprep.mubr.f32.mxu0 %v2203
        %2775 = vmatmul.mubr.f32.gmra.mrb[0].mxu0 %v2171
        %v2776 = vpop.f32.mrb[0].mxu0
        %v2777 = vadd.f32 %v2583, %v2776
        %v2778 = vpop.f32.mrb[0].mxu0
        %2779 = vmatprep.mubr.f32.mxu0 %v2204
        %2780 = vmatmul.mubr.f32.gmra.mrb[0].mxu0 %v2172
        %v2781 = vpop.f32.mrb[0].mxu0
        %v2782 = vadd.f32 %v2583, %v2781
        %v2783 = vpop.f32.mrb[0].mxu0
        %2784 = vmatprep.mubr.f32.mxu0 %v2205
        %2785 = vmatmul.mubr.f32.gmra.mrb[0].mxu0 %v2173
        %v2786 = vpop.f32.mrb[0].mxu0
        %v2787 = vadd.f32 %v2583, %v2786
        %v2788 = vpop.f32.mrb[0].mxu0
        %2789 = vmatprep.mubr.f32.mxu0 %v2206
        %2790 = vmatmul.mubr.f32.gmra.mrb[0].mxu0 %v2174
        %v2791 = vpop.f32.mrb[0].mxu0
        %v2792 = vadd.f32 %v2583, %v2791
        %v2793 = vpop.f32.mrb[0].mxu0
        %2794 = vmatprep.mubr.f32.mxu0 %v2207
        %2795 = vmatmul.mubr.f32.gmra.mrb[0].mxu0 %v2175
        %v2796 = vpop.f32.mrb[0].mxu0
        %v2797 = vadd.f32 %v2583, %v2796
        %v2798 = vpop.f32.mrb[0].mxu0
        %2799 = vmatprep.mubr.f32.mxu0 %v2208
        %2800 = vmatmul.mubr.f32.gmra.mrb[0].mxu0 %v2176
        %v2801 = vpop.f32.mrb[0].mxu0
        %v2802 = vadd.f32 %v2583, %v2801
        %v2803 = vpop.f32.mrb[0].mxu0
        %2804 = vmatprep.mubr.f32.mxu0 %v2209
        %2805 = vmatmul.mubr.f32.gmra.mrb[0].mxu0 %v2177
        %v2806 = vpop.f32.mrb[0].mxu0
        %v2807 = vadd.f32 %v2583, %v2806
        %v2808 = vpop.f32.mrb[0].mxu0
        %2809 = vdwg.mxu0
        %2810 = vmatprep.subr.mxu0 0.0
        %2811 = vmatpush1.msra.mxu0 %v2466
        %2812 = vmatprep.subr.mxu0 0.0
        %2813 = vmatpush1.msra.mxu0 %v2467
        %2814 = vmatprep.subr.mxu0 0.0
        %2815 = vmatpush1.msra.mxu0 %v2468
        %2816 = vmatprep.subr.mxu0 0.0
        %2817 = vmatpush1.msra.mxu0 %v2469
        %2818 = vmatprep.subr.mxu0 0.0
        %2819 = vmatpush1.msra.mxu0 %v2470
        %2820 = vmatprep.subr.mxu0 0.0
        %2821 = vmatpush1.msra.mxu0 %v2471
        %2822 = vmatprep.subr.mxu0 0.0
        %2823 = vmatpush1.msra.mxu0 %v2472
        %2824 = vmatprep.subr.mxu0 0.0
        %2825 = vmatpush1.msra.mxu0 %v2473
        %2826 = vmatprep.subr.mxu0 0.0
        %2827 = vmatpush1.msra.mxu0 %v2474
        %2828 = vmatprep.subr.mxu0 0.0
        %2829 = vmatpush1.msra.mxu0 %v2475
        %2830 = vmatprep.subr.mxu0 0.0
        %2831 = vmatpush1.msra.mxu0 %v2476
        %2832 = vmatprep.subr.mxu0 0.0
        %2833 = vmatpush1.msra.mxu0 %v2477
        %2834 = vmatprep.subr.mxu0 0.0
        %2835 = vmatpush1.msra.mxu0 %v2478
        %2836 = vmatprep.subr.mxu0 0.0
        %2837 = vmatpush1.msra.mxu0 %v2479
        %2838 = vmatprep.subr.mxu0 0.0
        %2839 = vmatpush1.msra.mxu0 %v2480
        %2840 = vmatprep.subr.mxu0 0.0
        %2841 = vmatpush1.msra.mxu0 %v2481
        %2842 = vmatprep.subr.mxu0 0.0
        %2843 = vmatpush1.msra.mxu0 %v2482
        %2844 = vmatprep.subr.mxu0 0.0
        %2845 = vmatpush1.msra.mxu0 %v2483
        %2846 = vmatprep.subr.mxu0 0.0
        %2847 = vmatpush1.msra.mxu0 %v2484
        %2848 = vmatprep.subr.mxu0 0.0
        %2849 = vmatpush1.msra.mxu0 %v2485
        %2850 = vmatprep.subr.mxu0 0.0
        %2851 = vmatpush1.msra.mxu0 %v2486
        %2852 = vmatprep.subr.mxu0 0.0
        %2853 = vmatpush1.msra.mxu0 %v2487
        %2854 = vmatprep.subr.mxu0 0.0
        %2855 = vmatpush1.msra.mxu0 %v2488
        %2856 = vmatprep.subr.mxu0 0.0
        %2857 = vmatpush1.msra.mxu0 %v2489
        %2858 = vmatprep.subr.mxu0 0.0
        %2859 = vmatpush1.msra.mxu0 %v2490
        %2860 = vmatprep.subr.mxu0 0.0
        %2861 = vmatpush1.msra.mxu0 %v2491
        %2862 = vmatprep.subr.mxu0 0.0
        %2863 = vmatpush1.msra.mxu0 %v2492
        %2864 = vmatprep.subr.mxu0 0.0
        %2865 = vmatpush1.msra.mxu0 %v2493
        %2866 = vmatprep.subr.mxu0 0.0
        %2867 = vmatpush1.msra.mxu0 %v2494
        %2868 = vmatprep.subr.mxu0 0.0
        %2869 = vmatpush1.msra.mxu0 %v2495
        %2870 = vmatprep.subr.mxu0 0.0
        %2871 = vmatpush1.msra.mxu0 %v2496
        %2872 = vmatprep.subr.mxu0 0.0
        %2873 = vmatpush1.msra.mxu0 %v2497
        %2874 = vmatprep.mubr.f32.mxu0 %v2242
        %2875 = vmatmul.mubr.f32.gmra.mrb[0].mxu0 %v2210
        %v2876 = vpop.f32.mrb[0].mxu0
        %v2877 = vadd.f32 %v2652, %v2876
        %v2878 = vpop.f32.mrb[0].mxu0
        %2879 = vmatprep.mubr.f32.mxu0 %v2243
        %2880 = vmatmul.mubr.f32.gmra.mrb[0].mxu0 %v2211
        %v2881 = vpop.f32.mrb[0].mxu0
        %v2882 = vadd.f32 %v2657, %v2881
        %v2883 = vpop.f32.mrb[0].mxu0
        %2884 = vmatprep.mubr.f32.mxu0 %v2244
        %2885 = vmatmul.mubr.f32.gmra.mrb[0].mxu0 %v2212
        %v2886 = vpop.f32.mrb[0].mxu0
        %v2887 = vadd.f32 %v2662, %v2886
        %v2888 = vpop.f32.mrb[0].mxu0
        %2889 = vmatprep.mubr.f32.mxu0 %v2245
        %2890 = vmatmul.mubr.f32.gmra.mrb[0].mxu0 %v2213
        %v2891 = vpop.f32.mrb[0].mxu0
        %v2892 = vadd.f32 %v2667, %v2891
        %v2893 = vpop.f32.mrb[0].mxu0
        %2894 = vmatprep.mubr.f32.mxu0 %v2246
        %2895 = vmatmul.mubr.f32.gmra.mrb[0].mxu0 %v2214
        %v2896 = vpop.f32.mrb[0].mxu0
        %v2897 = vadd.f32 %v2672, %v2896
        %v2898 = vpop.f32.mrb[0].mxu0
        %2899 = vmatprep.mubr.f32.mxu0 %v2247
        %2900 = vmatmul.mubr.f32.gmra.mrb[0].mxu0 %v2215
        %v2901 = vpop.f32.mrb[0].mxu0
        %v2902 = vadd.f32 %v2677, %v2901
        %v2903 = vpop.f32.mrb[0].mxu0
        %2904 = vmatprep.mubr.f32.mxu0 %v2248
        %2905 = vmatmul.mubr.f32.gmra.mrb[0].mxu0 %v2216
        %v2906 = vpop.f32.mrb[0].mxu0
        %v2907 = vadd.f32 %v2682, %v2906
        %v2908 = vpop.f32.mrb[0].mxu0
        %2909 = vmatprep.mubr.f32.mxu0 %v2249
        %2910 = vmatmul.mubr.f32.gmra.mrb[0].mxu0 %v2217
        %v2911 = vpop.f32.mrb[0].mxu0
        %v2912 = vadd.f32 %v2687, %v2911
        %v2913 = vpop.f32.mrb[0].mxu0
        %2914 = vmatprep.mubr.f32.mxu0 %v2250
        %2915 = vmatmul.mubr.f32.gmra.mrb[0].mxu0 %v2218
        %v2916 = vpop.f32.mrb[0].mxu0
        %v2917 = vadd.f32 %v2692, %v2916
        %v2918 = vpop.f32.mrb[0].mxu0
        %2919 = vmatprep.mubr.f32.mxu0 %v2251
        %2920 = vmatmul.mubr.f32.gmra.mrb[0].mxu0 %v2219
        %v2921 = vpop.f32.mrb[0].mxu0
        %v2922 = vadd.f32 %v2697, %v2921
        %v2923 = vpop.f32.mrb[0].mxu0
        %2924 = vmatprep.mubr.f32.mxu0 %v2252
        %2925 = vmatmul.mubr.f32.gmra.mrb[0].mxu0 %v2220
        %v2926 = vpop.f32.mrb[0].mxu0
        %v2927 = vadd.f32 %v2702, %v2926
        %v2928 = vpop.f32.mrb[0].mxu0
        %2929 = vmatprep.mubr.f32.mxu0 %v2253
        %2930 = vmatmul.mubr.f32.gmra.mrb[0].mxu0 %v2221
        %v2931 = vpop.f32.mrb[0].mxu0
        %v2932 = vadd.f32 %v2707, %v2931
        %v2933 = vpop.f32.mrb[0].mxu0
        %2934 = vmatprep.mubr.f32.mxu0 %v2254
        %2935 = vmatmul.mubr.f32.gmra.mrb[0].mxu0 %v2222
        %v2936 = vpop.f32.mrb[0].mxu0
        %v2937 = vadd.f32 %v2712, %v2936
        %v2938 = vpop.f32.mrb[0].mxu0
        %2939 = vmatprep.mubr.f32.mxu0 %v2255
        %2940 = vmatmul.mubr.f32.gmra.mrb[0].mxu0 %v2223
        %v2941 = vpop.f32.mrb[0].mxu0
        %v2942 = vadd.f32 %v2717, %v2941
        %v2943 = vpop.f32.mrb[0].mxu0
        %2944 = vmatprep.mubr.f32.mxu0 %v2256
        %2945 = vmatmul.mubr.f32.gmra.mrb[0].mxu0 %v2224
        %v2946 = vpop.f32.mrb[0].mxu0
        %v2947 = vadd.f32 %v2722, %v2946
        %v2948 = vpop.f32.mrb[0].mxu0
        %2949 = vmatprep.mubr.f32.mxu0 %v2257
        %2950 = vmatmul.mubr.f32.gmra.mrb[0].mxu0 %v2225
        %v2951 = vpop.f32.mrb[0].mxu0
        %v2952 = vadd.f32 %v2727, %v2951
        %v2953 = vpop.f32.mrb[0].mxu0
        %2954 = vmatprep.mubr.f32.mxu0 %v2258
        %2955 = vmatmul.mubr.f32.gmra.mrb[0].mxu0 %v2226
        %v2956 = vpop.f32.mrb[0].mxu0
        %v2957 = vadd.f32 %v2732, %v2956
        %v2958 = vpop.f32.mrb[0].mxu0
        %2959 = vmatprep.mubr.f32.mxu0 %v2259
        %2960 = vmatmul.mubr.f32.gmra.mrb[0].mxu0 %v2227
        %v2961 = vpop.f32.mrb[0].mxu0
        %v2962 = vadd.f32 %v2737, %v2961
        %v2963 = vpop.f32.mrb[0].mxu0
        %2964 = vmatprep.mubr.f32.mxu0 %v2260
        %2965 = vmatmul.mubr.f32.gmra.mrb[0].mxu0 %v2228
        %v2966 = vpop.f32.mrb[0].mxu0
        %v2967 = vadd.f32 %v2742, %v2966
        %v2968 = vpop.f32.mrb[0].mxu0
        %2969 = vmatprep.mubr.f32.mxu0 %v2261
        %2970 = vmatmul.mubr.f32.gmra.mrb[0].mxu0 %v2229
        %v2971 = vpop.f32.mrb[0].mxu0
        %v2972 = vadd.f32 %v2747, %v2971
        %v2973 = vpop.f32.mrb[0].mxu0
        %2974 = vmatprep.mubr.f32.mxu0 %v2262
        %2975 = vmatmul.mubr.f32.gmra.mrb[0].mxu0 %v2230
        %v2976 = vpop.f32.mrb[0].mxu0
        %v2977 = vadd.f32 %v2752, %v2976
        %v2978 = vpop.f32.mrb[0].mxu0
        %2979 = vmatprep.mubr.f32.mxu0 %v2263
        %2980 = vmatmul.mubr.f32.gmra.mrb[0].mxu0 %v2231
        %v2981 = vpop.f32.mrb[0].mxu0
        %v2982 = vadd.f32 %v2757, %v2981
        %v2983 = vpop.f32.mrb[0].mxu0
        %2984 = vmatprep.mubr.f32.mxu0 %v2264
        %2985 = vmatmul.mubr.f32.gmra.mrb[0].mxu0 %v2232
        %v2986 = vpop.f32.mrb[0].mxu0
        %v2987 = vadd.f32 %v2762, %v2986
        %v2988 = vpop.f32.mrb[0].mxu0
        %2989 = vmatprep.mubr.f32.mxu0 %v2265
        %2990 = vmatmul.mubr.f32.gmra.mrb[0].mxu0 %v2233
        %v2991 = vpop.f32.mrb[0].mxu0
        %v2992 = vadd.f32 %v2767, %v2991
        %v2993 = vpop.f32.mrb[0].mxu0
        %2994 = vmatprep.mubr.f32.mxu0 %v2266
        %2995 = vmatmul.mubr.f32.gmra.mrb[0].mxu0 %v2234
        %v2996 = vpop.f32.mrb[0].mxu0
        %v2997 = vadd.f32 %v2772, %v2996
        %v2998 = vpop.f32.mrb[0].mxu0
        %2999 = vmatprep.mubr.f32.mxu0 %v2267
        %3000 = vmatmul.mubr.f32.gmra.mrb[0].mxu0 %v2235
        %v3001 = vpop.f32.mrb[0].mxu0
        %v3002 = vadd.f32 %v2777, %v3001
        %v3003 = vpop.f32.mrb[0].mxu0
        %3004 = vmatprep.mubr.f32.mxu0 %v2268
        %3005 = vmatmul.mubr.f32.gmra.mrb[0].mxu0 %v2236
        %v3006 = vpop.f32.mrb[0].mxu0
        %v3007 = vadd.f32 %v2782, %v3006
        %v3008 = vpop.f32.mrb[0].mxu0
        %3009 = vmatprep.mubr.f32.mxu0 %v2269
        %3010 = vmatmul.mubr.f32.gmra.mrb[0].mxu0 %v2237
        %v3011 = vpop.f32.mrb[0].mxu0
        %v3012 = vadd.f32 %v2787, %v3011
        %v3013 = vpop.f32.mrb[0].mxu0
        %3014 = vmatprep.mubr.f32.mxu0 %v2270
        %3015 = vmatmul.mubr.f32.gmra.mrb[0].mxu0 %v2238
        %v3016 = vpop.f32.mrb[0].mxu0
        %v3017 = vadd.f32 %v2792, %v3016
        %v3018 = vpop.f32.mrb[0].mxu0
        %3019 = vmatprep.mubr.f32.mxu0 %v2271
        %3020 = vmatmul.mubr.f32.gmra.mrb[0].mxu0 %v2239
        %v3021 = vpop.f32.mrb[0].mxu0
        %v3022 = vadd.f32 %v2797, %v3021
        %v3023 = vpop.f32.mrb[0].mxu0
        %3024 = vmatprep.mubr.f32.mxu0 %v2272
        %3025 = vmatmul.mubr.f32.gmra.mrb[0].mxu0 %v2240
        %v3026 = vpop.f32.mrb[0].mxu0
        %v3027 = vadd.f32 %v2802, %v3026
        %v3028 = vpop.f32.mrb[0].mxu0
        %3029 = vmatprep.mubr.f32.mxu0 %v2273
        %3030 = vmatmul.mubr.f32.gmra.mrb[0].mxu0 %v2241
        %v3031 = vpop.f32.mrb[0].mxu0
        %v3032 = vadd.f32 %v2807, %v3031
        %v3033 = vpop.f32.mrb[0].mxu0
        %3034 = vdwg.mxu0
        %3035 = vmatprep.subr.mxu0 0.0
        %3036 = vmatpush1.msra.mxu0 %v2498
        %3037 = vmatprep.subr.mxu0 0.0
        %3038 = vmatpush1.msra.mxu0 %v2499
        %3039 = vmatprep.subr.mxu0 0.0
        %3040 = vmatpush1.msra.mxu0 %v2500
        %3041 = vmatprep.subr.mxu0 0.0
        %3042 = vmatpush1.msra.mxu0 %v2501
        %3043 = vmatprep.subr.mxu0 0.0
        %3044 = vmatpush1.msra.mxu0 %v2502
        %3045 = vmatprep.subr.mxu0 0.0
        %3046 = vmatpush1.msra.mxu0 %v2503
        %3047 = vmatprep.subr.mxu0 0.0
        %3048 = vmatpush1.msra.mxu0 %v2504
        %3049 = vmatprep.subr.mxu0 0.0
        %3050 = vmatpush1.msra.mxu0 %v2505
        %3051 = vmatprep.subr.mxu0 0.0
        %3052 = vmatpush1.msra.mxu0 %v2506
        %3053 = vmatprep.subr.mxu0 0.0
        %3054 = vmatpush1.msra.mxu0 %v2507
        %3055 = vmatprep.subr.mxu0 0.0
        %3056 = vmatpush1.msra.mxu0 %v2508
        %3057 = vmatprep.subr.mxu0 0.0
        %3058 = vmatpush1.msra.mxu0 %v2509
        %3059 = vmatprep.subr.mxu0 0.0
        %3060 = vmatpush1.msra.mxu0 %v2510
        %3061 = vmatprep.subr.mxu0 0.0
        %3062 = vmatpush1.msra.mxu0 %v2511
        %3063 = vmatprep.subr.mxu0 0.0
        %3064 = vmatpush1.msra.mxu0 %v2512
        %3065 = vmatprep.subr.mxu0 0.0
        %3066 = vmatpush1.msra.mxu0 %v2513
        %3067 = vmatprep.subr.mxu0 0.0
        %3068 = vmatpush1.msra.mxu0 %v2514
        %3069 = vmatprep.subr.mxu0 0.0
        %3070 = vmatpush1.msra.mxu0 %v2515
        %3071 = vmatprep.subr.mxu0 0.0
        %3072 = vmatpush1.msra.mxu0 %v2516
        %3073 = vmatprep.subr.mxu0 0.0
        %3074 = vmatpush1.msra.mxu0 %v2517
        %3075 = vmatprep.subr.mxu0 0.0
        %3076 = vmatpush1.msra.mxu0 %v2518
        %3077 = vmatprep.subr.mxu0 0.0
        %3078 = vmatpush1.msra.mxu0 %v2519
        %3079 = vmatprep.subr.mxu0 0.0
        %3080 = vmatpush1.msra.mxu0 %v2520
        %3081 = vmatprep.subr.mxu0 0.0
        %3082 = vmatpush1.msra.mxu0 %v2521
        %3083 = vmatprep.subr.mxu0 0.0
        %3084 = vmatpush1.msra.mxu0 %v2522
        %3085 = vmatprep.subr.mxu0 0.0
        %3086 = vmatpush1.msra.mxu0 %v2523
        %3087 = vmatprep.subr.mxu0 0.0
        %3088 = vmatpush1.msra.mxu0 %v2524
        %3089 = vmatprep.subr.mxu0 0.0
        %3090 = vmatpush1.msra.mxu0 %v2525
        %3091 = vmatprep.subr.mxu0 0.0
        %3092 = vmatpush1.msra.mxu0 %v2526
        %3093 = vmatprep.subr.mxu0 0.0
        %3094 = vmatpush1.msra.mxu0 %v2527
        %3095 = vmatprep.subr.mxu0 0.0
        %3096 = vmatpush1.msra.mxu0 %v2528
        %3097 = vmatprep.subr.mxu0 0.0
        %3098 = vmatpush1.msra.mxu0 %v2529
        %3099 = vmatprep.mubr.f32.mxu0 %v2306
        %3100 = vmatmul.mubr.f32.gmra.mrb[0].mxu0 %v2274
        %v3101 = vpop.f32.mrb[0].mxu0
        %v3102 = vadd.f32 %v2877, %v3101
        %v3103 = vpop.f32.mrb[0].mxu0
        %3104 = vmatprep.mubr.f32.mxu0 %v2307
        %3105 = vmatmul.mubr.f32.gmra.mrb[0].mxu0 %v2275
        %v3106 = vpop.f32.mrb[0].mxu0
        %v3107 = vadd.f32 %v2882, %v3106
        %v3108 = vpop.f32.mrb[0].mxu0
        %3109 = vmatprep.mubr.f32.mxu0 %v2308
        %3110 = vmatmul.mubr.f32.gmra.mrb[0].mxu0 %v2276
        %v3111 = vpop.f32.mrb[0].mxu0
        %v3112 = vadd.f32 %v2887, %v3111
        %v3113 = vpop.f32.mrb[0].mxu0
        %3114 = vmatprep.mubr.f32.mxu0 %v2309
        %3115 = vmatmul.mubr.f32.gmra.mrb[0].mxu0 %v2277
        %v3116 = vpop.f32.mrb[0].mxu0
        %v3117 = vadd.f32 %v2892, %v3116
        %v3118 = vpop.f32.mrb[0].mxu0
        %3119 = vmatprep.mubr.f32.mxu0 %v2310
        %3120 = vmatmul.mubr.f32.gmra.mrb[0].mxu0 %v2278
        %v3121 = vpop.f32.mrb[0].mxu0
        %v3122 = vadd.f32 %v2897, %v3121
        %v3123 = vpop.f32.mrb[0].mxu0
        %3124 = vmatprep.mubr.f32.mxu0 %v2311
        %3125 = vmatmul.mubr.f32.gmra.mrb[0].mxu0 %v2279
        %v3126 = vpop.f32.mrb[0].mxu0
        %v3127 = vadd.f32 %v2902, %v3126
        %v3128 = vpop.f32.mrb[0].mxu0
        %3129 = vmatprep.mubr.f32.mxu0 %v2312
        %3130 = vmatmul.mubr.f32.gmra.mrb[0].mxu0 %v2280
        %v3131 = vpop.f32.mrb[0].mxu0
        %v3132 = vadd.f32 %v2907, %v3131
        %v3133 = vpop.f32.mrb[0].mxu0
        %3134 = vmatprep.mubr.f32.mxu0 %v2313
        %3135 = vmatmul.mubr.f32.gmra.mrb[0].mxu0 %v2281
        %v3136 = vpop.f32.mrb[0].mxu0
        %v3137 = vadd.f32 %v2912, %v3136
        %v3138 = vpop.f32.mrb[0].mxu0
        %3139 = vmatprep.mubr.f32.mxu0 %v2314
        %3140 = vmatmul.mubr.f32.gmra.mrb[0].mxu0 %v2282
        %v3141 = vpop.f32.mrb[0].mxu0
        %v3142 = vadd.f32 %v2917, %v3141
        %v3143 = vpop.f32.mrb[0].mxu0
        %3144 = vmatprep.mubr.f32.mxu0 %v2315
        %3145 = vmatmul.mubr.f32.gmra.mrb[0].mxu0 %v2283
        %v3146 = vpop.f32.mrb[0].mxu0
        %v3147 = vadd.f32 %v2922, %v3146
        %v3148 = vpop.f32.mrb[0].mxu0
        %3149 = vmatprep.mubr.f32.mxu0 %v2316
        %3150 = vmatmul.mubr.f32.gmra.mrb[0].mxu0 %v2284
        %v3151 = vpop.f32.mrb[0].mxu0
        %v3152 = vadd.f32 %v2927, %v3151
        %v3153 = vpop.f32.mrb[0].mxu0
        %3154 = vmatprep.mubr.f32.mxu0 %v2317
        %3155 = vmatmul.mubr.f32.gmra.mrb[0].mxu0 %v2285
        %v3156 = vpop.f32.mrb[0].mxu0
        %v3157 = vadd.f32 %v2932, %v3156
        %v3158 = vpop.f32.mrb[0].mxu0
        %3159 = vmatprep.mubr.f32.mxu0 %v2318
        %3160 = vmatmul.mubr.f32.gmra.mrb[0].mxu0 %v2286
        %v3161 = vpop.f32.mrb[0].mxu0
        %v3162 = vadd.f32 %v2937, %v3161
        %v3163 = vpop.f32.mrb[0].mxu0
        %3164 = vmatprep.mubr.f32.mxu0 %v2319
        %3165 = vmatmul.mubr.f32.gmra.mrb[0].mxu0 %v2287
        %v3166 = vpop.f32.mrb[0].mxu0
        %v3167 = vadd.f32 %v2942, %v3166
        %v3168 = vpop.f32.mrb[0].mxu0
        %3169 = vmatprep.mubr.f32.mxu0 %v2320
        %3170 = vmatmul.mubr.f32.gmra.mrb[0].mxu0 %v2288
        %v3171 = vpop.f32.mrb[0].mxu0
        %v3172 = vadd.f32 %v2947, %v3171
        %v3173 = vpop.f32.mrb[0].mxu0
        %3174 = vmatprep.mubr.f32.mxu0 %v2321
        %3175 = vmatmul.mubr.f32.gmra.mrb[0].mxu0 %v2289
        %v3176 = vpop.f32.mrb[0].mxu0
        %v3177 = vadd.f32 %v2952, %v3176
        %v3178 = vpop.f32.mrb[0].mxu0
        %3179 = vmatprep.mubr.f32.mxu0 %v2322
        %3180 = vmatmul.mubr.f32.gmra.mrb[0].mxu0 %v2290
        %v3181 = vpop.f32.mrb[0].mxu0
        %v3182 = vadd.f32 %v2957, %v3181
        %v3183 = vpop.f32.mrb[0].mxu0
        %3184 = vmatprep.mubr.f32.mxu0 %v2323
        %3185 = vmatmul.mubr.f32.gmra.mrb[0].mxu0 %v2291
        %v3186 = vpop.f32.mrb[0].mxu0
        %v3187 = vadd.f32 %v2962, %v3186
        %v3188 = vpop.f32.mrb[0].mxu0
        %3189 = vmatprep.mubr.f32.mxu0 %v2324
        %3190 = vmatmul.mubr.f32.gmra.mrb[0].mxu0 %v2292
        %v3191 = vpop.f32.mrb[0].mxu0
        %v3192 = vadd.f32 %v2967, %v3191
        %v3193 = vpop.f32.mrb[0].mxu0
        %3194 = vmatprep.mubr.f32.mxu0 %v2325
        %3195 = vmatmul.mubr.f32.gmra.mrb[0].mxu0 %v2293
        %v3196 = vpop.f32.mrb[0].mxu0
        %v3197 = vadd.f32 %v2972, %v3196
        %v3198 = vpop.f32.mrb[0].mxu0
        %3199 = vmatprep.mubr.f32.mxu0 %v2326
        %3200 = vmatmul.mubr.f32.gmra.mrb[0].mxu0 %v2294
        %v3201 = vpop.f32.mrb[0].mxu0
        %v3202 = vadd.f32 %v2977, %v3201
        %v3203 = vpop.f32.mrb[0].mxu0
        %3204 = vmatprep.mubr.f32.mxu0 %v2327
        %3205 = vmatmul.mubr.f32.gmra.mrb[0].mxu0 %v2295
        %v3206 = vpop.f32.mrb[0].mxu0
        %v3207 = vadd.f32 %v2982, %v3206
        %v3208 = vpop.f32.mrb[0].mxu0
        %3209 = vmatprep.mubr.f32.mxu0 %v2328
        %3210 = vmatmul.mubr.f32.gmra.mrb[0].mxu0 %v2296
        %v3211 = vpop.f32.mrb[0].mxu0
        %v3212 = vadd.f32 %v2987, %v3211
        %v3213 = vpop.f32.mrb[0].mxu0
        %3214 = vmatprep.mubr.f32.mxu0 %v2329
        %3215 = vmatmul.mubr.f32.gmra.mrb[0].mxu0 %v2297
        %v3216 = vpop.f32.mrb[0].mxu0
        %v3217 = vadd.f32 %v2992, %v3216
        %v3218 = vpop.f32.mrb[0].mxu0
        %3219 = vmatprep.mubr.f32.mxu0 %v2330
        %3220 = vmatmul.mubr.f32.gmra.mrb[0].mxu0 %v2298
        %v3221 = vpop.f32.mrb[0].mxu0
        %v3222 = vadd.f32 %v2997, %v3221
        %v3223 = vpop.f32.mrb[0].mxu0
        %3224 = vmatprep.mubr.f32.mxu0 %v2331
        %3225 = vmatmul.mubr.f32.gmra.mrb[0].mxu0 %v2299
        %v3226 = vpop.f32.mrb[0].mxu0
        %v3227 = vadd.f32 %v3002, %v3226
        %v3228 = vpop.f32.mrb[0].mxu0
        %3229 = vmatprep.mubr.f32.mxu0 %v2332
        %3230 = vmatmul.mubr.f32.gmra.mrb[0].mxu0 %v2300
        %v3231 = vpop.f32.mrb[0].mxu0
        %v3232 = vadd.f32 %v3007, %v3231
        %v3233 = vpop.f32.mrb[0].mxu0
        %3234 = vmatprep.mubr.f32.mxu0 %v2333
        %3235 = vmatmul.mubr.f32.gmra.mrb[0].mxu0 %v2301
        %v3236 = vpop.f32.mrb[0].mxu0
        %v3237 = vadd.f32 %v3012, %v3236
        %v3238 = vpop.f32.mrb[0].mxu0
        %3239 = vmatprep.mubr.f32.mxu0 %v2334
        %3240 = vmatmul.mubr.f32.gmra.mrb[0].mxu0 %v2302
        %v3241 = vpop.f32.mrb[0].mxu0
        %v3242 = vadd.f32 %v3017, %v3241
        %v3243 = vpop.f32.mrb[0].mxu0
        %3244 = vmatprep.mubr.f32.mxu0 %v2335
        %3245 = vmatmul.mubr.f32.gmra.mrb[0].mxu0 %v2303
        %v3246 = vpop.f32.mrb[0].mxu0
        %v3247 = vadd.f32 %v3022, %v3246
        %v3248 = vpop.f32.mrb[0].mxu0
        %3249 = vmatprep.mubr.f32.mxu0 %v2336
        %3250 = vmatmul.mubr.f32.gmra.mrb[0].mxu0 %v2304
        %v3251 = vpop.f32.mrb[0].mxu0
        %v3252 = vadd.f32 %v3027, %v3251
        %v3253 = vpop.f32.mrb[0].mxu0
        %3254 = vmatprep.mubr.f32.mxu0 %v2337
        %3255 = vmatmul.mubr.f32.gmra.mrb[0].mxu0 %v2305
        %v3256 = vpop.f32.mrb[0].mxu0
        %v3257 = vadd.f32 %v3032, %v3256
        %v3258 = vpop.f32.mrb[0].mxu0
        %3259 = vdwg.mxu0
        %3260 = vmatprep.subr.mxu0 0.0
        %3261 = vmatpush1.msra.mxu0 %v2530
        %3262 = vmatprep.subr.mxu0 0.0
        %3263 = vmatpush1.msra.mxu0 %v2531
        %3264 = vmatprep.subr.mxu0 0.0
        %3265 = vmatpush1.msra.mxu0 %v2532
        %3266 = vmatprep.subr.mxu0 0.0
        %3267 = vmatpush1.msra.mxu0 %v2533
        %3268 = vmatprep.subr.mxu0 0.0
        %3269 = vmatpush1.msra.mxu0 %v2534
        %3270 = vmatprep.subr.mxu0 0.0
        %3271 = vmatpush1.msra.mxu0 %v2535
        %3272 = vmatprep.subr.mxu0 0.0
        %3273 = vmatpush1.msra.mxu0 %v2536
        %3274 = vmatprep.subr.mxu0 0.0
        %3275 = vmatpush1.msra.mxu0 %v2537
        %3276 = vmatprep.subr.mxu0 0.0
        %3277 = vmatpush1.msra.mxu0 %v2538
        %3278 = vmatprep.subr.mxu0 0.0
        %3279 = vmatpush1.msra.mxu0 %v2539
        %3280 = vmatprep.subr.mxu0 0.0
        %3281 = vmatpush1.msra.mxu0 %v2540
        %3282 = vmatprep.subr.mxu0 0.0
        %3283 = vmatpush1.msra.mxu0 %v2541
        %3284 = vmatprep.subr.mxu0 0.0
        %3285 = vmatpush1.msra.mxu0 %v2542
        %3286 = vmatprep.subr.mxu0 0.0
        %3287 = vmatpush1.msra.mxu0 %v2543
        %3288 = vmatprep.subr.mxu0 0.0
        %3289 = vmatpush1.msra.mxu0 %v2544
        %3290 = vmatprep.subr.mxu0 0.0
        %3291 = vmatpush1.msra.mxu0 %v2545
        %3292 = vmatprep.subr.mxu0 0.0
        %3293 = vmatpush1.msra.mxu0 %v2546
        %3294 = vmatprep.subr.mxu0 0.0
        %3295 = vmatpush1.msra.mxu0 %v2547
        %3296 = vmatprep.subr.mxu0 0.0
        %3297 = vmatpush1.msra.mxu0 %v2548
        %3298 = vmatprep.subr.mxu0 0.0
        %3299 = vmatpush1.msra.mxu0 %v2549
        %3300 = vmatprep.subr.mxu0 0.0
        %3301 = vmatpush1.msra.mxu0 %v2550
        %3302 = vmatprep.subr.mxu0 0.0
        %3303 = vmatpush1.msra.mxu0 %v2551
        %3304 = vmatprep.subr.mxu0 0.0
        %3305 = vmatpush1.msra.mxu0 %v2552
        %3306 = vmatprep.subr.mxu0 0.0
        %3307 = vmatpush1.msra.mxu0 %v2553
        %3308 = vmatprep.subr.mxu0 0.0
        %3309 = vmatpush1.msra.mxu0 %v2554
        %3310 = vmatprep.subr.mxu0 0.0
        %3311 = vmatpush1.msra.mxu0 %v2555
        %3312 = vmatprep.subr.mxu0 0.0
        %3313 = vmatpush1.msra.mxu0 %v2556
        %3314 = vmatprep.subr.mxu0 0.0
        %3315 = vmatpush1.msra.mxu0 %v2557
        %3316 = vmatprep.subr.mxu0 0.0
        %3317 = vmatpush1.msra.mxu0 %v2558
        %3318 = vmatprep.subr.mxu0 0.0
        %3319 = vmatpush1.msra.mxu0 %v2559
        %3320 = vmatprep.subr.mxu0 0.0
        %3321 = vmatpush1.msra.mxu0 %v2560
        %3322 = vmatprep.subr.mxu0 0.0
        %3323 = vmatpush1.msra.mxu0 %v2561
        %3324 = vmatprep.mubr.f32.mxu0 %v2370
        %3325 = vmatmul.mubr.f32.gmra.mrb[0].mxu0 %v2338
        %v3326 = vpop.f32.mrb[0].mxu0
        %v3327 = vadd.f32 %v3102, %v3326
        %v3328 = vpop.f32.mrb[0].mxu0
        %3329 = vmatprep.mubr.f32.mxu0 %v2371
        %3330 = vmatmul.mubr.f32.gmra.mrb[0].mxu0 %v2339
        %v3331 = vpop.f32.mrb[0].mxu0
        %v3332 = vadd.f32 %v3107, %v3331
        %v3333 = vpop.f32.mrb[0].mxu0
        %3334 = vmatprep.mubr.f32.mxu0 %v2372
        %3335 = vmatmul.mubr.f32.gmra.mrb[0].mxu0 %v2340
        %v3336 = vpop.f32.mrb[0].mxu0
        %v3337 = vadd.f32 %v3112, %v3336
        %v3338 = vpop.f32.mrb[0].mxu0
        %3339 = vmatprep.mubr.f32.mxu0 %v2373
        %3340 = vmatmul.mubr.f32.gmra.mrb[0].mxu0 %v2341
        %v3341 = vpop.f32.mrb[0].mxu0
        %v3342 = vadd.f32 %v3117, %v3341
        %v3343 = vpop.f32.mrb[0].mxu0
        %3344 = vmatprep.mubr.f32.mxu0 %v2374
        %3345 = vmatmul.mubr.f32.gmra.mrb[0].mxu0 %v2342
        %v3346 = vpop.f32.mrb[0].mxu0
        %v3347 = vadd.f32 %v3122, %v3346
        %v3348 = vpop.f32.mrb[0].mxu0
        %3349 = vmatprep.mubr.f32.mxu0 %v2375
        %3350 = vmatmul.mubr.f32.gmra.mrb[0].mxu0 %v2343
        %v3351 = vpop.f32.mrb[0].mxu0
        %v3352 = vadd.f32 %v3127, %v3351
        %v3353 = vpop.f32.mrb[0].mxu0
        %3354 = vmatprep.mubr.f32.mxu0 %v2376
        %3355 = vmatmul.mubr.f32.gmra.mrb[0].mxu0 %v2344
        %v3356 = vpop.f32.mrb[0].mxu0
        %v3357 = vadd.f32 %v3132, %v3356
        %v3358 = vpop.f32.mrb[0].mxu0
        %3359 = vmatprep.mubr.f32.mxu0 %v2377
        %3360 = vmatmul.mubr.f32.gmra.mrb[0].mxu0 %v2345
        %v3361 = vpop.f32.mrb[0].mxu0
        %v3362 = vadd.f32 %v3137, %v3361
        %v3363 = vpop.f32.mrb[0].mxu0
        %3364 = vmatprep.mubr.f32.mxu0 %v2378
        %3365 = vmatmul.mubr.f32.gmra.mrb[0].mxu0 %v2346
        %v3366 = vpop.f32.mrb[0].mxu0
        %v3367 = vadd.f32 %v3142, %v3366
        %v3368 = vpop.f32.mrb[0].mxu0
        %3369 = vmatprep.mubr.f32.mxu0 %v2379
        %3370 = vmatmul.mubr.f32.gmra.mrb[0].mxu0 %v2347
        %v3371 = vpop.f32.mrb[0].mxu0
        %v3372 = vadd.f32 %v3147, %v3371
        %v3373 = vpop.f32.mrb[0].mxu0
        %3374 = vmatprep.mubr.f32.mxu0 %v2380
        %3375 = vmatmul.mubr.f32.gmra.mrb[0].mxu0 %v2348
        %v3376 = vpop.f32.mrb[0].mxu0
        %v3377 = vadd.f32 %v3152, %v3376
        %v3378 = vpop.f32.mrb[0].mxu0
        %3379 = vmatprep.mubr.f32.mxu0 %v2381
        %3380 = vmatmul.mubr.f32.gmra.mrb[0].mxu0 %v2349
        %v3381 = vpop.f32.mrb[0].mxu0
        %v3382 = vadd.f32 %v3157, %v3381
        %v3383 = vpop.f32.mrb[0].mxu0
        %3384 = vmatprep.mubr.f32.mxu0 %v2382
        %3385 = vmatmul.mubr.f32.gmra.mrb[0].mxu0 %v2350
        %v3386 = vpop.f32.mrb[0].mxu0
        %v3387 = vadd.f32 %v3162, %v3386
        %v3388 = vpop.f32.mrb[0].mxu0
        %3389 = vmatprep.mubr.f32.mxu0 %v2383
        %3390 = vmatmul.mubr.f32.gmra.mrb[0].mxu0 %v2351
        %v3391 = vpop.f32.mrb[0].mxu0
        %v3392 = vadd.f32 %v3167, %v3391
        %v3393 = vpop.f32.mrb[0].mxu0
        %3394 = vmatprep.mubr.f32.mxu0 %v2384
        %3395 = vmatmul.mubr.f32.gmra.mrb[0].mxu0 %v2352
        %v3396 = vpop.f32.mrb[0].mxu0
        %v3397 = vadd.f32 %v3172, %v3396
        %v3398 = vpop.f32.mrb[0].mxu0
        %3399 = vmatprep.mubr.f32.mxu0 %v2385
        %3400 = vmatmul.mubr.f32.gmra.mrb[0].mxu0 %v2353
        %v3401 = vpop.f32.mrb[0].mxu0
        %v3402 = vadd.f32 %v3177, %v3401
        %v3403 = vpop.f32.mrb[0].mxu0
        %3404 = vmatprep.mubr.f32.mxu0 %v2386
        %3405 = vmatmul.mubr.f32.gmra.mrb[0].mxu0 %v2354
        %v3406 = vpop.f32.mrb[0].mxu0
        %v3407 = vadd.f32 %v3182, %v3406
        %v3408 = vpop.f32.mrb[0].mxu0
        %3409 = vmatprep.mubr.f32.mxu0 %v2387
        %3410 = vmatmul.mubr.f32.gmra.mrb[0].mxu0 %v2355
        %v3411 = vpop.f32.mrb[0].mxu0
        %v3412 = vadd.f32 %v3187, %v3411
        %v3413 = vpop.f32.mrb[0].mxu0
        %3414 = vmatprep.mubr.f32.mxu0 %v2388
        %3415 = vmatmul.mubr.f32.gmra.mrb[0].mxu0 %v2356
        %v3416 = vpop.f32.mrb[0].mxu0
        %v3417 = vadd.f32 %v3192, %v3416
        %v3418 = vpop.f32.mrb[0].mxu0
        %3419 = vmatprep.mubr.f32.mxu0 %v2389
        %3420 = vmatmul.mubr.f32.gmra.mrb[0].mxu0 %v2357
        %v3421 = vpop.f32.mrb[0].mxu0
        %v3422 = vadd.f32 %v3197, %v3421
        %v3423 = vpop.f32.mrb[0].mxu0
        %3424 = vmatprep.mubr.f32.mxu0 %v2390
        %3425 = vmatmul.mubr.f32.gmra.mrb[0].mxu0 %v2358
        %v3426 = vpop.f32.mrb[0].mxu0
        %v3427 = vadd.f32 %v3202, %v3426
        %v3428 = vpop.f32.mrb[0].mxu0
        %3429 = vmatprep.mubr.f32.mxu0 %v2391
        %3430 = vmatmul.mubr.f32.gmra.mrb[0].mxu0 %v2359
        %v3431 = vpop.f32.mrb[0].mxu0
        %v3432 = vadd.f32 %v3207, %v3431
        %v3433 = vpop.f32.mrb[0].mxu0
        %3434 = vmatprep.mubr.f32.mxu0 %v2392
        %3435 = vmatmul.mubr.f32.gmra.mrb[0].mxu0 %v2360
        %v3436 = vpop.f32.mrb[0].mxu0
        %v3437 = vadd.f32 %v3212, %v3436
        %v3438 = vpop.f32.mrb[0].mxu0
        %3439 = vmatprep.mubr.f32.mxu0 %v2393
        %3440 = vmatmul.mubr.f32.gmra.mrb[0].mxu0 %v2361
        %v3441 = vpop.f32.mrb[0].mxu0
        %v3442 = vadd.f32 %v3217, %v3441
        %v3443 = vpop.f32.mrb[0].mxu0
        %3444 = vmatprep.mubr.f32.mxu0 %v2394
        %3445 = vmatmul.mubr.f32.gmra.mrb[0].mxu0 %v2362
        %v3446 = vpop.f32.mrb[0].mxu0
        %v3447 = vadd.f32 %v3222, %v3446
        %v3448 = vpop.f32.mrb[0].mxu0
        %3449 = vmatprep.mubr.f32.mxu0 %v2395
        %3450 = vmatmul.mubr.f32.gmra.mrb[0].mxu0 %v2363
        %v3451 = vpop.f32.mrb[0].mxu0
        %v3452 = vadd.f32 %v3227, %v3451
        %v3453 = vpop.f32.mrb[0].mxu0
        %3454 = vmatprep.mubr.f32.mxu0 %v2396
        %3455 = vmatmul.mubr.f32.gmra.mrb[0].mxu0 %v2364
        %v3456 = vpop.f32.mrb[0].mxu0
        %v3457 = vadd.f32 %v3232, %v3456
        %v3458 = vpop.f32.mrb[0].mxu0
        %3459 = vmatprep.mubr.f32.mxu0 %v2397
        %3460 = vmatmul.mubr.f32.gmra.mrb[0].mxu0 %v2365
        %v3461 = vpop.f32.mrb[0].mxu0
        %v3462 = vadd.f32 %v3237, %v3461
        %v3463 = vpop.f32.mrb[0].mxu0
        %3464 = vmatprep.mubr.f32.mxu0 %v2398
        %3465 = vmatmul.mubr.f32.gmra.mrb[0].mxu0 %v2366
        %v3466 = vpop.f32.mrb[0].mxu0
        %v3467 = vadd.f32 %v3242, %v3466
        %v3468 = vpop.f32.mrb[0].mxu0
        %3469 = vmatprep.mubr.f32.mxu0 %v2399
        %3470 = vmatmul.mubr.f32.gmra.mrb[0].mxu0 %v2367
        %v3471 = vpop.f32.mrb[0].mxu0
        %v3472 = vadd.f32 %v3247, %v3471
        %v3473 = vpop.f32.mrb[0].mxu0
        %3474 = vmatprep.mubr.f32.mxu0 %v2400
        %3475 = vmatmul.mubr.f32.gmra.mrb[0].mxu0 %v2368
        %v3476 = vpop.f32.mrb[0].mxu0
        %v3477 = vadd.f32 %v3252, %v3476
        %v3478 = vpop.f32.mrb[0].mxu0
        %3479 = vmatprep.mubr.f32.mxu0 %v2401
        %3480 = vmatmul.mubr.f32.gmra.mrb[0].mxu0 %v2369
        %v3481 = vpop.f32.mrb[0].mxu0
        %v3482 = vadd.f32 %v3257, %v3481
        %v3483 = vpop.f32.mrb[0].mxu0
        %3484 = vdwg.mxu0
        %3485 = vmatprep.subr.mxu0 0.0
        %3486 = vmatpush1.msra.mxu0 %v2562
        %3487 = vmatprep.subr.mxu0 0.0
        %3488 = vmatpush1.msra.mxu0 %v2563
        %3489 = vmatprep.subr.mxu0 0.0
        %3490 = vmatpush1.msra.mxu0 %v2564
        %3491 = vmatprep.subr.mxu0 0.0
        %3492 = vmatpush1.msra.mxu0 %v2565
        %3493 = vmatprep.subr.mxu0 0.0
        %3494 = vmatpush1.msra.mxu0 %v2566
        %3495 = vmatprep.subr.mxu0 0.0
        %3496 = vmatpush1.msra.mxu0 %v2567
        %3497 = vmatprep.subr.mxu0 0.0
        %3498 = vmatpush1.msra.mxu0 %v2568
        %3499 = vmatprep.subr.mxu0 0.0
        %3500 = vmatpush1.msra.mxu0 %v2569
        %3501 = vmatprep.subr.mxu0 0.0
        %3502 = vmatpush1.msra.mxu0 %v2570
        %3503 = vmatprep.subr.mxu0 0.0
        %3504 = vmatpush1.msra.mxu0 %v2571
        %3505 = vmatprep.subr.mxu0 0.0
        %3506 = vmatpush1.msra.mxu0 %v2572
        %3507 = vmatprep.subr.mxu0 0.0
        %3508 = vmatpush1.msra.mxu0 %v2573
        %3509 = vmatprep.subr.mxu0 0.0
        %3510 = vmatpush1.msra.mxu0 %v2574
        %3511 = vmatprep.subr.mxu0 0.0
        %3512 = vmatpush1.msra.mxu0 %v2575
        %3513 = vmatprep.subr.mxu0 0.0
        %3514 = vmatpush1.msra.mxu0 %v2576
        %3515 = vmatprep.subr.mxu0 0.0
        %3516 = vmatpush1.msra.mxu0 %v2577
        %3517 = vmatprep.subr.mxu0 0.0
        %3518 = vmatpush1.msra.mxu0 0.0
        %3519 = vmatprep.subr.mxu0 0.0
        %3520 = vmatpush1.msra.mxu0 0.0
        %3521 = vmatprep.subr.mxu0 0.0
        %3522 = vmatpush1.msra.mxu0 0.0
        %3523 = vmatprep.subr.mxu0 0.0
        %3524 = vmatpush1.msra.mxu0 0.0
        %3525 = vmatprep.subr.mxu0 0.0
        %3526 = vmatpush1.msra.mxu0 0.0
        %3527 = vmatprep.subr.mxu0 0.0
        %3528 = vmatpush1.msra.mxu0 0.0
        %3529 = vmatprep.subr.mxu0 0.0
        %3530 = vmatpush1.msra.mxu0 0.0
        %3531 = vmatprep.subr.mxu0 0.0
        %3532 = vmatpush1.msra.mxu0 0.0
        %3533 = vmatprep.subr.mxu0 0.0
        %3534 = vmatpush1.msra.mxu0 0.0
        %3535 = vmatprep.subr.mxu0 0.0
        %3536 = vmatpush1.msra.mxu0 0.0
        %3537 = vmatprep.subr.mxu0 0.0
        %3538 = vmatpush1.msra.mxu0 0.0
        %3539 = vmatprep.subr.mxu0 0.0
        %3540 = vmatpush1.msra.mxu0 0.0
        %3541 = vmatprep.subr.mxu0 0.0
        %3542 = vmatpush1.msra.mxu0 0.0
        %3543 = vmatprep.subr.mxu0 0.0
        %3544 = vmatpush1.msra.mxu0 0.0
        %3545 = vmatprep.subr.mxu0 0.0
        %3546 = vmatpush1.msra.mxu0 0.0
        %3547 = vmatprep.subr.mxu0 0.0
        %3548 = vmatpush1.msra.mxu0 0.0
        %3549 = vmatprep.mubr.f32.mxu0 0.0
        %3550 = vmatmul.mubr.f32.gmra.mrb[0].mxu0 %v2402
        %v3551 = vpop.f32.mrb[0].mxu0
        %v3552 = vadd.f32 %v3327, %v3551
        %v3553 = vpop.f32.mrb[0].mxu0
        %3554 = vmatprep.mubr.f32.mxu0 0.0
        %3555 = vmatmul.mubr.f32.gmra.mrb[0].mxu0 %v2403
        %v3556 = vpop.f32.mrb[0].mxu0
        %v3557 = vadd.f32 %v3332, %v3556
        %v3558 = vpop.f32.mrb[0].mxu0
        %3559 = vmatprep.mubr.f32.mxu0 0.0
        %3560 = vmatmul.mubr.f32.gmra.mrb[0].mxu0 %v2404
        %v3561 = vpop.f32.mrb[0].mxu0
        %v3562 = vadd.f32 %v3337, %v3561
        %v3563 = vpop.f32.mrb[0].mxu0
        %3564 = vmatprep.mubr.f32.mxu0 0.0
        %3565 = vmatmul.mubr.f32.gmra.mrb[0].mxu0 %v2405
        %v3566 = vpop.f32.mrb[0].mxu0
        %v3567 = vadd.f32 %v3342, %v3566
        %v3568 = vpop.f32.mrb[0].mxu0
        %3569 = vmatprep.mubr.f32.mxu0 0.0
        %3570 = vmatmul.mubr.f32.gmra.mrb[0].mxu0 %v2406
        %v3571 = vpop.f32.mrb[0].mxu0
        %v3572 = vadd.f32 %v3347, %v3571
        %v3573 = vpop.f32.mrb[0].mxu0
        %3574 = vmatprep.mubr.f32.mxu0 0.0
        %3575 = vmatmul.mubr.f32.gmra.mrb[0].mxu0 %v2407
        %v3576 = vpop.f32.mrb[0].mxu0
        %v3577 = vadd.f32 %v3352, %v3576
        %v3578 = vpop.f32.mrb[0].mxu0
        %3579 = vmatprep.mubr.f32.mxu0 0.0
        %3580 = vmatmul.mubr.f32.gmra.mrb[0].mxu0 %v2408
        %v3581 = vpop.f32.mrb[0].mxu0
        %v3582 = vadd.f32 %v3357, %v3581
        %v3583 = vpop.f32.mrb[0].mxu0
        %3584 = vmatprep.mubr.f32.mxu0 0.0
        %3585 = vmatmul.mubr.f32.gmra.mrb[0].mxu0 %v2409
        %v3586 = vpop.f32.mrb[0].mxu0
        %v3587 = vadd.f32 %v3362, %v3586
        %v3588 = vpop.f32.mrb[0].mxu0
        %3589 = vmatprep.mubr.f32.mxu0 0.0
        %3590 = vmatmul.mubr.f32.gmra.mrb[0].mxu0 %v2410
        %v3591 = vpop.f32.mrb[0].mxu0
        %v3592 = vadd.f32 %v3367, %v3591
        %v3593 = vpop.f32.mrb[0].mxu0
        %3594 = vmatprep.mubr.f32.mxu0 0.0
        %3595 = vmatmul.mubr.f32.gmra.mrb[0].mxu0 %v2411
        %v3596 = vpop.f32.mrb[0].mxu0
        %v3597 = vadd.f32 %v3372, %v3596
        %v3598 = vpop.f32.mrb[0].mxu0
        %3599 = vmatprep.mubr.f32.mxu0 0.0
        %3600 = vmatmul.mubr.f32.gmra.mrb[0].mxu0 %v2412
        %v3601 = vpop.f32.mrb[0].mxu0
        %v3602 = vadd.f32 %v3377, %v3601
        %v3603 = vpop.f32.mrb[0].mxu0
        %3604 = vmatprep.mubr.f32.mxu0 0.0
        %3605 = vmatmul.mubr.f32.gmra.mrb[0].mxu0 %v2413
        %v3606 = vpop.f32.mrb[0].mxu0
        %v3607 = vadd.f32 %v3382, %v3606
        %v3608 = vpop.f32.mrb[0].mxu0
        %3609 = vmatprep.mubr.f32.mxu0 0.0
        %3610 = vmatmul.mubr.f32.gmra.mrb[0].mxu0 %v2414
        %v3611 = vpop.f32.mrb[0].mxu0
        %v3612 = vadd.f32 %v3387, %v3611
        %v3613 = vpop.f32.mrb[0].mxu0
        %3614 = vmatprep.mubr.f32.mxu0 0.0
        %3615 = vmatmul.mubr.f32.gmra.mrb[0].mxu0 %v2415
        %v3616 = vpop.f32.mrb[0].mxu0
        %v3617 = vadd.f32 %v3392, %v3616
        %v3618 = vpop.f32.mrb[0].mxu0
        %3619 = vmatprep.mubr.f32.mxu0 0.0
        %3620 = vmatmul.mubr.f32.gmra.mrb[0].mxu0 %v2416
        %v3621 = vpop.f32.mrb[0].mxu0
        %v3622 = vadd.f32 %v3397, %v3621
        %v3623 = vpop.f32.mrb[0].mxu0
        %3624 = vmatprep.mubr.f32.mxu0 0.0
        %3625 = vmatmul.mubr.f32.gmra.mrb[0].mxu0 %v2417
        %v3626 = vpop.f32.mrb[0].mxu0
        %v3627 = vadd.f32 %v3402, %v3626
        %v3628 = vpop.f32.mrb[0].mxu0
        %3629 = vmatprep.mubr.f32.mxu0 0.0
        %3630 = vmatmul.mubr.f32.gmra.mrb[0].mxu0 %v2418
        %v3631 = vpop.f32.mrb[0].mxu0
        %v3632 = vadd.f32 %v3407, %v3631
        %v3633 = vpop.f32.mrb[0].mxu0
        %3634 = vmatprep.mubr.f32.mxu0 0.0
        %3635 = vmatmul.mubr.f32.gmra.mrb[0].mxu0 %v2419
        %v3636 = vpop.f32.mrb[0].mxu0
        %v3637 = vadd.f32 %v3412, %v3636
        %v3638 = vpop.f32.mrb[0].mxu0
        %3639 = vmatprep.mubr.f32.mxu0 0.0
        %3640 = vmatmul.mubr.f32.gmra.mrb[0].mxu0 %v2420
        %v3641 = vpop.f32.mrb[0].mxu0
        %v3642 = vadd.f32 %v3417, %v3641
        %v3643 = vpop.f32.mrb[0].mxu0
        %3644 = vmatprep.mubr.f32.mxu0 0.0
        %3645 = vmatmul.mubr.f32.gmra.mrb[0].mxu0 %v2421
        %v3646 = vpop.f32.mrb[0].mxu0
        %v3647 = vadd.f32 %v3422, %v3646
        %v3648 = vpop.f32.mrb[0].mxu0
        %3649 = vmatprep.mubr.f32.mxu0 0.0
        %3650 = vmatmul.mubr.f32.gmra.mrb[0].mxu0 %v2422
        %v3651 = vpop.f32.mrb[0].mxu0
        %v3652 = vadd.f32 %v3427, %v3651
        %v3653 = vpop.f32.mrb[0].mxu0
        %3654 = vmatprep.mubr.f32.mxu0 0.0
        %3655 = vmatmul.mubr.f32.gmra.mrb[0].mxu0 %v2423
        %v3656 = vpop.f32.mrb[0].mxu0
        %v3657 = vadd.f32 %v3432, %v3656
        %v3658 = vpop.f32.mrb[0].mxu0
        %3659 = vmatprep.mubr.f32.mxu0 0.0
        %3660 = vmatmul.mubr.f32.gmra.mrb[0].mxu0 %v2424
        %v3661 = vpop.f32.mrb[0].mxu0
        %v3662 = vadd.f32 %v3437, %v3661
        %v3663 = vpop.f32.mrb[0].mxu0
        %3664 = vmatprep.mubr.f32.mxu0 0.0
        %3665 = vmatmul.mubr.f32.gmra.mrb[0].mxu0 %v2425
        %v3666 = vpop.f32.mrb[0].mxu0
        %v3667 = vadd.f32 %v3442, %v3666
        %v3668 = vpop.f32.mrb[0].mxu0
        %3669 = vmatprep.mubr.f32.mxu0 0.0
        %3670 = vmatmul.mubr.f32.gmra.mrb[0].mxu0 %v2426
        %v3671 = vpop.f32.mrb[0].mxu0
        %v3672 = vadd.f32 %v3447, %v3671
        %v3673 = vpop.f32.mrb[0].mxu0
        %3674 = vmatprep.mubr.f32.mxu0 0.0
        %3675 = vmatmul.mubr.f32.gmra.mrb[0].mxu0 %v2427
        %v3676 = vpop.f32.mrb[0].mxu0
        %v3677 = vadd.f32 %v3452, %v3676
        %v3678 = vpop.f32.mrb[0].mxu0
        %3679 = vmatprep.mubr.f32.mxu0 0.0
        %3680 = vmatmul.mubr.f32.gmra.mrb[0].mxu0 %v2428
        %v3681 = vpop.f32.mrb[0].mxu0
        %v3682 = vadd.f32 %v3457, %v3681
        %v3683 = vpop.f32.mrb[0].mxu0
        %3684 = vmatprep.mubr.f32.mxu0 0.0
        %3685 = vmatmul.mubr.f32.gmra.mrb[0].mxu0 %v2429
        %v3686 = vpop.f32.mrb[0].mxu0
        %v3687 = vadd.f32 %v3462, %v3686
        %v3688 = vpop.f32.mrb[0].mxu0
        %3689 = vmatprep.mubr.f32.mxu0 0.0
        %3690 = vmatmul.mubr.f32.gmra.mrb[0].mxu0 %v2430
        %v3691 = vpop.f32.mrb[0].mxu0
        %v3692 = vadd.f32 %v3467, %v3691
        %v3693 = vpop.f32.mrb[0].mxu0
        %3694 = vmatprep.mubr.f32.mxu0 0.0
        %3695 = vmatmul.mubr.f32.gmra.mrb[0].mxu0 %v2431
        %v3696 = vpop.f32.mrb[0].mxu0
        %v3697 = vadd.f32 %v3472, %v3696
        %v3698 = vpop.f32.mrb[0].mxu0
        %3699 = vmatprep.mubr.f32.mxu0 0.0
        %3700 = vmatmul.mubr.f32.gmra.mrb[0].mxu0 %v2432
        %v3701 = vpop.f32.mrb[0].mxu0
        %v3702 = vadd.f32 %v3477, %v3701
        %v3703 = vpop.f32.mrb[0].mxu0
        %3704 = vmatprep.mubr.f32.mxu0 0.0
        %3705 = vmatmul.mubr.f32.gmra.mrb[0].mxu0 %v2433
        %v3706 = vpop.f32.mrb[0].mxu0
        %v3707 = vadd.f32 %v3482, %v3706
        %v3708 = vpop.f32.mrb[0].mxu0
        %3709 = vdwg.mxu0
        %v3710 = vadd.f32 %v3552, %v3557
        %v3711 = vadd.f32 %v3710, %v3562
        %v3712 = vadd.f32 %v3711, %v3567
        %v3713 = vadd.f32 %v3712, %v3572
        %v3714 = vadd.f32 %v3713, %v3577
        %v3715 = vadd.f32 %v3714, %v3582
        %v3716 = vadd.f32 %v3715, %v3587
        %v3717 = vadd.f32 %v3716, %v3592
        %v3718 = vadd.f32 %v3717, %v3597
        %v3719 = vadd.f32 %v3718, %v3602
        %v3720 = vadd.f32 %v3719, %v3607
        %v3721 = vadd.f32 %v3720, %v3612
        %v3722 = vadd.f32 %v3721, %v3617
        %v3723 = vadd.f32 %v3722, %v3622
        %v3724 = vadd.f32 %v3723, %v3627
        %v3725 = vadd.f32 %v3724, %v3632
        %v3726 = vadd.f32 %v3725, %v3637
        %v3727 = vadd.f32 %v3726, %v3642
        %v3728 = vadd.f32 %v3727, %v3647
        %v3729 = vadd.f32 %v3728, %v3652
        %v3730 = vadd.f32 %v3729, %v3657
        %v3731 = vadd.f32 %v3730, %v3662
        %v3732 = vadd.f32 %v3731, %v3667
        %v3733 = vadd.f32 %v3732, %v3672
        %v3734 = vadd.f32 %v3733, %v3677
        %v3735 = vadd.f32 %v3734, %v3682
        %v3736 = vadd.f32 %v3735, %v3687
        %v3737 = vadd.f32 %v3736, %v3692
        %v3738 = vadd.f32 %v3737, %v3697
        %v3739 = vadd.f32 %v3738, %v3702
        %v3740 = vadd.f32 %v3739, %v3707
        %v3741 = vrot.slane %v3740, 4
        %v3742 = vadd.f32 %v3740, %v3741
        %v3743 = vrot.slane %v3742, 2
        %v3744 = vadd.f32 %v3742, %v3743
        %v3745 = vrot.slane %v3744, 1
        %v3746 = vadd.f32 %v3744, %v3745
        %v3747 = vrcp.pop 256.0
        %v3748 = vmul.f32 %v3746, %v3747
        %v3749 = vld [vmem:[%s5] sm:$0xff]
        %v3750 = vld [vmem:[%s5 + $0x8] sm:$0xff]
        %v3751 = vld [vmem:[%s5 + $0x10] sm:$0xff]
        %v3752 = vld [vmem:[%s5 + $0x18] sm:$0xff]
        %v3753 = vld [vmem:[%s5 + $0x20] sm:$0xff]
        %v3754 = vld [vmem:[%s5 + $0x28] sm:$0xff]
        %v3755 = vld [vmem:[%s5 + $0x30] sm:$0xff]
        %v3756 = vld [vmem:[%s5 + $0x38] sm:$0xff]
        %v3757 = vld [vmem:[%s5 + $0x40] sm:$0xff]
        %v3758 = vld [vmem:[%s5 + $0x48] sm:$0xff]
        %v3759 = vld [vmem:[%s5 + $0x50] sm:$0xff]
        %v3760 = vld [vmem:[%s5 + $0x58] sm:$0xff]
        %v3761 = vld [vmem:[%s5 + $0x60] sm:$0xff]
        %v3762 = vld [vmem:[%s5 + $0x68] sm:$0xff]
        %v3763 = vld [vmem:[%s5 + $0x70] sm:$0xff]
        %v3764 = vld [vmem:[%s5 + $0x78] sm:$0xff]
        %v3765 = vld [vmem:[%s6] sm:$0x1]
        %3766 = vmatprep.subr.mxu0 0.0
        %3767 = vmatpush1.msra.mxu0 %v3749
        %3768 = vmatprep.subr.mxu0 0.0
        %3769 = vmatpush1.msra.mxu0 %v3750
        %3770 = vmatprep.subr.mxu0 0.0
        %3771 = vmatpush1.msra.mxu0 %v3751
        %3772 = vmatprep.subr.mxu0 0.0
        %3773 = vmatpush1.msra.mxu0 %v3752
        %3774 = vmatprep.subr.mxu0 0.0
        %3775 = vmatpush1.msra.mxu0 %v3753
        %3776 = vmatprep.subr.mxu0 0.0
        %3777 = vmatpush1.msra.mxu0 %v3754
        %3778 = vmatprep.subr.mxu0 0.0
        %3779 = vmatpush1.msra.mxu0 %v3755
        %3780 = vmatprep.subr.mxu0 0.0
        %3781 = vmatpush1.msra.mxu0 %v3756
        %3782 = vmatprep.subr.mxu0 0.0
        %3783 = vmatpush1.msra.mxu0 %v3757
        %3784 = vmatprep.subr.mxu0 0.0
        %3785 = vmatpush1.msra.mxu0 %v3758
        %3786 = vmatprep.subr.mxu0 0.0
        %3787 = vmatpush1.msra.mxu0 %v3759
        %3788 = vmatprep.subr.mxu0 0.0
        %3789 = vmatpush1.msra.mxu0 %v3760
        %3790 = vmatprep.subr.mxu0 0.0
        %3791 = vmatpush1.msra.mxu0 %v3761
        %3792 = vmatprep.subr.mxu0 0.0
        %3793 = vmatpush1.msra.mxu0 %v3762
        %3794 = vmatprep.subr.mxu0 0.0
        %3795 = vmatpush1.msra.mxu0 %v3763
        %3796 = vmatprep.subr.mxu0 0.0
        %3797 = vmatpush1.msra.mxu0 %v3764
        %3798 = vmatprep.subr.mxu0 0.0
        %3799 = vmatpush1.msra.mxu0 0.0
        %3800 = vmatprep.subr.mxu0 0.0
        %3801 = vmatpush1.msra.mxu0 0.0
        %3802 = vmatprep.subr.mxu0 0.0
        %3803 = vmatpush1.msra.mxu0 0.0
        %3804 = vmatprep.subr.mxu0 0.0
        %3805 = vmatpush1.msra.mxu0 0.0
        %3806 = vmatprep.subr.mxu0 0.0
        %3807 = vmatpush1.msra.mxu0 0.0
        %3808 = vmatprep.subr.mxu0 0.0
        %3809 = vmatpush1.msra.mxu0 0.0
        %3810 = vmatprep.subr.mxu0 0.0
        %3811 = vmatpush1.msra.mxu0 0.0
        %3812 = vmatprep.subr.mxu0 0.0
        %3813 = vmatpush1.msra.mxu0 0.0
        %3814 = vmatprep.subr.mxu0 0.0
        %3815 = vmatpush1.msra.mxu0 0.0
        %3816 = vmatprep.subr.mxu0 0.0
        %3817 = vmatpush1.msra.mxu0 0.0
        %3818 = vmatprep.subr.mxu0 0.0
        %3819 = vmatpush1.msra.mxu0 0.0
        %3820 = vmatprep.subr.mxu0 0.0
        %3821 = vmatpush1.msra.mxu0 0.0
        %3822 = vmatprep.subr.mxu0 0.0
        %3823 = vmatpush1.msra.mxu0 0.0
        %3824 = vmatprep.subr.mxu0 0.0
        %3825 = vmatpush1.msra.mxu0 0.0
        %3826 = vmatprep.subr.mxu0 0.0
        %3827 = vmatpush1.msra.mxu0 0.0
        %3828 = vmatprep.subr.mxu0 0.0
        %3829 = vmatpush1.msra.mxu0 0.0
        %3830 = vmatprep.mubr.f32.mxu0 0.0
        %3831 = vmatmul.mubr.f32.gmra.mrb[0].mxu0 %v3748
        %v3832 = vpop.f32.mrb[0].mxu0
        %v3833 = vadd.f32 %v3765, %v3832
        %v3834 = vpop.f32.mrb[0].mxu0
        %3835 = vdwg.mxu0
        %v3836 = vmax.f32 %v3833, 0.0
        %v3837 = vld [vmem:[%s7] sm:$0xff]
        %v3838 = vld [vmem:[%s7 + $0x8] sm:$0xff]
        %v3839 = vld [vmem:[%s8] sm:$0x1]
        %vm3840 = vcmask 130048
        %v3842 = vsel %vm3840, %v3836, 0
        %3844 = vmatprep.subr.mxu0 0.0
        %3845 = vmatpush1.msra.mxu0 %v3837
        %3846 = vmatprep.subr.mxu0 0.0
        %3847 = vmatpush1.msra.mxu0 %v3838
        %3848 = vmatprep.subr.mxu0 0.0
        %3849 = vmatpush1.msra.mxu0 0.0
        %3850 = vmatprep.subr.mxu0 0.0
        %3851 = vmatpush1.msra.mxu0 0.0
        %3852 = vmatprep.subr.mxu0 0.0
        %3853 = vmatpush1.msra.mxu0 0.0
        %3854 = vmatprep.subr.mxu0 0.0
        %3855 = vmatpush1.msra.mxu0 0.0
        %3856 = vmatprep.subr.mxu0 0.0
        %3857 = vmatpush1.msra.mxu0 0.0
        %3858 = vmatprep.subr.mxu0 0.0
        %3859 = vmatpush1.msra.mxu0 0.0
        %3860 = vmatprep.subr.mxu0 0.0
        %3861 = vmatpush1.msra.mxu0 0.0
        %3862 = vmatprep.subr.mxu0 0.0
        %3863 = vmatpush1.msra.mxu0 0.0
        %3864 = vmatprep.subr.mxu0 0.0
        %3865 = vmatpush1.msra.mxu0 0.0
        %3866 = vmatprep.subr.mxu0 0.0
        %3867 = vmatpush1.msra.mxu0 0.0
        %3868 = vmatprep.subr.mxu0 0.0
        %3869 = vmatpush1.msra.mxu0 0.0
        %3870 = vmatprep.subr.mxu0 0.0
        %3871 = vmatpush1.msra.mxu0 0.0
        %3872 = vmatprep.subr.mxu0 0.0
        %3873 = vmatpush1.msra.mxu0 0.0
        %3874 = vmatprep.subr.mxu0 0.0
        %3875 = vmatpush1.msra.mxu0 0.0
        %3876 = vmatprep.subr.mxu0 0.0
        %3877 = vmatpush1.msra.mxu0 0.0
        %3878 = vmatprep.subr.mxu0 0.0
        %3879 = vmatpush1.msra.mxu0 0.0
        %3880 = vmatprep.subr.mxu0 0.0
        %3881 = vmatpush1.msra.mxu0 0.0
        %3882 = vmatprep.subr.mxu0 0.0
        %3883 = vmatpush1.msra.mxu0 0.0
        %3884 = vmatprep.subr.mxu0 0.0
        %3885 = vmatpush1.msra.mxu0 0.0
        %3886 = vmatprep.subr.mxu0 0.0
        %3887 = vmatpush1.msra.mxu0 0.0
        %3888 = vmatprep.subr.mxu0 0.0
        %3889 = vmatpush1.msra.mxu0 0.0
        %3890 = vmatprep.subr.mxu0 0.0
        %3891 = vmatpush1.msra.mxu0 0.0
        %3892 = vmatprep.subr.mxu0 0.0
        %3893 = vmatpush1.msra.mxu0 0.0
        %3894 = vmatprep.subr.mxu0 0.0
        %3895 = vmatpush1.msra.mxu0 0.0
        %3896 = vmatprep.subr.mxu0 0.0
        %3897 = vmatpush1.msra.mxu0 0.0
        %3898 = vmatprep.subr.mxu0 0.0
        %3899 = vmatpush1.msra.mxu0 0.0
        %3900 = vmatprep.subr.mxu0 0.0
        %3901 = vmatpush1.msra.mxu0 0.0
        %3902 = vmatprep.subr.mxu0 0.0
        %3903 = vmatpush1.msra.mxu0 0.0
        %3904 = vmatprep.subr.mxu0 0.0
        %3905 = vmatpush1.msra.mxu0 0.0
        %3906 = vmatprep.subr.mxu0 0.0
        %3907 = vmatpush1.msra.mxu0 0.0
        %3908 = vmatprep.mubr.f32.mxu0 0.0
        %3909 = vmatmul.mubr.f32.gmra.mrb[0].mxu0 %v3842
        %v3910 = vpop.f32.mrb[0].mxu0
        %v3911 = vadd.f32 %v3839, %v3910
        %v3912 = vpop.f32.mrb[0].mxu0
        %3913 = vdwg.mxu0
        %v3914 = vxor.u32 %v3911, 2147483648
        %v3915 = vmul.f32 %v3914, 1.442695
        %v3916 = vpow.pop %v3915
        %v3917 = vadd.f32 %v3916, 1.0
        %v3918 = vrcp.pop %v3917
        %v3919 = vmul.f32 1.0, %v3918
        %v3920 = vlaneseq
        %v3921 = vshrl.u32 %v3920, 7
        %v3922 = vsub.s32 0, %v3921
        %v3923 = vrot.slane %v3919, %v3922
        %v3924 = vmul.f32 %v3552, %v3923
        %v3925 = vmul.f32 %v3557, %v3923
        %v3926 = vmul.f32 %v3562, %v3923
        %v3927 = vmul.f32 %v3567, %v3923
        %v3928 = vmul.f32 %v3572, %v3923
        %v3929 = vmul.f32 %v3577, %v3923
        %v3930 = vmul.f32 %v3582, %v3923
        %v3931 = vmul.f32 %v3587, %v3923
        %v3932 = vmul.f32 %v3592, %v3923
        %v3933 = vmul.f32 %v3597, %v3923
        %v3934 = vmul.f32 %v3602, %v3923
        %v3935 = vmul.f32 %v3607, %v3923
        %v3936 = vmul.f32 %v3612, %v3923
        %v3937 = vmul.f32 %v3617, %v3923
        %v3938 = vmul.f32 %v3622, %v3923
        %v3939 = vmul.f32 %v3627, %v3923
        %v3940 = vmul.f32 %v3632, %v3923
        %v3941 = vmul.f32 %v3637, %v3923
        %v3942 = vmul.f32 %v3642, %v3923
        %v3943 = vmul.f32 %v3647, %v3923
        %v3944 = vmul.f32 %v3652, %v3923
        %v3945 = vmul.f32 %v3657, %v3923
        %v3946 = vmul.f32 %v3662, %v3923
        %v3947 = vmul.f32 %v3667, %v3923
        %v3948 = vmul.f32 %v3672, %v3923
        %v3949 = vmul.f32 %v3677, %v3923
        %v3950 = vmul.f32 %v3682, %v3923
        %v3951 = vmul.f32 %v3687, %v3923
        %v3952 = vmul.f32 %v3692, %v3923
        %v3953 = vmul.f32 %v3697, %v3923
        %v3954 = vmul.f32 %v3702, %v3923
        %v3955 = vmul.f32 %v3707, %v3923
        %v3956 = vadd.f32 %v3924, %v452
        %v3957 = vadd.f32 %v3925, %v453
        %v3958 = vadd.f32 %v3926, %v454
        %v3959 = vadd.f32 %v3927, %v455
        %v3960 = vadd.f32 %v3928, %v456
        %v3961 = vadd.f32 %v3929, %v457
        %v3962 = vadd.f32 %v3930, %v458
        %v3963 = vadd.f32 %v3931, %v459
        %v3964 = vadd.f32 %v3932, %v460
        %v3965 = vadd.f32 %v3933, %v461
        %v3966 = vadd.f32 %v3934, %v462
        %v3967 = vadd.f32 %v3935, %v463
        %v3968 = vadd.f32 %v3936, %v464
        %v3969 = vadd.f32 %v3937, %v465
        %v3970 = vadd.f32 %v3938, %v466
        %v3971 = vadd.f32 %v3939, %v467
        %v3972 = vadd.f32 %v3940, %v468
        %v3973 = vadd.f32 %v3941, %v469
        %v3974 = vadd.f32 %v3942, %v470
        %v3975 = vadd.f32 %v3943, %v471
        %v3976 = vadd.f32 %v3944, %v472
        %v3977 = vadd.f32 %v3945, %v473
        %v3978 = vadd.f32 %v3946, %v474
        %v3979 = vadd.f32 %v3947, %v475
        %v3980 = vadd.f32 %v3948, %v476
        %v3981 = vadd.f32 %v3949, %v477
        %v3982 = vadd.f32 %v3950, %v478
        %v3983 = vadd.f32 %v3951, %v479
        %v3984 = vadd.f32 %v3952, %v480
        %v3985 = vadd.f32 %v3953, %v481
        %v3986 = vadd.f32 %v3954, %v482
        %v3987 = vadd.f32 %v3955, %v483
        %v3988 = vmax.f32 %v3956, 0.0
        %v3989 = vmax.f32 %v3957, 0.0
        %v3990 = vmax.f32 %v3958, 0.0
        %v3991 = vmax.f32 %v3959, 0.0
        %v3992 = vmax.f32 %v3960, 0.0
        %v3993 = vmax.f32 %v3961, 0.0
        %v3994 = vmax.f32 %v3962, 0.0
        %v3995 = vmax.f32 %v3963, 0.0
        %v3996 = vmax.f32 %v3964, 0.0
        %v3997 = vmax.f32 %v3965, 0.0
        %v3998 = vmax.f32 %v3966, 0.0
        %v3999 = vmax.f32 %v3967, 0.0
        %v4000 = vmax.f32 %v3968, 0.0
        %v4001 = vmax.f32 %v3969, 0.0
        %v4002 = vmax.f32 %v3970, 0.0
        %v4003 = vmax.f32 %v3971, 0.0
        %v4004 = vmax.f32 %v3972, 0.0
        %v4005 = vmax.f32 %v3973, 0.0
        %v4006 = vmax.f32 %v3974, 0.0
        %v4007 = vmax.f32 %v3975, 0.0
        %v4008 = vmax.f32 %v3976, 0.0
        %v4009 = vmax.f32 %v3977, 0.0
        %v4010 = vmax.f32 %v3978, 0.0
        %v4011 = vmax.f32 %v3979, 0.0
        %v4012 = vmax.f32 %v3980, 0.0
        %v4013 = vmax.f32 %v3981, 0.0
        %v4014 = vmax.f32 %v3982, 0.0
        %v4015 = vmax.f32 %v3983, 0.0
        %v4016 = vmax.f32 %v3984, 0.0
        %v4017 = vmax.f32 %v3985, 0.0
        %v4018 = vmax.f32 %v3986, 0.0
        %v4019 = vmax.f32 %v3987, 0.0
        %4020 = vst [vmem:[%s379] sm:$0xff] %v3988
        %4021 = vst [vmem:[%s379 + $0x8] sm:$0xff] %v3989
        %4022 = vst [vmem:[%s379 + $0x10] sm:$0xff] %v3990
        %4023 = vst [vmem:[%s379 + $0x18] sm:$0xff] %v3991
        %4024 = vst [vmem:[%s379 + $0x20] sm:$0xff] %v3992
        %4025 = vst [vmem:[%s379 + $0x28] sm:$0xff] %v3993
        %4026 = vst [vmem:[%s379 + $0x30] sm:$0xff] %v3994
        %4027 = vst [vmem:[%s379 + $0x38] sm:$0xff] %v3995
        %4028 = vst [vmem:[%s379 + $0x40] sm:$0xff] %v3996
        %4029 = vst [vmem:[%s379 + $0x48] sm:$0xff] %v3997
        %4030 = vst [vmem:[%s379 + $0x50] sm:$0xff] %v3998
        %4031 = vst [vmem:[%s379 + $0x58] sm:$0xff] %v3999
        %4032 = vst [vmem:[%s379 + $0x60] sm:$0xff] %v4000
        %4033 = vst [vmem:[%s379 + $0x68] sm:$0xff] %v4001
        %4034 = vst [vmem:[%s379 + $0x70] sm:$0xff] %v4002
        %4035 = vst [vmem:[%s379 + $0x78] sm:$0xff] %v4003
        %4036 = vst [vmem:[%s379 + $0x80] sm:$0xff] %v4004
        %4037 = vst [vmem:[%s379 + $0x88] sm:$0xff] %v4005
        %4038 = vst [vmem:[%s379 + $0x90] sm:$0xff] %v4006
        %4039 = vst [vmem:[%s379 + $0x98] sm:$0xff] %v4007
        %4040 = vst [vmem:[%s379 + $0xa0] sm:$0xff] %v4008
        %4041 = vst [vmem:[%s379 + $0xa8] sm:$0xff] %v4009
        %4042 = vst [vmem:[%s379 + $0xb0] sm:$0xff] %v4010
        %4043 = vst [vmem:[%s379 + $0xb8] sm:$0xff] %v4011
        %4044 = vst [vmem:[%s379 + $0xc0] sm:$0xff] %v4012
        %4045 = vst [vmem:[%s379 + $0xc8] sm:$0xff] %v4013
        %4046 = vst [vmem:[%s379 + $0xd0] sm:$0xff] %v4014
        %4047 = vst [vmem:[%s379 + $0xd8] sm:$0xff] %v4015
        %4048 = vst [vmem:[%s379 + $0xe0] sm:$0xff] %v4016
        %4049 = vst [vmem:[%s379 + $0xe8] sm:$0xff] %v4017
        %4050 = vst [vmem:[%s379 + $0xf0] sm:$0xff] %v4018
        %4051 = vst [vmem:[%s379 + $0xf8] sm:$0xff] %v4019
        %s4052 = sand.u32 %s229, 1
        %s4053 = scalar_lea.sflag [#allocation5], %s4052
        %s4054 = sand.u32 %s229, 1
        %s4055 = smul.addr %s4054, 256
        %s4056 = scalar_lea.vmem [#allocation9], %s4055
        // Predicated region
        $region69: #{residual_block_forward.1} parent=55 // pred_check
          %p4057 = pneg %p239
        $region70: #{residual_block_forward.1} parent=55 // pred_check_branch
          %4059 = sbr.rel (%p4057) target = $region72
        $region71: #{residual_block_forward.1} parent=55 // pred_region
          %s4061 = ssub.s32 4096, 4096
          %4062 = vsyncadd %s4053, %s4061
          %s4063 = smul.addr %s27, 32
          %s4064 = smul.addr %s4063, 128
          %s4065 = scalar_lea.hbm %s9, %s4064
          %s4066 = sshll.u32 %s4056, 4
          %s4067 = int_to_ptr.vmem [resolvable:$true] %s4066
          %4072 = dma.vmem_to_hbm [thread:$0]  %s4067, 4096, %s4065, %s4053, 128, 128, 8
        $region72: #{residual_block_forward.1} parent=55 // pred_fallthru
          _
      $region56: #{residual_block_forward.1} parent=5 // pred_fallthru
        _
      %p4073 = scmp.le.s32.totalorder 2, %s22
      // Predicated region
      $region73: #{residual_block_forward.1} parent=5 // pred_check
        %p4074 = pneg %p4073
      $region74: #{residual_block_forward.1} parent=5 // pred_check_branch
        %4076 = sbr.rel (%p4074) target = $region76
      $region75: #{residual_block_forward.1} parent=5 // pred_region
        %s4077 = ssub.s32 %s22, 2
        // Predicated region
        $region77: #{residual_block_forward.1} parent=75 // pred_check
          %p4078 = pneg %p245
        $region78: #{residual_block_forward.1} parent=75 // pred_check_branch
          %4080 = sbr.rel (%p4078) target = $region80
        $region79: #{residual_block_forward.1} parent=75 // pred_region
          %s4081 = sand.u32 %s230, 1
          %s4082 = scalar_lea.sflag [#allocation5], %s4081
          %s4083 = sand.u32 %s230, 1
          %s4084 = smul.addr %s4083, 256
          %s4085 = scalar_lea.vmem [#allocation9], %s4084
          %4086 = dma.done %s4082, 4096
        $region80: #{residual_block_forward.1} parent=75 // pred_fallthru
          _
      $region76: #{residual_block_forward.1} parent=5 // pred_fallthru
        _
    $region6: #{residual_block_forward.1} parent=1 // loop_footer
      %s26 = sadd.s32 1, %s22
    $region7: #{residual_block_forward.1} parent=1 // loop_footer_branch
      %21 = sbr.rel target = $region3
    $region8: #{residual_block_forward.1} parent=1 // loop_exit
      _
    %4087 = vsyncpa [#allocation4], 1
    %s4088 = scalar_lea.sflag [#allocation4], 1
    %4089 = vsyncpa %s4088, 1
    %4090 = vsyncpa [#allocation7], 1
    %4091 = vsyncpa [#allocation5], 1
    %s4092 = scalar_lea.sflag [#allocation5], 1
    %4093 = vsyncpa %s4092, 1

</llo_original>
